<compile_context>
chip_gen: v6e
topology: v6e:2x2x1
jax: 0.10.0
libtpu: 0.0.40
codegen_flags: <defaults>
</compile_context>

<pallas_src>
import math
import functools

import jax
import jax.numpy as jnp
from jax import lax
from jax.experimental import pallas as pl
from jax.experimental.pallas import tpu as pltpu

# ---------------- config (small synthetic sizes) ----------------
B = 2
IMG_HW = 16
VOCAB = 50
T = 8                      # question length
EMB = 12                   # word-embedding size (stands in for 300-d GloVe)
HIDDEN = 32                # opt['hidden_size']
NUM_LAYERS = 1
RNN = HIDDEN - EMB         # rnn_dim = hidden_size - emb_dim (mirrors hidden-300)
NUM_NONE = 2               # opt['num_none']
NUM_ANS = 10
GRID_HW = 4                # spatial grid of extracted image features
N_IMG = GRID_HW * GRID_HW

CNN_CH = (8, 16, 24, 32)
NUM_SCALES = 4
POOL_FACTORS = (2, 4, 8, 8)

# ---------------- Pallas kernels ----------------


def _lstm_kernel(emb_ref, wih_ref, whh_ref, b_ref, hs_ref, ht_ref, h_sc, c_sc):
    """Fused input-projection + LSTM recurrence.

    emb_ref: (T, B, EMB)   wih_ref: (EMB, 4R)   whh_ref: (R, 4R)   b_ref: (1, 4R)
    hs_ref : (T, B, R)     ht_ref : (B, R)      h_sc/c_sc: VMEM (B, R)
    """
    t_steps = emb_ref.shape[0]
    r = whh_ref.shape[0]
    wih = wih_ref[...]
    whh = whh_ref[...]
    bias = b_ref[...]

    h_sc[...] = jnp.zeros_like(h_sc)
    c_sc[...] = jnp.zeros_like(c_sc)

    def step(t, carry):
        xt = emb_ref[t]                                   # (B, EMB)
        h = h_sc[...]
        c = c_sc[...]
        gates = (jnp.dot(xt, wih, preferred_element_type=jnp.float32)
                 + jnp.dot(h, whh, preferred_element_type=jnp.float32) + bias)
        i = jax.nn.sigmoid(gates[:, 0:r])
        f = jax.nn.sigmoid(gates[:, r:2 * r])
        g = jnp.tanh(gates[:, 2 * r:3 * r])
        o = jax.nn.sigmoid(gates[:, 3 * r:4 * r])
        c_new = f * c + i * g
        h_new = o * jnp.tanh(c_new)
        h_sc[...] = h_new
        c_sc[...] = c_new
        hs_ref[t] = h_new
        return carry

    lax.fori_loop(0, t_steps, step, 0, unroll=True)
    ht_ref[...] = h_sc[...]


def _scaled_linear_kernel(x_ref, s_ref, w_ref, b_ref, o_ref):
    """o = (x * s) @ w + b   (all 2D, whole-array blocks in VMEM)."""
    o_ref[...] = (jnp.dot(x_ref[...] * s_ref[...], w_ref[...],
                          preferred_element_type=jnp.float32) + b_ref[...])


def _coattn_fuse_kernel(img_ref, q_ref, imask_ref, qmask_ref,
                        fiw1_ref, fiw2_ref, fib_ref,
                        fqw1_ref, fqw2_ref, fqb_ref,
                        img_out_ref, q_out_ref):
    """Whole-batch dense co-attention with fused residual ReLU 'fuse' layers.

    img_ref : (B, Nie, D)   q_ref: (B, Tqe, D)    (Nie/Tqe include 'none' slots)
    imask   : (B, 1, Nie)   qmask: (B, 1, Tqe)
    fiw1/fiw2: (B, D, D)    fib: (1, 1, D)   (same for ques)
    outputs : (B, Ni, D), (B, Tq, D)  -- 'none' slots stripped.
    """
    img = img_ref[...]
    q = q_ref[...]
    im = imask_ref[...]
    qm = qmask_ref[...]
    d = img.shape[-1]
    ni = img_out_ref.shape[1]
    tq = q_out_ref.shape[1]
    scale = 1.0 / math.sqrt(d)

    # ---- image attends over question words (softmax over last dim) ----
    aff = jnp.einsum('bnd,btd->bnt', img, q,
                     preferred_element_type=jnp.float32) * scale     # (B,Nie,Tqe)
    a_q = jnp.where(qm > 0.0, aff, -1e9)
    a_q = a_q - jnp.max(a_q, axis=-1, keepdims=True)
    e_q = jnp.exp(a_q)
    attn_q = e_q * pl.reciprocal(jnp.sum(e_q, axis=-1, keepdims=True), approx=True)
    ictx = jnp.einsum('bnt,btd->bnd', attn_q, q,
                      preferred_element_type=jnp.float32)            # (B,Nie,D)

    # ---- question attends over image positions (transposed affinity so the
    #      softmax reduction stays on the lane axis; no explicit transpose) ----
    aff_t = jnp.einsum('btd,bnd->btn', q, img,
                       preferred_element_type=jnp.float32) * scale   # (B,Tqe,Nie)
    a_i = jnp.where(im > 0.0, aff_t, -1e9)
    a_i = a_i - jnp.max(a_i, axis=-1, keepdims=True)
    e_i = jnp.exp(a_i)
    attn_i = e_i * pl.reciprocal(jnp.sum(e_i, axis=-1, keepdims=True), approx=True)
    qctx = jnp.einsum('btn,bnd->btd', attn_i, img,
                      preferred_element_type=jnp.float32)            # (B,Tqe,D)

    # ---- fused residual 'fuse' layers: x + relu(x@W1 + ctx@W2 + b) ----
    img_p = img[:, :ni, :]
    ictx_p = ictx[:, :ni, :]
    hi = (jnp.einsum('bnd,bde->bne', img_p, fiw1_ref[...],
                     preferred_element_type=jnp.float32)
          + jnp.einsum('bnd,bde->bne', ictx_p, fiw2_ref[...],
                       preferred_element_type=jnp.float32)
          + fib_ref[...])
    img_out_ref[...] = img_p + jnp.maximum(hi, 0.0)

    q_p = q[:, :tq, :]
    qctx_p = qctx[:, :tq, :]
    hq = (jnp.einsum('btd,bde->bte', q_p, fqw1_ref[...],
                     preferred_element_type=jnp.float32)
          + jnp.einsum('btd,bde->bte', qctx_p, fqw2_ref[...],
                       preferred_element_type=jnp.float32)
          + fqb_ref[...])
    q_out_ref[...] = q_p + jnp.maximum(hq, 0.0)


def _predict_kernel(img_ref, ques_ref, imask_ref, qmask_ref,
                    wi_ref, wq_ref, pw_ref, pb_ref, o_ref):
    """Summary attention over image & question + elementwise fuse + answer head.

    img: (B, Ni, D)  ques: (B, Tq, D)  masks: (B,1,Ni)/(B,1,Tq)
    wi/wq: (B, 1, D)  pw: (B, D, NA)  pb: (1, 1, NA)  o: (B, 1, NA)
    """
    img = img_ref[...]
    ques = ques_ref[...]
    im = imask_ref[...]
    qm = qmask_ref[...]

    si = jnp.einsum('bqd,bnd->bqn', wi_ref[...], img,
                    preferred_element_type=jnp.float32)              # (B,1,Ni)
    si = jnp.where(im > 0.0, si, -1e9)
    si = si - jnp.max(si, axis=-1, keepdims=True)
    ei = jnp.exp(si)
    ai = ei * pl.reciprocal(jnp.sum(ei, axis=-1, keepdims=True), approx=True)
    img_s = jnp.einsum('bqn,bnd->bqd', ai, img,
                       preferred_element_type=jnp.float32)           # (B,1,D)

    sq = jnp.einsum('bqd,btd->bqt', wq_ref[...], ques,
                    preferred_element_type=jnp.float32)              # (B,1,Tq)
    sq = jnp.where(qm > 0.0, sq, -1e9)
    sq = sq - jnp.max(sq, axis=-1, keepdims=True)
    eq = jnp.exp(sq)
    aq = eq * pl.reciprocal(jnp.sum(eq, axis=-1, keepdims=True), approx=True)
    ques_s = jnp.einsum('bqt,btd->bqd', aq, ques,
                        preferred_element_type=jnp.float32)          # (B,1,D)

    fused = img_s * ques_s                                           # (B,1,D)
    o_ref[...] = jnp.einsum('bqd,bda->bqa', fused, pw_ref[...],
                            preferred_element_type=jnp.float32) + pb_ref[...]


# ---------------- parameters (deterministic Xavier-normal) ----------------

def xavier(key, shape):
    fan_in, fan_out = shape[-2], shape[-1]
    std = math.sqrt(2.0 / (fan_in + fan_out))
    return (std * jax.random.normal(key, shape)).astype(jnp.float32)


def init_params(key):
    ks = jax.random.split(key, 32)
    p = {}
    p['embed'] = xavier(ks[0], (VOCAB, EMB))
    p['lstm_wih'] = xavier(ks[1], (EMB, 4 * RNN))
    p['lstm_whh'] = xavier(ks[2], (RNN, 4 * RNN))
    p['lstm_bih'] = jnp.zeros((4 * RNN,), jnp.float32)
    p['lstm_bhh'] = jnp.zeros((4 * RNN,), jnp.float32)
    for k, c in enumerate(CNN_CH):
        p[f'cnn_w{k}'] = xavier(ks[3 + k], (3, c))
        p[f'cnn_b{k}'] = jnp.zeros((c,), jnp.float32)
        p[f'proj_w{k}'] = xavier(ks[7 + k], (c, HIDDEN))
        p[f'proj_b{k}'] = jnp.zeros((HIDDEN,), jnp.float32)
    p['scale_w'] = xavier(ks[11], (NUM_LAYERS * RNN, 4))
    p['scale_b'] = jnp.zeros((4,), jnp.float32)
    p['none_img'] = xavier(ks[12], (NUM_NONE, HIDDEN))
    p['none_ques'] = xavier(ks[13], (NUM_NONE, HIDDEN))
    p['fuse_img_w'] = xavier(ks[14], (2 * HIDDEN, HIDDEN))
    p['fuse_img_b'] = jnp.zeros((HIDDEN,), jnp.float32)
    p['fuse_ques_w'] = xavier(ks[15], (2 * HIDDEN, HIDDEN))
    p['fuse_ques_b'] = jnp.zeros((HIDDEN,), jnp.float32)
    p['pred_attn_img'] = xavier(ks[16], (HIDDEN, 1))
    p['pred_attn_ques'] = xavier(ks[17], (HIDDEN, 1))
    p['pred_w'] = xavier(ks[18], (HIDDEN, NUM_ANS))
    p['pred_b'] = jnp.zeros((NUM_ANS,), jnp.float32)
    return p


# ---------------- sub-modules ----------------

def avg_pool_nchw(x, factor):
    b, c, h, w = x.shape
    x = x.reshape(b, c, h // factor, factor, w // factor, factor)
    return x.mean(axis=(3, 5))


def resize_to_grid(f_nhwc, grid_hw):
    b, h, w, d = f_nhwc.shape
    if h > grid_hw:
        fac = h // grid_hw
        f = f_nhwc.reshape(b, grid_hw, fac, grid_hw, fac, d).mean(axis=(2, 4))
    elif h < grid_hw:
        rep = grid_hw // h
        f = jnp.repeat(jnp.repeat(f_nhwc, rep, axis=1), rep, axis=2)
    else:
        f = f_nhwc
    return f.reshape(b, grid_hw * grid_hw, d)


def lang_extract(p, ques_ids):
    """LSTM with residual embeddings; recurrence runs in one Pallas kernel."""
    b, tq = ques_ids.shape
    emb = p['embed'][ques_ids]                                      # (B,T,EMB)
    emb_t = emb.transpose(1, 0, 2)                                  # (T,B,EMB)
    bias = (p['lstm_bih'] + p['lstm_bhh']).reshape(1, 4 * RNN)

    hs_t, ht = pl.pallas_call(
        _lstm_kernel,
        out_shape=(jax.ShapeDtypeStruct((tq, b, RNN), jnp.float32),
                   jax.ShapeDtypeStruct((b, RNN), jnp.float32)),
        scratch_shapes=[pltpu.VMEM((b, RNN), jnp.float32),
                        pltpu.VMEM((b, RNN), jnp.float32)],
    )(emb_t, p['lstm_wih'], p['lstm_whh'], bias)

    hs = hs_t.transpose(1, 0, 2)                                    # (B,T,RNN)
    ques_feat = jnp.concatenate([emb, hs], axis=-1)  # residual_embeddings=True
    ques_vec = ht                                    # (B, NUM_LAYERS*RNN)
    return ques_feat, ques_vec


def img_extract(p, img_nchw, ques_vec):
    """Pooled-backbone stub + fused (1x1 conv @ projection) + scale mixture.

    TODO(synk): real frozen ResNet backbone (opt['cnn_name']) replaced by a
    pooled stub; multi-head (num_img_attn) image attention reduced to a single
    question-conditioned soft mixture over 4 scales.
    TODO(synk): cnn_w@proj_w fusion is exact for the forward pass but moves the
    stop_gradient/detach boundary if a backward pass is ever added.
    """
    b = img_nchw.shape[0]
    pooled = []
    for factor in POOL_FACTORS:
        f = avg_pool_nchw(img_nchw, factor)                         # (B,3,h,w)
        f = lax.stop_gradient(f)                                    # detach stub features
        f = f.transpose(0, 2, 3, 1)                                 # NHWC
        pooled.append(resize_to_grid(f, GRID_HW))                   # (B,N_IMG,3)
    x = jnp.concatenate(pooled, axis=-1)                            # (B,N_IMG,12)

    # fold conv1x1 + projection (no nonlinearity in between) into one matmul
    w_fused = jnp.concatenate(
        [p[f'cnn_w{k}'] @ p[f'proj_w{k}'] for k in range(NUM_SCALES)], axis=0)   # (12,D)
    b_stack = jnp.stack(
        [p[f'cnn_b{k}'] @ p[f'proj_w{k}'] + p[f'proj_b{k}'] for k in range(NUM_SCALES)],
        axis=0)                                                                   # (4,D)

    # question-conditioned soft mixture over scales (tiny -> plain XLA)
    logits = ques_vec @ p['scale_w'] + p['scale_b']                 # (B,4)
    w = jax.nn.softmax(logits, axis=-1)                             # (B,4)
    lane_scale = jnp.repeat(w, 3, axis=-1)                          # (B,12)
    bias_mix = w @ b_stack                                          # (B,D)

    m = b * N_IMG
    x2 = x.reshape(m, NUM_SCALES * 3)
    s2 = jnp.broadcast_to(lane_scale[:, None, :], (b, N_IMG, NUM_SCALES * 3)
                          ).reshape(m, NUM_SCALES * 3)
    b2 = jnp.broadcast_to(bias_mix[:, None, :], (b, N_IMG, HIDDEN)).reshape(m, HIDDEN)

    y = pl.pallas_call(
        _scaled_linear_kernel,
        out_shape=jax.ShapeDtypeStruct((m, HIDDEN), jnp.float32),
    )(x2, s2, w_fused, b2)
    return y.reshape(b, N_IMG, HIDDEN)                              # (B,N,D) tokens


def dense_coattn_layer(p, img, ques, img_mask, ques_mask):
    """TODO(synk): multi-head (num_dense_attn) and num_seq stacking reduced to a
    single-head, single-pass dense co-attention with 'none' padding vectors."""
    b, ni, d = img.shape
    tq = ques.shape[1]
    none_i = jnp.broadcast_to(p['none_img'][None], (b, NUM_NONE, d))
    none_q = jnp.broadcast_to(p['none_ques'][None], (b, NUM_NONE, d))
    img_e = jnp.concatenate([img, none_i], axis=1)
    ques_e = jnp.concatenate([ques, none_q], axis=1)
    ones = jnp.ones((b, NUM_NONE), jnp.float32)
    imask_e = jnp.concatenate([img_mask.astype(jnp.float32), ones], axis=1)[:, None, :]
    qmask_e = jnp.concatenate([ques_mask.astype(jnp.float32), ones], axis=1)[:, None, :]

    # split (2D -> D) fuse weights into two (D,D) halves; broadcast for batched einsum
    fiw1 = jnp.broadcast_to(p['fuse_img_w'][:d][None], (b, d, d))
    fiw2 = jnp.broadcast_to(p['fuse_img_w'][d:][None], (b, d, d))
    fib = p['fuse_img_b'].reshape(1, 1, d)
    fqw1 = jnp.broadcast_to(p['fuse_ques_w'][:d][None], (b, d, d))
    fqw2 = jnp.broadcast_to(p['fuse_ques_w'][d:][None], (b, d, d))
    fqb = p['fuse_ques_b'].reshape(1, 1, d)

    img_new, ques_new = pl.pallas_call(
        _coattn_fuse_kernel,
        out_shape=(jax.ShapeDtypeStruct((b, ni, d), jnp.float32),
                   jax.ShapeDtypeStruct((b, tq, d), jnp.float32)),
    )(img_e, ques_e, imask_e, qmask_e, fiw1, fiw2, fib, fqw1, fqw2, fqb)
    return img_new, ques_new


def predict_layer(p, img, ques, img_mask, ques_mask):
    """TODO(synk): num_predict_attn glimpses reduced to one summary head;
    is_cat=False branch modelled as elementwise fusion of the two summaries."""
    b, ni, d = img.shape
    imask = img_mask.astype(jnp.float32)[:, None, :]                # (B,1,Ni)
    qmask = ques_mask.astype(jnp.float32)[:, None, :]               # (B,1,Tq)
    wi = jnp.broadcast_to(p['pred_attn_img'].reshape(1, 1, d), (b, 1, d))
    wq = jnp.broadcast_to(p['pred_attn_ques'].reshape(1, 1, d), (b, 1, d))
    pw = jnp.broadcast_to(p['pred_w'][None], (b, d, NUM_ANS))
    pb = p['pred_b'].reshape(1, 1, NUM_ANS)

    score = pl.pallas_call(
        _predict_kernel,
        out_shape=jax.ShapeDtypeStruct((b, 1, NUM_ANS), jnp.float32),
    )(img, ques, imask, qmask, wi, wq, pw, pb)
    return score.reshape(b, NUM_ANS)


# ---------------- full DCN forward ----------------

def dcn_forward(params, img, ques_ids, img_mask, ques_mask):
    ques_feat, ques_vec = lang_extract(params, ques_ids)
    img_seq = img_extract(params, img, ques_vec)                    # (B, N_IMG, D)
    img_o, ques_o = dense_coattn_layer(params, img_seq, ques_feat,
                                       img_mask, ques_mask)
    score = predict_layer(params, img_o, ques_o, img_mask, ques_mask)
    return score


if __name__ == "__main__":
    key = jax.random.PRNGKey(0)
    pkey, k_img, k_q = jax.random.split(key, 3)
    params = init_params(pkey)

    img = jax.random.normal(k_img, (B, 3, IMG_HW, IMG_HW), dtype=jnp.float32)
    ques = jax.random.randint(k_q, (B, T), 0, VOCAB, dtype=jnp.int32)
    img_mask = jnp.ones((B, N_IMG), jnp.float32)
    ques_mask = jnp.concatenate(
        [jnp.ones((B, T - 2), jnp.float32), jnp.zeros((B, 2), jnp.float32)], axis=1)

    fwd = jax.jit(functools.partial(dcn_forward, params))
    score = fwd(img, ques, img_mask, ques_mask)
    jax.block_until_ready(score)
    assert score.shape == (B, NUM_ANS)
    assert bool(jnp.all(jnp.isfinite(score)))
    print("KERNEL_OK")
</pallas_src>

<mosaic_0001>
module attributes {stable_mosaic.version = 11 : i64} {
  func.func @_lstm_kernel(%arg0: memref<8x2x12xf32, #tpu.memory_space<vmem>>, %arg1: memref<12x80xf32, #tpu.memory_space<vmem>>, %arg2: memref<20x80xf32, #tpu.memory_space<vmem>>, %arg3: memref<1x80xf32, #tpu.memory_space<vmem>>, %arg4: memref<8x2x20xf32, #tpu.memory_space<vmem>>, %arg5: memref<2x20xf32, #tpu.memory_space<vmem>>, %arg6: memref<2x20xf32, #tpu.memory_space<vmem>>, %arg7: memref<2x20xf32, #tpu.memory_space<vmem>>) attributes {dimension_semantics = [], scalar_prefetch = 0 : i64, scratch_operands = 2 : i64, tpu.core_type = #tpu.core_type<tc>} {
    %c0 = arith.constant 0 : index
    %c0_0 = arith.constant 0 : index
    %0 = vector.load %arg1[%c0, %c0_0] : memref<12x80xf32, #tpu.memory_space<vmem>>, vector<12x80xf32>
    %c0_1 = arith.constant 0 : index
    %c0_2 = arith.constant 0 : index
    %1 = vector.load %arg2[%c0_1, %c0_2] : memref<20x80xf32, #tpu.memory_space<vmem>>, vector<20x80xf32>
    %c0_3 = arith.constant 0 : index
    %c0_4 = arith.constant 0 : index
    %2 = vector.load %arg3[%c0_3, %c0_4] : memref<1x80xf32, #tpu.memory_space<vmem>>, vector<1x80xf32>
    %cst = arith.constant 0.000000e+00 : f32
    %3 = vector.broadcast %cst : f32 to vector<2x20xf32>
    %c0_5 = arith.constant 0 : index
    %c0_6 = arith.constant 0 : index
    %4 = vector.load %arg6[%c0_5, %c0_6] : memref<2x20xf32, #tpu.memory_space<vmem>>, vector<2x20xf32>
    tpu.vector_store %arg6[%c0_5, %c0_6], %3 {strides = array<i32>} : memref<2x20xf32, #tpu.memory_space<vmem>>, vector<2x20xf32>,
    %cst_7 = arith.constant 0.000000e+00 : f32
    %5 = vector.broadcast %cst_7 : f32 to vector<2x20xf32>
    %c0_8 = arith.constant 0 : index
    %c0_9 = arith.constant 0 : index
    %6 = vector.load %arg7[%c0_8, %c0_9] : memref<2x20xf32, #tpu.memory_space<vmem>>, vector<2x20xf32>
    tpu.vector_store %arg7[%c0_8, %c0_9], %5 {strides = array<i32>} : memref<2x20xf32, #tpu.memory_space<vmem>>, vector<2x20xf32>,
    %c0_i32 = arith.constant 0 : i32
    %7 = arith.index_cast %c0_i32 : i32 to index
    %c0_10 = arith.constant 0 : index
    %c0_11 = arith.constant 0 : index
    %8 = vector.load %arg0[%7, %c0_10, %c0_11] : memref<8x2x12xf32, #tpu.memory_space<vmem>>, vector<1x2x12xf32>
    %9 = vector.shape_cast %8 : vector<1x2x12xf32> to vector<2x12xf32>
    %c0_12 = arith.constant 0 : index
    %c0_13 = arith.constant 0 : index
    %10 = vector.load %arg6[%c0_12, %c0_13] : memref<2x20xf32, #tpu.memory_space<vmem>>, vector<2x20xf32>
    %c0_14 = arith.constant 0 : index
    %c0_15 = arith.constant 0 : index
    %11 = vector.load %arg7[%c0_14, %c0_15] : memref<2x20xf32, #tpu.memory_space<vmem>>, vector<2x20xf32>
    %cst_16 = arith.constant dense<0.000000e+00> : vector<2x80xf32>
    %12 = tpu.matmul %9, %0, %cst_16 {dimension_numbers = #tpu.dot_dimension_numbers<[1], [0], [0], [1], [0, 0, 1, 1], [], []>} : vector<2x12xf32>, vector<12x80xf32>, vector<2x80xf32> -> vector<2x80xf32>
    %cst_17 = arith.constant dense<0.000000e+00> : vector<2x80xf32>
    %13 = tpu.matmul %10, %1, %cst_17 {dimension_numbers = #tpu.dot_dimension_numbers<[1], [0], [0], [1], [0, 0, 1, 1], [], []>} : vector<2x20xf32>, vector<20x80xf32>, vector<2x80xf32> -> vector<2x80xf32>
    %14 = arith.addf %12, %13 : vector<2x80xf32>
    %15 = vector.broadcast %2 : vector<1x80xf32> to vector<2x80xf32>
    %16 = arith.addf %14, %15 : vector<2x80xf32>
    %17 = vector.extract_strided_slice %16 {offsets = [0, 0], sizes = [2, 20], strides = [1, 1]} : vector<2x80xf32> to vector<2x20xf32>
    %18 = arith.negf %17 : vector<2x20xf32>
    %19 = math.exp %18 : vector<2x20xf32>
    %cst_18 = arith.constant 1.000000e+00 : f32
    %20 = vector.broadcast %cst_18 : f32 to vector<2x20xf32>
    %21 = arith.addf %20, %19 : vector<2x20xf32>
    %22 = arith.divf %20, %21 : vector<2x20xf32>
    %23 = vector.extract_strided_slice %16 {offsets = [0, 20], sizes = [2, 20], strides = [1, 1]} : vector<2x80xf32> to vector<2x20xf32>
    %24 = arith.negf %23 : vector<2x20xf32>
    %25 = math.exp %24 : vector<2x20xf32>
    %cst_19 = arith.constant 1.000000e+00 : f32
    %26 = vector.broadcast %cst_19 : f32 to vector<2x20xf32>
    %27 = arith.addf %26, %25 : vector<2x20xf32>
    %28 = arith.divf %26, %27 : vector<2x20xf32>
    %29 = vector.extract_strided_slice %16 {offsets = [0, 40], sizes = [2, 20], strides = [1, 1]} : vector<2x80xf32> to vector<2x20xf32>
    %30 = math.tanh %29 : vector<2x20xf32>
    %31 = vector.extract_strided_slice %16 {offsets = [0, 60], sizes = [2, 20], strides = [1, 1]} : vector<2x80xf32> to vector<2x20xf32>
    %32 = arith.negf %31 : vector<2x20xf32>
    %33 = math.exp %32 : vector<2x20xf32>
    %cst_20 = arith.constant 1.000000e+00 : f32
    %34 = vector.broadcast %cst_20 : f32 to vector<2x20xf32>
    %35 = arith.addf %34, %33 : vector<2x20xf32>
    %36 = arith.divf %34, %35 : vector<2x20xf32>
    %37 = arith.mulf %28, %11 : vector<2x20xf32>
    %38 = arith.mulf %22, %30 : vector<2x20xf32>
    %39 = arith.addf %37, %38 : vector<2x20xf32>
    %40 = math.tanh %39 : vector<2x20xf32>
    %41 = arith.mulf %36, %40 : vector<2x20xf32>
    %c0_21 = arith.constant 0 : index
    %c0_22 = arith.constant 0 : index
    %42 = vector.load %arg6[%c0_21, %c0_22] : memref<2x20xf32, #tpu.memory_space<vmem>>, vector<2x20xf32>
    tpu.vector_store %arg6[%c0_21, %c0_22], %41 {strides = array<i32>} : memref<2x20xf32, #tpu.memory_space<vmem>>, vector<2x20xf32>,
    %c0_23 = arith.constant 0 : index
    %c0_24 = arith.constant 0 : index
    %43 = vector.load %arg7[%c0_23, %c0_24] : memref<2x20xf32, #tpu.memory_space<vmem>>, vector<2x20xf32>
    tpu.vector_store %arg7[%c0_23, %c0_24], %39 {strides = array<i32>} : memref<2x20xf32, #tpu.memory_space<vmem>>, vector<2x20xf32>,
    %44 = arith.index_cast %c0_i32 : i32 to index
    %c0_25 = arith.constant 0 : index
    %c0_26 = arith.constant 0 : index
    %45 = vector.load %arg4[%44, %c0_25, %c0_26] : memref<8x2x20xf32, #tpu.memory_space<vmem>>, vector<1x2x20xf32>
    %46 = vector.shape_cast %45 : vector<1x2x20xf32> to vector<2x20xf32>
    %47 = vector.shape_cast %41 : vector<2x20xf32> to vector<1x2x20xf32>
    tpu.vector_store %arg4[%44, %c0_25, %c0_26], %47 {strides = array<i32>} : memref<8x2x20xf32, #tpu.memory_space<vmem>>, vector<1x2x20xf32>,
    %c1_i32 = arith.constant 1 : i32
    %48 = arith.index_cast %c1_i32 : i32 to index
    %c0_27 = arith.constant 0 : index
    %c0_28 = arith.constant 0 : index
    %49 = vector.load %arg0[%48, %c0_27, %c0_28] : memref<8x2x12xf32, #tpu.memory_space<vmem>>, vector<1x2x12xf32>
    %50 = vector.shape_cast %49 : vector<1x2x12xf32> to vector<2x12xf32>
    %c0_29 = arith.constant 0 : index
    %c0_30 = arith.constant 0 : index
    %51 = vector.load %arg6[%c0_29, %c0_30] : memref<2x20xf32, #tpu.memory_space<vmem>>, vector<2x20xf32>
    %c0_31 = arith.constant 0 : index
    %c0_32 = arith.constant 0 : index
    %52 = vector.load %arg7[%c0_31, %c0_32] : memref<2x20xf32, #tpu.memory_space<vmem>>, vector<2x20xf32>
    %cst_33 = arith.constant dense<0.000000e+00> : vector<2x80xf32>
    %53 = tpu.matmul %50, %0, %cst_33 {dimension_numbers = #tpu.dot_dimension_numbers<[1], [0], [0], [1], [0, 0, 1, 1], [], []>} : vector<2x12xf32>, vector<12x80xf32>, vector<2x80xf32> -> vector<2x80xf32>
    %cst_34 = arith.constant dense<0.000000e+00> : vector<2x80xf32>
    %54 = tpu.matmul %51, %1, %cst_34 {dimension_numbers = #tpu.dot_dimension_numbers<[1], [0], [0], [1], [0, 0, 1, 1], [], []>} : vector<2x20xf32>, vector<20x80xf32>, vector<2x80xf32> -> vector<2x80xf32>
    %55 = arith.addf %53, %54 : vector<2x80xf32>
    %56 = vector.broadcast %2 : vector<1x80xf32> to vector<2x80xf32>
    %57 = arith.addf %55, %56 : vector<2x80xf32>
    %58 = vector.extract_strided_slice %57 {offsets = [0, 0], sizes = [2, 20], strides = [1, 1]} : vector<2x80xf32> to vector<2x20xf32>
    %59 = arith.negf %58 : vector<2x20xf32>
    %60 = math.exp %59 : vector<2x20xf32>
    %cst_35 = arith.constant 1.000000e+00 : f32
    %61 = vector.broadcast %cst_35 : f32 to vector<2x20xf32>
    %62 = arith.addf %61, %60 : vector<2x20xf32>
    %63 = arith.divf %61, %62 : vector<2x20xf32>
    %64 = vector.extract_strided_slice %57 {offsets = [0, 20], sizes = [2, 20], strides = [1, 1]} : vector<2x80xf32> to vector<2x20xf32>
    %65 = arith.negf %64 : vector<2x20xf32>
    %66 = math.exp %65 : vector<2x20xf32>
    %cst_36 = arith.constant 1.000000e+00 : f32
    %67 = vector.broadcast %cst_36 : f32 to vector<2x20xf32>
    %68 = arith.addf %67, %66 : vector<2x20xf32>
    %69 = arith.divf %67, %68 : vector<2x20xf32>
    %70 = vector.extract_strided_slice %57 {offsets = [0, 40], sizes = [2, 20], strides = [1, 1]} : vector<2x80xf32> to vector<2x20xf32>
    %71 = math.tanh %70 : vector<2x20xf32>
    %72 = vector.extract_strided_slice %57 {offsets = [0, 60], sizes = [2, 20], strides = [1, 1]} : vector<2x80xf32> to vector<2x20xf32>
    %73 = arith.negf %72 : vector<2x20xf32>
    %74 = math.exp %73 : vector<2x20xf32>
    %cst_37 = arith.constant 1.000000e+00 : f32
    %75 = vector.broadcast %cst_37 : f32 to vector<2x20xf32>
    %76 = arith.addf %75, %74 : vector<2x20xf32>
    %77 = arith.divf %75, %76 : vector<2x20xf32>
    %78 = arith.mulf %69, %52 : vector<2x20xf32>
    %79 = arith.mulf %63, %71 : vector<2x20xf32>
    %80 = arith.addf %78, %79 : vector<2x20xf32>
    %81 = math.tanh %80 : vector<2x20xf32>
    %82 = arith.mulf %77, %81 : vector<2x20xf32>
    %c0_38 = arith.constant 0 : index
    %c0_39 = arith.constant 0 : index
    %83 = vector.load %arg6[%c0_38, %c0_39] : memref<2x20xf32, #tpu.memory_space<vmem>>, vector<2x20xf32>
    tpu.vector_store %arg6[%c0_38, %c0_39], %82 {strides = array<i32>} : memref<2x20xf32, #tpu.memory_space<vmem>>, vector<2x20xf32>,
    %c0_40 = arith.constant 0 : index
    %c0_41 = arith.constant 0 : index
    %84 = vector.load %arg7[%c0_40, %c0_41] : memref<2x20xf32, #tpu.memory_space<vmem>>, vector<2x20xf32>
    tpu.vector_store %arg7[%c0_40, %c0_41], %80 {strides = array<i32>} : memref<2x20xf32, #tpu.memory_space<vmem>>, vector<2x20xf32>,
    %85 = arith.index_cast %c1_i32 : i32 to index
    %c0_42 = arith.constant 0 : index
    %c0_43 = arith.constant 0 : index
    %86 = vector.load %arg4[%85, %c0_42, %c0_43] : memref<8x2x20xf32, #tpu.memory_space<vmem>>, vector<1x2x20xf32>
    %87 = vector.shape_cast %86 : vector<1x2x20xf32> to vector<2x20xf32>
    %88 = vector.shape_cast %82 : vector<2x20xf32> to vector<1x2x20xf32>
    tpu.vector_store %arg4[%85, %c0_42, %c0_43], %88 {strides = array<i32>} : memref<8x2x20xf32, #tpu.memory_space<vmem>>, vector<1x2x20xf32>,
    %c2_i32 = arith.constant 2 : i32
    %89 = arith.index_cast %c2_i32 : i32 to index
    %c0_44 = arith.constant 0 : index
    %c0_45 = arith.constant 0 : index
    %90 = vector.load %arg0[%89, %c0_44, %c0_45] : memref<8x2x12xf32, #tpu.memory_space<vmem>>, vector<1x2x12xf32>
    %91 = vector.shape_cast %90 : vector<1x2x12xf32> to vector<2x12xf32>
    %c0_46 = arith.constant 0 : index
    %c0_47 = arith.constant 0 : index
    %92 = vector.load %arg6[%c0_46, %c0_47] : memref<2x20xf32, #tpu.memory_space<vmem>>, vector<2x20xf32>
    %c0_48 = arith.constant 0 : index
    %c0_49 = arith.constant 0 : index
    %93 = vector.load %arg7[%c0_48, %c0_49] : memref<2x20xf32, #tpu.memory_space<vmem>>, vector<2x20xf32>
    %cst_50 = arith.constant dense<0.000000e+00> : vector<2x80xf32>
    %94 = tpu.matmul %91, %0, %cst_50 {dimension_numbers = #tpu.dot_dimension_numbers<[1], [0], [0], [1], [0, 0, 1, 1], [], []>} : vector<2x12xf32>, vector<12x80xf32>, vector<2x80xf32> -> vector<2x80xf32>
    %cst_51 = arith.constant dense<0.000000e+00> : vector<2x80xf32>
    %95 = tpu.matmul %92, %1, %cst_51 {dimension_numbers = #tpu.dot_dimension_numbers<[1], [0], [0], [1], [0, 0, 1, 1], [], []>} : vector<2x20xf32>, vector<20x80xf32>, vector<2x80xf32> -> vector<2x80xf32>
    %96 = arith.addf %94, %95 : vector<2x80xf32>
    %97 = vector.broadcast %2 : vector<1x80xf32> to vector<2x80xf32>
    %98 = arith.addf %96, %97 : vector<2x80xf32>
    %99 = vector.extract_strided_slice %98 {offsets = [0, 0], sizes = [2, 20], strides = [1, 1]} : vector<2x80xf32> to vector<2x20xf32>
    %100 = arith.negf %99 : vector<2x20xf32>
    %101 = math.exp %100 : vector<2x20xf32>
    %cst_52 = arith.constant 1.000000e+00 : f32
    %102 = vector.broadcast %cst_52 : f32 to vector<2x20xf32>
    %103 = arith.addf %102, %101 : vector<2x20xf32>
    %104 = arith.divf %102, %103 : vector<2x20xf32>
    %105 = vector.extract_strided_slice %98 {offsets = [0, 20], sizes = [2, 20], strides = [1, 1]} : vector<2x80xf32> to vector<2x20xf32>
    %106 = arith.negf %105 : vector<2x20xf32>
    %107 = math.exp %106 : vector<2x20xf32>
    %cst_53 = arith.constant 1.000000e+00 : f32
    %108 = vector.broadcast %cst_53 : f32 to vector<2x20xf32>
    %109 = arith.addf %108, %107 : vector<2x20xf32>
    %110 = arith.divf %108, %109 : vector<2x20xf32>
    %111 = vector.extract_strided_slice %98 {offsets = [0, 40], sizes = [2, 20], strides = [1, 1]} : vector<2x80xf32> to vector<2x20xf32>
    %112 = math.tanh %111 : vector<2x20xf32>
    %113 = vector.extract_strided_slice %98 {offsets = [0, 60], sizes = [2, 20], strides = [1, 1]} : vector<2x80xf32> to vector<2x20xf32>
    %114 = arith.negf %113 : vector<2x20xf32>
    %115 = math.exp %114 : vector<2x20xf32>
    %cst_54 = arith.constant 1.000000e+00 : f32
    %116 = vector.broadcast %cst_54 : f32 to vector<2x20xf32>
    %117 = arith.addf %116, %115 : vector<2x20xf32>
    %118 = arith.divf %116, %117 : vector<2x20xf32>
    %119 = arith.mulf %110, %93 : vector<2x20xf32>
    %120 = arith.mulf %104, %112 : vector<2x20xf32>
    %121 = arith.addf %119, %120 : vector<2x20xf32>
    %122 = math.tanh %121 : vector<2x20xf32>
    %123 = arith.mulf %118, %122 : vector<2x20xf32>
    %c0_55 = arith.constant 0 : index
    %c0_56 = arith.constant 0 : index
    %124 = vector.load %arg6[%c0_55, %c0_56] : memref<2x20xf32, #tpu.memory_space<vmem>>, vector<2x20xf32>
    tpu.vector_store %arg6[%c0_55, %c0_56], %123 {strides = array<i32>} : memref<2x20xf32, #tpu.memory_space<vmem>>, vector<2x20xf32>,
    %c0_57 = arith.constant 0 : index
    %c0_58 = arith.constant 0 : index
    %125 = vector.load %arg7[%c0_57, %c0_58] : memref<2x20xf32, #tpu.memory_space<vmem>>, vector<2x20xf32>
    tpu.vector_store %arg7[%c0_57, %c0_58], %121 {strides = array<i32>} : memref<2x20xf32, #tpu.memory_space<vmem>>, vector<2x20xf32>,
    %126 = arith.index_cast %c2_i32 : i32 to index
    %c0_59 = arith.constant 0 : index
    %c0_60 = arith.constant 0 : index
    %127 = vector.load %arg4[%126, %c0_59, %c0_60] : memref<8x2x20xf32, #tpu.memory_space<vmem>>, vector<1x2x20xf32>
    %128 = vector.shape_cast %127 : vector<1x2x20xf32> to vector<2x20xf32>
    %129 = vector.shape_cast %123 : vector<2x20xf32> to vector<1x2x20xf32>
    tpu.vector_store %arg4[%126, %c0_59, %c0_60], %129 {strides = array<i32>} : memref<8x2x20xf32, #tpu.memory_space<vmem>>, vector<1x2x20xf32>,
    %c3_i32 = arith.constant 3 : i32
    %130 = arith.index_cast %c3_i32 : i32 to index
    %c0_61 = arith.constant 0 : index
    %c0_62 = arith.constant 0 : index
    %131 = vector.load %arg0[%130, %c0_61, %c0_62] : memref<8x2x12xf32, #tpu.memory_space<vmem>>, vector<1x2x12xf32>
    %132 = vector.shape_cast %131 : vector<1x2x12xf32> to vector<2x12xf32>
    %c0_63 = arith.constant 0 : index
    %c0_64 = arith.constant 0 : index
    %133 = vector.load %arg6[%c0_63, %c0_64] : memref<2x20xf32, #tpu.memory_space<vmem>>, vector<2x20xf32>
    %c0_65 = arith.constant 0 : index
    %c0_66 = arith.constant 0 : index
    %134 = vector.load %arg7[%c0_65, %c0_66] : memref<2x20xf32, #tpu.memory_space<vmem>>, vector<2x20xf32>
    %cst_67 = arith.constant dense<0.000000e+00> : vector<2x80xf32>
    %135 = tpu.matmul %132, %0, %cst_67 {dimension_numbers = #tpu.dot_dimension_numbers<[1], [0], [0], [1], [0, 0, 1, 1], [], []>} : vector<2x12xf32>, vector<12x80xf32>, vector<2x80xf32> -> vector<2x80xf32>
    %cst_68 = arith.constant dense<0.000000e+00> : vector<2x80xf32>
    %136 = tpu.matmul %133, %1, %cst_68 {dimension_numbers = #tpu.dot_dimension_numbers<[1], [0], [0], [1], [0, 0, 1, 1], [], []>} : vector<2x20xf32>, vector<20x80xf32>, vector<2x80xf32> -> vector<2x80xf32>
    %137 = arith.addf %135, %136 : vector<2x80xf32>
    %138 = vector.broadcast %2 : vector<1x80xf32> to vector<2x80xf32>
    %139 = arith.addf %137, %138 : vector<2x80xf32>
    %140 = vector.extract_strided_slice %139 {offsets = [0, 0], sizes = [2, 20], strides = [1, 1]} : vector<2x80xf32> to vector<2x20xf32>
    %141 = arith.negf %140 : vector<2x20xf32>
    %142 = math.exp %141 : vector<2x20xf32>
    %cst_69 = arith.constant 1.000000e+00 : f32
    %143 = vector.broadcast %cst_69 : f32 to vector<2x20xf32>
    %144 = arith.addf %143, %142 : vector<2x20xf32>
    %145 = arith.divf %143, %144 : vector<2x20xf32>
    %146 = vector.extract_strided_slice %139 {offsets = [0, 20], sizes = [2, 20], strides = [1, 1]} : vector<2x80xf32> to vector<2x20xf32>
    %147 = arith.negf %146 : vector<2x20xf32>
    %148 = math.exp %147 : vector<2x20xf32>
    %cst_70 = arith.constant 1.000000e+00 : f32
    %149 = vector.broadcast %cst_70 : f32 to vector<2x20xf32>
    %150 = arith.addf %149, %148 : vector<2x20xf32>
    %151 = arith.divf %149, %150 : vector<2x20xf32>
    %152 = vector.extract_strided_slice %139 {offsets = [0, 40], sizes = [2, 20], strides = [1, 1]} : vector<2x80xf32> to vector<2x20xf32>
    %153 = math.tanh %152 : vector<2x20xf32>
    %154 = vector.extract_strided_slice %139 {offsets = [0, 60], sizes = [2, 20], strides = [1, 1]} : vector<2x80xf32> to vector<2x20xf32>
    %155 = arith.negf %154 : vector<2x20xf32>
    %156 = math.exp %155 : vector<2x20xf32>
    %cst_71 = arith.constant 1.000000e+00 : f32
    %157 = vector.broadcast %cst_71 : f32 to vector<2x20xf32>
    %158 = arith.addf %157, %156 : vector<2x20xf32>
    %159 = arith.divf %157, %158 : vector<2x20xf32>
    %160 = arith.mulf %151, %134 : vector<2x20xf32>
    %161 = arith.mulf %145, %153 : vector<2x20xf32>
    %162 = arith.addf %160, %161 : vector<2x20xf32>
    %163 = math.tanh %162 : vector<2x20xf32>
    %164 = arith.mulf %159, %163 : vector<2x20xf32>
    %c0_72 = arith.constant 0 : index
    %c0_73 = arith.constant 0 : index
    %165 = vector.load %arg6[%c0_72, %c0_73] : memref<2x20xf32, #tpu.memory_space<vmem>>, vector<2x20xf32>
    tpu.vector_store %arg6[%c0_72, %c0_73], %164 {strides = array<i32>} : memref<2x20xf32, #tpu.memory_space<vmem>>, vector<2x20xf32>,
    %c0_74 = arith.constant 0 : index
    %c0_75 = arith.constant 0 : index
    %166 = vector.load %arg7[%c0_74, %c0_75] : memref<2x20xf32, #tpu.memory_space<vmem>>, vector<2x20xf32>
    tpu.vector_store %arg7[%c0_74, %c0_75], %162 {strides = array<i32>} : memref<2x20xf32, #tpu.memory_space<vmem>>, vector<2x20xf32>,
    %167 = arith.index_cast %c3_i32 : i32 to index
    %c0_76 = arith.constant 0 : index
    %c0_77 = arith.constant 0 : index
    %168 = vector.load %arg4[%167, %c0_76, %c0_77] : memref<8x2x20xf32, #tpu.memory_space<vmem>>, vector<1x2x20xf32>
    %169 = vector.shape_cast %168 : vector<1x2x20xf32> to vector<2x20xf32>
    %170 = vector.shape_cast %164 : vector<2x20xf32> to vector<1x2x20xf32>
    tpu.vector_store %arg4[%167, %c0_76, %c0_77], %170 {strides = array<i32>} : memref<8x2x20xf32, #tpu.memory_space<vmem>>, vector<1x2x20xf32>,
    %c4_i32 = arith.constant 4 : i32
    %171 = arith.index_cast %c4_i32 : i32 to index
    %c0_78 = arith.constant 0 : index
    %c0_79 = arith.constant 0 : index
    %172 = vector.load %arg0[%171, %c0_78, %c0_79] : memref<8x2x12xf32, #tpu.memory_space<vmem>>, vector<1x2x12xf32>
    %173 = vector.shape_cast %172 : vector<1x2x12xf32> to vector<2x12xf32>
    %c0_80 = arith.constant 0 : index
    %c0_81 = arith.constant 0 : index
    %174 = vector.load %arg6[%c0_80, %c0_81] : memref<2x20xf32, #tpu.memory_space<vmem>>, vector<2x20xf32>
    %c0_82 = arith.constant 0 : index
    %c0_83 = arith.constant 0 : index
    %175 = vector.load %arg7[%c0_82, %c0_83] : memref<2x20xf32, #tpu.memory_space<vmem>>, vector<2x20xf32>
    %cst_84 = arith.constant dense<0.000000e+00> : vector<2x80xf32>
    %176 = tpu.matmul %173, %0, %cst_84 {dimension_numbers = #tpu.dot_dimension_numbers<[1], [0], [0], [1], [0, 0, 1, 1], [], []>} : vector<2x12xf32>, vector<12x80xf32>, vector<2x80xf32> -> vector<2x80xf32>
    %cst_85 = arith.constant dense<0.000000e+00> : vector<2x80xf32>
    %177 = tpu.matmul %174, %1, %cst_85 {dimension_numbers = #tpu.dot_dimension_numbers<[1], [0], [0], [1], [0, 0, 1, 1], [], []>} : vector<2x20xf32>, vector<20x80xf32>, vector<2x80xf32> -> vector<2x80xf32>
    %178 = arith.addf %176, %177 : vector<2x80xf32>
    %179 = vector.broadcast %2 : vector<1x80xf32> to vector<2x80xf32>
    %180 = arith.addf %178, %179 : vector<2x80xf32>
    %181 = vector.extract_strided_slice %180 {offsets = [0, 0], sizes = [2, 20], strides = [1, 1]} : vector<2x80xf32> to vector<2x20xf32>
    %182 = arith.negf %181 : vector<2x20xf32>
    %183 = math.exp %182 : vector<2x20xf32>
    %cst_86 = arith.constant 1.000000e+00 : f32
    %184 = vector.broadcast %cst_86 : f32 to vector<2x20xf32>
    %185 = arith.addf %184, %183 : vector<2x20xf32>
    %186 = arith.divf %184, %185 : vector<2x20xf32>
    %187 = vector.extract_strided_slice %180 {offsets = [0, 20], sizes = [2, 20], strides = [1, 1]} : vector<2x80xf32> to vector<2x20xf32>
    %188 = arith.negf %187 : vector<2x20xf32>
    %189 = math.exp %188 : vector<2x20xf32>
    %cst_87 = arith.constant 1.000000e+00 : f32
    %190 = vector.broadcast %cst_87 : f32 to vector<2x20xf32>
    %191 = arith.addf %190, %189 : vector<2x20xf32>
    %192 = arith.divf %190, %191 : vector<2x20xf32>
    %193 = vector.extract_strided_slice %180 {offsets = [0, 40], sizes = [2, 20], strides = [1, 1]} : vector<2x80xf32> to vector<2x20xf32>
    %194 = math.tanh %193 : vector<2x20xf32>
    %195 = vector.extract_strided_slice %180 {offsets = [0, 60], sizes = [2, 20], strides = [1, 1]} : vector<2x80xf32> to vector<2x20xf32>
    %196 = arith.negf %195 : vector<2x20xf32>
    %197 = math.exp %196 : vector<2x20xf32>
    %cst_88 = arith.constant 1.000000e+00 : f32
    %198 = vector.broadcast %cst_88 : f32 to vector<2x20xf32>
    %199 = arith.addf %198, %197 : vector<2x20xf32>
    %200 = arith.divf %198, %199 : vector<2x20xf32>
    %201 = arith.mulf %192, %175 : vector<2x20xf32>
    %202 = arith.mulf %186, %194 : vector<2x20xf32>
    %203 = arith.addf %201, %202 : vector<2x20xf32>
    %204 = math.tanh %203 : vector<2x20xf32>
    %205 = arith.mulf %200, %204 : vector<2x20xf32>
    %c0_89 = arith.constant 0 : index
    %c0_90 = arith.constant 0 : index
    %206 = vector.load %arg6[%c0_89, %c0_90] : memref<2x20xf32, #tpu.memory_space<vmem>>, vector<2x20xf32>
    tpu.vector_store %arg6[%c0_89, %c0_90], %205 {strides = array<i32>} : memref<2x20xf32, #tpu.memory_space<vmem>>, vector<2x20xf32>,
    %c0_91 = arith.constant 0 : index
    %c0_92 = arith.constant 0 : index
    %207 = vector.load %arg7[%c0_91, %c0_92] : memref<2x20xf32, #tpu.memory_space<vmem>>, vector<2x20xf32>
    tpu.vector_store %arg7[%c0_91, %c0_92], %203 {strides = array<i32>} : memref<2x20xf32, #tpu.memory_space<vmem>>, vector<2x20xf32>,
    %208 = arith.index_cast %c4_i32 : i32 to index
    %c0_93 = arith.constant 0 : index
    %c0_94 = arith.constant 0 : index
    %209 = vector.load %arg4[%208, %c0_93, %c0_94] : memref<8x2x20xf32, #tpu.memory_space<vmem>>, vector<1x2x20xf32>
    %210 = vector.shape_cast %209 : vector<1x2x20xf32> to vector<2x20xf32>
    %211 = vector.shape_cast %205 : vector<2x20xf32> to vector<1x2x20xf32>
    tpu.vector_store %arg4[%208, %c0_93, %c0_94], %211 {strides = array<i32>} : memref<8x2x20xf32, #tpu.memory_space<vmem>>, vector<1x2x20xf32>,
    %c5_i32 = arith.constant 5 : i32
    %212 = arith.index_cast %c5_i32 : i32 to index
    %c0_95 = arith.constant 0 : index
    %c0_96 = arith.constant 0 : index
    %213 = vector.load %arg0[%212, %c0_95, %c0_96] : memref<8x2x12xf32, #tpu.memory_space<vmem>>, vector<1x2x12xf32>
    %214 = vector.shape_cast %213 : vector<1x2x12xf32> to vector<2x12xf32>
    %c0_97 = arith.constant 0 : index
    %c0_98 = arith.constant 0 : index
    %215 = vector.load %arg6[%c0_97, %c0_98] : memref<2x20xf32, #tpu.memory_space<vmem>>, vector<2x20xf32>
    %c0_99 = arith.constant 0 : index
    %c0_100 = arith.constant 0 : index
    %216 = vector.load %arg7[%c0_99, %c0_100] : memref<2x20xf32, #tpu.memory_space<vmem>>, vector<2x20xf32>
    %cst_101 = arith.constant dense<0.000000e+00> : vector<2x80xf32>
    %217 = tpu.matmul %214, %0, %cst_101 {dimension_numbers = #tpu.dot_dimension_numbers<[1], [0], [0], [1], [0, 0, 1, 1], [], []>} : vector<2x12xf32>, vector<12x80xf32>, vector<2x80xf32> -> vector<2x80xf32>
    %cst_102 = arith.constant dense<0.000000e+00> : vector<2x80xf32>
    %218 = tpu.matmul %215, %1, %cst_102 {dimension_numbers = #tpu.dot_dimension_numbers<[1], [0], [0], [1], [0, 0, 1, 1], [], []>} : vector<2x20xf32>, vector<20x80xf32>, vector<2x80xf32> -> vector<2x80xf32>
    %219 = arith.addf %217, %218 : vector<2x80xf32>
    %220 = vector.broadcast %2 : vector<1x80xf32> to vector<2x80xf32>
    %221 = arith.addf %219, %220 : vector<2x80xf32>
    %222 = vector.extract_strided_slice %221 {offsets = [0, 0], sizes = [2, 20], strides = [1, 1]} : vector<2x80xf32> to vector<2x20xf32>
    %223 = arith.negf %222 : vector<2x20xf32>
    %224 = math.exp %223 : vector<2x20xf32>
    %cst_103 = arith.constant 1.000000e+00 : f32
    %225 = vector.broadcast %cst_103 : f32 to vector<2x20xf32>
    %226 = arith.addf %225, %224 : vector<2x20xf32>
    %227 = arith.divf %225, %226 : vector<2x20xf32>
    %228 = vector.extract_strided_slice %221 {offsets = [0, 20], sizes = [2, 20], strides = [1, 1]} : vector<2x80xf32> to vector<2x20xf32>
    %229 = arith.negf %228 : vector<2x20xf32>
    %230 = math.exp %229 : vector<2x20xf32>
    %cst_104 = arith.constant 1.000000e+00 : f32
    %231 = vector.broadcast %cst_104 : f32 to vector<2x20xf32>
    %232 = arith.addf %231, %230 : vector<2x20xf32>
    %233 = arith.divf %231, %232 : vector<2x20xf32>
    %234 = vector.extract_strided_slice %221 {offsets = [0, 40], sizes = [2, 20], strides = [1, 1]} : vector<2x80xf32> to vector<2x20xf32>
    %235 = math.tanh %234 : vector<2x20xf32>
    %236 = vector.extract_strided_slice %221 {offsets = [0, 60], sizes = [2, 20], strides = [1, 1]} : vector<2x80xf32> to vector<2x20xf32>
    %237 = arith.negf %236 : vector<2x20xf32>
    %238 = math.exp %237 : vector<2x20xf32>
    %cst_105 = arith.constant 1.000000e+00 : f32
    %239 = vector.broadcast %cst_105 : f32 to vector<2x20xf32>
    %240 = arith.addf %239, %238 : vector<2x20xf32>
    %241 = arith.divf %239, %240 : vector<2x20xf32>
    %242 = arith.mulf %233, %216 : vector<2x20xf32>
    %243 = arith.mulf %227, %235 : vector<2x20xf32>
    %244 = arith.addf %242, %243 : vector<2x20xf32>
    %245 = math.tanh %244 : vector<2x20xf32>
    %246 = arith.mulf %241, %245 : vector<2x20xf32>
    %c0_106 = arith.constant 0 : index
    %c0_107 = arith.constant 0 : index
    %247 = vector.load %arg6[%c0_106, %c0_107] : memref<2x20xf32, #tpu.memory_space<vmem>>, vector<2x20xf32>
    tpu.vector_store %arg6[%c0_106, %c0_107], %246 {strides = array<i32>} : memref<2x20xf32, #tpu.memory_space<vmem>>, vector<2x20xf32>,
    %c0_108 = arith.constant 0 : index
    %c0_109 = arith.constant 0 : index
    %248 = vector.load %arg7[%c0_108, %c0_109] : memref<2x20xf32, #tpu.memory_space<vmem>>, vector<2x20xf32>
    tpu.vector_store %arg7[%c0_108, %c0_109], %244 {strides = array<i32>} : memref<2x20xf32, #tpu.memory_space<vmem>>, vector<2x20xf32>,
    %249 = arith.index_cast %c5_i32 : i32 to index
    %c0_110 = arith.constant 0 : index
    %c0_111 = arith.constant 0 : index
    %250 = vector.load %arg4[%249, %c0_110, %c0_111] : memref<8x2x20xf32, #tpu.memory_space<vmem>>, vector<1x2x20xf32>
    %251 = vector.shape_cast %250 : vector<1x2x20xf32> to vector<2x20xf32>
    %252 = vector.shape_cast %246 : vector<2x20xf32> to vector<1x2x20xf32>
    tpu.vector_store %arg4[%249, %c0_110, %c0_111], %252 {strides = array<i32>} : memref<8x2x20xf32, #tpu.memory_space<vmem>>, vector<1x2x20xf32>,
    %c6_i32 = arith.constant 6 : i32
    %253 = arith.index_cast %c6_i32 : i32 to index
    %c0_112 = arith.constant 0 : index
    %c0_113 = arith.constant 0 : index
    %254 = vector.load %arg0[%253, %c0_112, %c0_113] : memref<8x2x12xf32, #tpu.memory_space<vmem>>, vector<1x2x12xf32>
    %255 = vector.shape_cast %254 : vector<1x2x12xf32> to vector<2x12xf32>
    %c0_114 = arith.constant 0 : index
    %c0_115 = arith.constant 0 : index
    %256 = vector.load %arg6[%c0_114, %c0_115] : memref<2x20xf32, #tpu.memory_space<vmem>>, vector<2x20xf32>
    %c0_116 = arith.constant 0 : index
    %c0_117 = arith.constant 0 : index
    %257 = vector.load %arg7[%c0_116, %c0_117] : memref<2x20xf32, #tpu.memory_space<vmem>>, vector<2x20xf32>
    %cst_118 = arith.constant dense<0.000000e+00> : vector<2x80xf32>
    %258 = tpu.matmul %255, %0, %cst_118 {dimension_numbers = #tpu.dot_dimension_numbers<[1], [0], [0], [1], [0, 0, 1, 1], [], []>} : vector<2x12xf32>, vector<12x80xf32>, vector<2x80xf32> -> vector<2x80xf32>
    %cst_119 = arith.constant dense<0.000000e+00> : vector<2x80xf32>
    %259 = tpu.matmul %256, %1, %cst_119 {dimension_numbers = #tpu.dot_dimension_numbers<[1], [0], [0], [1], [0, 0, 1, 1], [], []>} : vector<2x20xf32>, vector<20x80xf32>, vector<2x80xf32> -> vector<2x80xf32>
    %260 = arith.addf %258, %259 : vector<2x80xf32>
    %261 = vector.broadcast %2 : vector<1x80xf32> to vector<2x80xf32>
    %262 = arith.addf %260, %261 : vector<2x80xf32>
    %263 = vector.extract_strided_slice %262 {offsets = [0, 0], sizes = [2, 20], strides = [1, 1]} : vector<2x80xf32> to vector<2x20xf32>
    %264 = arith.negf %263 : vector<2x20xf32>
    %265 = math.exp %264 : vector<2x20xf32>
    %cst_120 = arith.constant 1.000000e+00 : f32
    %266 = vector.broadcast %cst_120 : f32 to vector<2x20xf32>
    %267 = arith.addf %266, %265 : vector<2x20xf32>
    %268 = arith.divf %266, %267 : vector<2x20xf32>
    %269 = vector.extract_strided_slice %262 {offsets = [0, 20], sizes = [2, 20], strides = [1, 1]} : vector<2x80xf32> to vector<2x20xf32>
    %270 = arith.negf %269 : vector<2x20xf32>
    %271 = math.exp %270 : vector<2x20xf32>
    %cst_121 = arith.constant 1.000000e+00 : f32
    %272 = vector.broadcast %cst_121 : f32 to vector<2x20xf32>
    %273 = arith.addf %272, %271 : vector<2x20xf32>
    %274 = arith.divf %272, %273 : vector<2x20xf32>
    %275 = vector.extract_strided_slice %262 {offsets = [0, 40], sizes = [2, 20], strides = [1, 1]} : vector<2x80xf32> to vector<2x20xf32>
    %276 = math.tanh %275 : vector<2x20xf32>
    %277 = vector.extract_strided_slice %262 {offsets = [0, 60], sizes = [2, 20], strides = [1, 1]} : vector<2x80xf32> to vector<2x20xf32>
    %278 = arith.negf %277 : vector<2x20xf32>
    %279 = math.exp %278 : vector<2x20xf32>
    %cst_122 = arith.constant 1.000000e+00 : f32
    %280 = vector.broadcast %cst_122 : f32 to vector<2x20xf32>
    %281 = arith.addf %280, %279 : vector<2x20xf32>
    %282 = arith.divf %280, %281 : vector<2x20xf32>
    %283 = arith.mulf %274, %257 : vector<2x20xf32>
    %284 = arith.mulf %268, %276 : vector<2x20xf32>
    %285 = arith.addf %283, %284 : vector<2x20xf32>
    %286 = math.tanh %285 : vector<2x20xf32>
    %287 = arith.mulf %282, %286 : vector<2x20xf32>
    %c0_123 = arith.constant 0 : index
    %c0_124 = arith.constant 0 : index
    %288 = vector.load %arg6[%c0_123, %c0_124] : memref<2x20xf32, #tpu.memory_space<vmem>>, vector<2x20xf32>
    tpu.vector_store %arg6[%c0_123, %c0_124], %287 {strides = array<i32>} : memref<2x20xf32, #tpu.memory_space<vmem>>, vector<2x20xf32>,
    %c0_125 = arith.constant 0 : index
    %c0_126 = arith.constant 0 : index
    %289 = vector.load %arg7[%c0_125, %c0_126] : memref<2x20xf32, #tpu.memory_space<vmem>>, vector<2x20xf32>
    tpu.vector_store %arg7[%c0_125, %c0_126], %285 {strides = array<i32>} : memref<2x20xf32, #tpu.memory_space<vmem>>, vector<2x20xf32>,
    %290 = arith.index_cast %c6_i32 : i32 to index
    %c0_127 = arith.constant 0 : index
    %c0_128 = arith.constant 0 : index
    %291 = vector.load %arg4[%290, %c0_127, %c0_128] : memref<8x2x20xf32, #tpu.memory_space<vmem>>, vector<1x2x20xf32>
    %292 = vector.shape_cast %291 : vector<1x2x20xf32> to vector<2x20xf32>
    %293 = vector.shape_cast %287 : vector<2x20xf32> to vector<1x2x20xf32>
    tpu.vector_store %arg4[%290, %c0_127, %c0_128], %293 {strides = array<i32>} : memref<8x2x20xf32, #tpu.memory_space<vmem>>, vector<1x2x20xf32>,
    %c7_i32 = arith.constant 7 : i32
    %294 = arith.index_cast %c7_i32 : i32 to index
    %c0_129 = arith.constant 0 : index
    %c0_130 = arith.constant 0 : index
    %295 = vector.load %arg0[%294, %c0_129, %c0_130] : memref<8x2x12xf32, #tpu.memory_space<vmem>>, vector<1x2x12xf32>
    %296 = vector.shape_cast %295 : vector<1x2x12xf32> to vector<2x12xf32>
    %c0_131 = arith.constant 0 : index
    %c0_132 = arith.constant 0 : index
    %297 = vector.load %arg6[%c0_131, %c0_132] : memref<2x20xf32, #tpu.memory_space<vmem>>, vector<2x20xf32>
    %c0_133 = arith.constant 0 : index
    %c0_134 = arith.constant 0 : index
    %298 = vector.load %arg7[%c0_133, %c0_134] : memref<2x20xf32, #tpu.memory_space<vmem>>, vector<2x20xf32>
    %cst_135 = arith.constant dense<0.000000e+00> : vector<2x80xf32>
    %299 = tpu.matmul %296, %0, %cst_135 {dimension_numbers = #tpu.dot_dimension_numbers<[1], [0], [0], [1], [0, 0, 1, 1], [], []>} : vector<2x12xf32>, vector<12x80xf32>, vector<2x80xf32> -> vector<2x80xf32>
    %cst_136 = arith.constant dense<0.000000e+00> : vector<2x80xf32>
    %300 = tpu.matmul %297, %1, %cst_136 {dimension_numbers = #tpu.dot_dimension_numbers<[1], [0], [0], [1], [0, 0, 1, 1], [], []>} : vector<2x20xf32>, vector<20x80xf32>, vector<2x80xf32> -> vector<2x80xf32>
    %301 = arith.addf %299, %300 : vector<2x80xf32>
    %302 = vector.broadcast %2 : vector<1x80xf32> to vector<2x80xf32>
    %303 = arith.addf %301, %302 : vector<2x80xf32>
    %304 = vector.extract_strided_slice %303 {offsets = [0, 0], sizes = [2, 20], strides = [1, 1]} : vector<2x80xf32> to vector<2x20xf32>
    %305 = arith.negf %304 : vector<2x20xf32>
    %306 = math.exp %305 : vector<2x20xf32>
    %cst_137 = arith.constant 1.000000e+00 : f32
    %307 = vector.broadcast %cst_137 : f32 to vector<2x20xf32>
    %308 = arith.addf %307, %306 : vector<2x20xf32>
    %309 = arith.divf %307, %308 : vector<2x20xf32>
    %310 = vector.extract_strided_slice %303 {offsets = [0, 20], sizes = [2, 20], strides = [1, 1]} : vector<2x80xf32> to vector<2x20xf32>
    %311 = arith.negf %310 : vector<2x20xf32>
    %312 = math.exp %311 : vector<2x20xf32>
    %cst_138 = arith.constant 1.000000e+00 : f32
    %313 = vector.broadcast %cst_138 : f32 to vector<2x20xf32>
    %314 = arith.addf %313, %312 : vector<2x20xf32>
    %315 = arith.divf %313, %314 : vector<2x20xf32>
    %316 = vector.extract_strided_slice %303 {offsets = [0, 40], sizes = [2, 20], strides = [1, 1]} : vector<2x80xf32> to vector<2x20xf32>
    %317 = math.tanh %316 : vector<2x20xf32>
    %318 = vector.extract_strided_slice %303 {offsets = [0, 60], sizes = [2, 20], strides = [1, 1]} : vector<2x80xf32> to vector<2x20xf32>
    %319 = arith.negf %318 : vector<2x20xf32>
    %320 = math.exp %319 : vector<2x20xf32>
    %cst_139 = arith.constant 1.000000e+00 : f32
    %321 = vector.broadcast %cst_139 : f32 to vector<2x20xf32>
    %322 = arith.addf %321, %320 : vector<2x20xf32>
    %323 = arith.divf %321, %322 : vector<2x20xf32>
    %324 = arith.mulf %315, %298 : vector<2x20xf32>
    %325 = arith.mulf %309, %317 : vector<2x20xf32>
    %326 = arith.addf %324, %325 : vector<2x20xf32>
    %327 = math.tanh %326 : vector<2x20xf32>
    %328 = arith.mulf %323, %327 : vector<2x20xf32>
    %c0_140 = arith.constant 0 : index
    %c0_141 = arith.constant 0 : index
    %329 = vector.load %arg6[%c0_140, %c0_141] : memref<2x20xf32, #tpu.memory_space<vmem>>, vector<2x20xf32>
    tpu.vector_store %arg6[%c0_140, %c0_141], %328 {strides = array<i32>} : memref<2x20xf32, #tpu.memory_space<vmem>>, vector<2x20xf32>,
    %c0_142 = arith.constant 0 : index
    %c0_143 = arith.constant 0 : index
    %330 = vector.load %arg7[%c0_142, %c0_143] : memref<2x20xf32, #tpu.memory_space<vmem>>, vector<2x20xf32>
    tpu.vector_store %arg7[%c0_142, %c0_143], %326 {strides = array<i32>} : memref<2x20xf32, #tpu.memory_space<vmem>>, vector<2x20xf32>,
    %331 = arith.index_cast %c7_i32 : i32 to index
    %c0_144 = arith.constant 0 : index
    %c0_145 = arith.constant 0 : index
    %332 = vector.load %arg4[%331, %c0_144, %c0_145] : memref<8x2x20xf32, #tpu.memory_space<vmem>>, vector<1x2x20xf32>
    %333 = vector.shape_cast %332 : vector<1x2x20xf32> to vector<2x20xf32>
    %334 = vector.shape_cast %328 : vector<2x20xf32> to vector<1x2x20xf32>
    tpu.vector_store %arg4[%331, %c0_144, %c0_145], %334 {strides = array<i32>} : memref<8x2x20xf32, #tpu.memory_space<vmem>>, vector<1x2x20xf32>,
    %c8_i32 = arith.constant 8 : i32
    %c0_146 = arith.constant 0 : index
    %c0_147 = arith.constant 0 : index
    %335 = vector.load %arg6[%c0_146, %c0_147] : memref<2x20xf32, #tpu.memory_space<vmem>>, vector<2x20xf32>
    %c0_148 = arith.constant 0 : index
    %c0_149 = arith.constant 0 : index
    %336 = vector.load %arg5[%c0_148, %c0_149] : memref<2x20xf32, #tpu.memory_space<vmem>>, vector<2x20xf32>
    tpu.vector_store %arg5[%c0_148, %c0_149], %335 {strides = array<i32>} : memref<2x20xf32, #tpu.memory_space<vmem>>, vector<2x20xf32>,
    return
  }
}

module attributes {stable_mosaic.version = 11 : i64} {
  func.func @_scaled_linear_kernel(%arg0: memref<32x12xf32, #tpu.memory_space<vmem>>, %arg1: memref<32x12xf32, #tpu.memory_space<vmem>>, %arg2: memref<12x32xf32, #tpu.memory_space<vmem>>, %arg3: memref<32x32xf32, #tpu.memory_space<vmem>>, %arg4: memref<32x32xf32, #tpu.memory_space<vmem>>) attributes {dimension_semantics = [], scalar_prefetch = 0 : i64, scratch_operands = 0 : i64, tpu.core_type = #tpu.core_type<tc>} {
    %c0 = arith.constant 0 : index
    %c0_0 = arith.constant 0 : index
    %0 = vector.load %arg0[%c0, %c0_0] : memref<32x12xf32, #tpu.memory_space<vmem>>, vector<32x12xf32>
    %c0_1 = arith.constant 0 : index
    %c0_2 = arith.constant 0 : index
    %1 = vector.load %arg1[%c0_1, %c0_2] : memref<32x12xf32, #tpu.memory_space<vmem>>, vector<32x12xf32>
    %2 = arith.mulf %0, %1 : vector<32x12xf32>
    %c0_3 = arith.constant 0 : index
    %c0_4 = arith.constant 0 : index
    %3 = vector.load %arg2[%c0_3, %c0_4] : memref<12x32xf32, #tpu.memory_space<vmem>>, vector<12x32xf32>
    %cst = arith.constant dense<0.000000e+00> : vector<32x32xf32>
    %4 = tpu.matmul %2, %3, %cst {dimension_numbers = #tpu.dot_dimension_numbers<[1], [0], [0], [1], [0, 0, 1, 1], [], []>} : vector<32x12xf32>, vector<12x32xf32>, vector<32x32xf32> -> vector<32x32xf32>
    %c0_5 = arith.constant 0 : index
    %c0_6 = arith.constant 0 : index
    %5 = vector.load %arg3[%c0_5, %c0_6] : memref<32x32xf32, #tpu.memory_space<vmem>>, vector<32x32xf32>
    %6 = arith.addf %4, %5 : vector<32x32xf32>
    %c0_7 = arith.constant 0 : index
    %c0_8 = arith.constant 0 : index
    %7 = vector.load %arg4[%c0_7, %c0_8] : memref<32x32xf32, #tpu.memory_space<vmem>>, vector<32x32xf32>
    tpu.vector_store %arg4[%c0_7, %c0_8], %6 {strides = array<i32>} : memref<32x32xf32, #tpu.memory_space<vmem>>, vector<32x32xf32>,
    return
  }
}

module attributes {stable_mosaic.version = 11 : i64} {
  func.func @_coattn_fuse_kernel(%arg0: memref<2x18x32xf32, #tpu.memory_space<vmem>>, %arg1: memref<2x10x32xf32, #tpu.memory_space<vmem>>, %arg2: memref<2x1x18xf32, #tpu.memory_space<vmem>>, %arg3: memref<2x1x10xf32, #tpu.memory_space<vmem>>, %arg4: memref<2x32x32xf32, #tpu.memory_space<vmem>>, %arg5: memref<2x32x32xf32, #tpu.memory_space<vmem>>, %arg6: memref<1x1x32xf32, #tpu.memory_space<vmem>>, %arg7: memref<2x32x32xf32, #tpu.memory_space<vmem>>, %arg8: memref<2x32x32xf32, #tpu.memory_space<vmem>>, %arg9: memref<1x1x32xf32, #tpu.memory_space<vmem>>, %arg10: memref<2x16x32xf32, #tpu.memory_space<vmem>>, %arg11: memref<2x8x32xf32, #tpu.memory_space<vmem>>) attributes {dimension_semantics = [], scalar_prefetch = 0 : i64, scratch_operands = 0 : i64, tpu.core_type = #tpu.core_type<tc>} {
    %c0 = arith.constant 0 : index
    %c0_0 = arith.constant 0 : index
    %c0_1 = arith.constant 0 : index
    %0 = vector.load %arg0[%c0, %c0_0, %c0_1] : memref<2x18x32xf32, #tpu.memory_space<vmem>>, vector<2x18x32xf32>
    %c0_2 = arith.constant 0 : index
    %c0_3 = arith.constant 0 : index
    %c0_4 = arith.constant 0 : index
    %1 = vector.load %arg1[%c0_2, %c0_3, %c0_4] : memref<2x10x32xf32, #tpu.memory_space<vmem>>, vector<2x10x32xf32>
    %c0_5 = arith.constant 0 : index
    %c0_6 = arith.constant 0 : index
    %c0_7 = arith.constant 0 : index
    %2 = vector.load %arg2[%c0_5, %c0_6, %c0_7] : memref<2x1x18xf32, #tpu.memory_space<vmem>>, vector<2x1x18xf32>
    %c0_8 = arith.constant 0 : index
    %c0_9 = arith.constant 0 : index
    %c0_10 = arith.constant 0 : index
    %3 = vector.load %arg3[%c0_8, %c0_9, %c0_10] : memref<2x1x10xf32, #tpu.memory_space<vmem>>, vector<2x1x10xf32>
    "tpu.trace_start"() <{level = 10 : i32, message = "bnd,btd->bnt"}> : () -> ()
    %cst = arith.constant dense<0.000000e+00> : vector<2x18x10xf32>
    %4 = tpu.matmul %0, %1, %cst {dimension_numbers = #tpu.dot_dimension_numbers<[2], [2], [1], [1], [0, 0, 0, 1, 1, 1], [0], [0]>} : vector<2x18x32xf32>, vector<2x10x32xf32>, vector<2x18x10xf32> -> vector<2x18x10xf32>
    "tpu.trace_stop"() : () -> ()
    %cst_11 = arith.constant 0.176776692 : f32
    %5 = vector.broadcast %cst_11 : f32 to vector<2x18x10xf32>
    %6 = arith.mulf %4, %5 : vector<2x18x10xf32>
    %cst_12 = arith.constant 0.000000e+00 : f32
    %7 = vector.broadcast %cst_12 : f32 to vector<2x1x10xf32>
    %8 = arith.cmpf ogt, %3, %7 : vector<2x1x10xf32>
    %cst_13 = arith.constant -1.000000e+09 : f32
    %9 = vector.shape_cast %8 : vector<2x1x10xi1> to vector<2x1x10xi1>
    %10 = vector.broadcast %9 : vector<2x1x10xi1> to vector<2x18x10xi1>
    %11 = vector.broadcast %cst_13 : f32 to vector<2x18x10xf32>
    %12 = arith.select %10, %6, %11 : vector<2x18x10xi1>, vector<2x18x10xf32>
    %cst_14 = arith.constant dense<0xFF800000> : vector<2x18xf32>
    %13 = vector.multi_reduction <maximumf>, %12, %cst_14 [2] : vector<2x18x10xf32> to vector<2x18xf32>
    %14 = vector.shape_cast %13 : vector<2x18xf32> to vector<2x18x1xf32>
    %15 = vector.broadcast %14 : vector<2x18x1xf32> to vector<2x18x10xf32>
    %16 = arith.subf %12, %15 : vector<2x18x10xf32>
    %17 = math.exp %16 : vector<2x18x10xf32>
    %cst_15 = arith.constant dense<0.000000e+00> : vector<2x18xf32>
    %18 = vector.multi_reduction <add>, %17, %cst_15 [2] : vector<2x18x10xf32> to vector<2x18xf32>
    %19 = vector.shape_cast %18 : vector<2x18xf32> to vector<2x18x1xf32>
    %20 = tpu.reciprocal %19 {approx = true} : vector<2x18x1xf32> -> vector<2x18x1xf32>
    %21 = vector.broadcast %20 : vector<2x18x1xf32> to vector<2x18x10xf32>
    %22 = arith.mulf %17, %21 : vector<2x18x10xf32>
    "tpu.trace_start"() <{level = 10 : i32, message = "bnt,btd->bnd"}> : () -> ()
    %cst_16 = arith.constant dense<0.000000e+00> : vector<2x18x32xf32>
    %23 = tpu.matmul %22, %1, %cst_16 {dimension_numbers = #tpu.dot_dimension_numbers<[2], [1], [1], [2], [0, 0, 0, 1, 1, 2], [0], [0]>} : vector<2x18x10xf32>, vector<2x10x32xf32>, vector<2x18x32xf32> -> vector<2x18x32xf32>
    "tpu.trace_stop"() : () -> ()
    "tpu.trace_start"() <{level = 10 : i32, message = "btd,bnd->btn"}> : () -> ()
    %cst_17 = arith.constant dense<0.000000e+00> : vector<2x10x18xf32>
    %24 = tpu.matmul %1, %0, %cst_17 {dimension_numbers = #tpu.dot_dimension_numbers<[2], [2], [1], [1], [0, 0, 0, 1, 1, 1], [0], [0]>} : vector<2x10x32xf32>, vector<2x18x32xf32>, vector<2x10x18xf32> -> vector<2x10x18xf32>
    "tpu.trace_stop"() : () -> ()
    %cst_18 = arith.constant 0.176776692 : f32
    %25 = vector.broadcast %cst_18 : f32 to vector<2x10x18xf32>
    %26 = arith.mulf %24, %25 : vector<2x10x18xf32>
    %cst_19 = arith.constant 0.000000e+00 : f32
    %27 = vector.broadcast %cst_19 : f32 to vector<2x1x18xf32>
    %28 = arith.cmpf ogt, %2, %27 : vector<2x1x18xf32>
    %cst_20 = arith.constant -1.000000e+09 : f32
    %29 = vector.shape_cast %28 : vector<2x1x18xi1> to vector<2x1x18xi1>
    %30 = vector.broadcast %29 : vector<2x1x18xi1> to vector<2x10x18xi1>
    %31 = vector.broadcast %cst_20 : f32 to vector<2x10x18xf32>
    %32 = arith.select %30, %26, %31 : vector<2x10x18xi1>, vector<2x10x18xf32>
    %cst_21 = arith.constant dense<0xFF800000> : vector<2x10xf32>
    %33 = vector.multi_reduction <maximumf>, %32, %cst_21 [2] : vector<2x10x18xf32> to vector<2x10xf32>
    %34 = vector.shape_cast %33 : vector<2x10xf32> to vector<2x10x1xf32>
    %35 = vector.broadcast %34 : vector<2x10x1xf32> to vector<2x10x18xf32>
    %36 = arith.subf %32, %35 : vector<2x10x18xf32>
    %37 = math.exp %36 : vector<2x10x18xf32>
    %cst_22 = arith.constant dense<0.000000e+00> : vector<2x10xf32>
    %38 = vector.multi_reduction <add>, %37, %cst_22 [2] : vector<2x10x18xf32> to vector<2x10xf32>
    %39 = vector.shape_cast %38 : vector<2x10xf32> to vector<2x10x1xf32>
    %40 = tpu.reciprocal %39 {approx = true} : vector<2x10x1xf32> -> vector<2x10x1xf32>
    %41 = vector.broadcast %40 : vector<2x10x1xf32> to vector<2x10x18xf32>
    %42 = arith.mulf %37, %41 : vector<2x10x18xf32>
    "tpu.trace_start"() <{level = 10 : i32, message = "btn,bnd->btd"}> : () -> ()
    %cst_23 = arith.constant dense<0.000000e+00> : vector<2x10x32xf32>
    %43 = tpu.matmul %42, %0, %cst_23 {dimension_numbers = #tpu.dot_dimension_numbers<[2], [1], [1], [2], [0, 0, 0, 1, 1, 2], [0], [0]>} : vector<2x10x18xf32>, vector<2x18x32xf32>, vector<2x10x32xf32> -> vector<2x10x32xf32>
    "tpu.trace_stop"() : () -> ()
    %44 = vector.extract_strided_slice %0 {offsets = [0, 0, 0], sizes = [2, 16, 32], strides = [1, 1, 1]} : vector<2x18x32xf32> to vector<2x16x32xf32>
    %45 = vector.extract_strided_slice %23 {offsets = [0, 0, 0], sizes = [2, 16, 32], strides = [1, 1, 1]} : vector<2x18x32xf32> to vector<2x16x32xf32>
    %c0_24 = arith.constant 0 : index
    %c0_25 = arith.constant 0 : index
    %c0_26 = arith.constant 0 : index
    %46 = vector.load %arg4[%c0_24, %c0_25, %c0_26] : memref<2x32x32xf32, #tpu.memory_space<vmem>>, vector<2x32x32xf32>
    "tpu.trace_start"() <{level = 10 : i32, message = "bnd,bde->bne"}> : () -> ()
    %cst_27 = arith.constant dense<0.000000e+00> : vector<2x16x32xf32>
    %47 = tpu.matmul %44, %46, %cst_27 {dimension_numbers = #tpu.dot_dimension_numbers<[2], [1], [1], [2], [0, 0, 0, 1, 1, 2], [0], [0]>} : vector<2x16x32xf32>, vector<2x32x32xf32>, vector<2x16x32xf32> -> vector<2x16x32xf32>
    "tpu.trace_stop"() : () -> ()
    %c0_28 = arith.constant 0 : index
    %c0_29 = arith.constant 0 : index
    %c0_30 = arith.constant 0 : index
    %48 = vector.load %arg5[%c0_28, %c0_29, %c0_30] : memref<2x32x32xf32, #tpu.memory_space<vmem>>, vector<2x32x32xf32>
    "tpu.trace_start"() <{level = 10 : i32, message = "bnd,bde->bne"}> : () -> ()
    %cst_31 = arith.constant dense<0.000000e+00> : vector<2x16x32xf32>
    %49 = tpu.matmul %45, %48, %cst_31 {dimension_numbers = #tpu.dot_dimension_numbers<[2], [1], [1], [2], [0, 0, 0, 1, 1, 2], [0], [0]>} : vector<2x16x32xf32>, vector<2x32x32xf32>, vector<2x16x32xf32> -> vector<2x16x32xf32>
    "tpu.trace_stop"() : () -> ()
    %50 = arith.addf %47, %49 : vector<2x16x32xf32>
    %c0_32 = arith.constant 0 : index
    %c0_33 = arith.constant 0 : index
    %c0_34 = arith.constant 0 : index
    %51 = vector.load %arg6[%c0_32, %c0_33, %c0_34] : memref<1x1x32xf32, #tpu.memory_space<vmem>>, vector<1x1x32xf32>
    %52 = vector.broadcast %51 : vector<1x1x32xf32> to vector<2x16x32xf32>
    %53 = arith.addf %50, %52 : vector<2x16x32xf32>
    %cst_35 = arith.constant 0.000000e+00 : f32
    %54 = vector.broadcast %cst_35 : f32 to vector<2x16x32xf32>
    %55 = arith.maximumf %53, %54 : vector<2x16x32xf32>
    %56 = arith.addf %44, %55 : vector<2x16x32xf32>
    %c0_36 = arith.constant 0 : index
    %c0_37 = arith.constant 0 : index
    %c0_38 = arith.constant 0 : index
    %57 = vector.load %arg10[%c0_36, %c0_37, %c0_38] : memref<2x16x32xf32, #tpu.memory_space<vmem>>, vector<2x16x32xf32>
    tpu.vector_store %arg10[%c0_36, %c0_37, %c0_38], %56 {strides = array<i32>} : memref<2x16x32xf32, #tpu.memory_space<vmem>>, vector<2x16x32xf32>,
    %58 = vector.extract_strided_slice %1 {offsets = [0, 0, 0], sizes = [2, 8, 32], strides = [1, 1, 1]} : vector<2x10x32xf32> to vector<2x8x32xf32>
    %59 = vector.extract_strided_slice %43 {offsets = [0, 0, 0], sizes = [2, 8, 32], strides = [1, 1, 1]} : vector<2x10x32xf32> to vector<2x8x32xf32>
    %c0_39 = arith.constant 0 : index
    %c0_40 = arith.constant 0 : index
    %c0_41 = arith.constant 0 : index
    %60 = vector.load %arg7[%c0_39, %c0_40, %c0_41] : memref<2x32x32xf32, #tpu.memory_space<vmem>>, vector<2x32x32xf32>
    "tpu.trace_start"() <{level = 10 : i32, message = "btd,bde->bte"}> : () -> ()
    %cst_42 = arith.constant dense<0.000000e+00> : vector<2x8x32xf32>
    %61 = tpu.matmul %58, %60, %cst_42 {dimension_numbers = #tpu.dot_dimension_numbers<[2], [1], [1], [2], [0, 0, 0, 1, 1, 2], [0], [0]>} : vector<2x8x32xf32>, vector<2x32x32xf32>, vector<2x8x32xf32> -> vector<2x8x32xf32>
    "tpu.trace_stop"() : () -> ()
    %c0_43 = arith.constant 0 : index
    %c0_44 = arith.constant 0 : index
    %c0_45 = arith.constant 0 : index
    %62 = vector.load %arg8[%c0_43, %c0_44, %c0_45] : memref<2x32x32xf32, #tpu.memory_space<vmem>>, vector<2x32x32xf32>
    "tpu.trace_start"() <{level = 10 : i32, message = "btd,bde->bte"}> : () -> ()
    %cst_46 = arith.constant dense<0.000000e+00> : vector<2x8x32xf32>
    %63 = tpu.matmul %59, %62, %cst_46 {dimension_numbers = #tpu.dot_dimension_numbers<[2], [1], [1], [2], [0, 0, 0, 1, 1, 2], [0], [0]>} : vector<2x8x32xf32>, vector<2x32x32xf32>, vector<2x8x32xf32> -> vector<2x8x32xf32>
    "tpu.trace_stop"() : () -> ()
    %64 = arith.addf %61, %63 : vector<2x8x32xf32>
    %c0_47 = arith.constant 0 : index
    %c0_48 = arith.constant 0 : index
    %c0_49 = arith.constant 0 : index
    %65 = vector.load %arg9[%c0_47, %c0_48, %c0_49] : memref<1x1x32xf32, #tpu.memory_space<vmem>>, vector<1x1x32xf32>
    %66 = vector.broadcast %65 : vector<1x1x32xf32> to vector<2x8x32xf32>
    %67 = arith.addf %64, %66 : vector<2x8x32xf32>
    %cst_50 = arith.constant 0.000000e+00 : f32
    %68 = vector.broadcast %cst_50 : f32 to vector<2x8x32xf32>
    %69 = arith.maximumf %67, %68 : vector<2x8x32xf32>
    %70 = arith.addf %58, %69 : vector<2x8x32xf32>
    %c0_51 = arith.constant 0 : index
    %c0_52 = arith.constant 0 : index
    %c0_53 = arith.constant 0 : index
    %71 = vector.load %arg11[%c0_51, %c0_52, %c0_53] : memref<2x8x32xf32, #tpu.memory_space<vmem>>, vector<2x8x32xf32>
    tpu.vector_store %arg11[%c0_51, %c0_52, %c0_53], %70 {strides = array<i32>} : memref<2x8x32xf32, #tpu.memory_space<vmem>>, vector<2x8x32xf32>,
    return
  }
}

module attributes {stable_mosaic.version = 11 : i64} {
  func.func @_predict_kernel(%arg0: memref<2x16x32xf32, #tpu.memory_space<vmem>>, %arg1: memref<2x8x32xf32, #tpu.memory_space<vmem>>, %arg2: memref<2x1x16xf32, #tpu.memory_space<vmem>>, %arg3: memref<2x1x8xf32, #tpu.memory_space<vmem>>, %arg4: memref<2x1x32xf32, #tpu.memory_space<vmem>>, %arg5: memref<2x1x32xf32, #tpu.memory_space<vmem>>, %arg6: memref<2x32x10xf32, #tpu.memory_space<vmem>>, %arg7: memref<1x1x10xf32, #tpu.memory_space<vmem>>, %arg8: memref<2x1x10xf32, #tpu.memory_space<vmem>>) attributes {dimension_semantics = [], scalar_prefetch = 0 : i64, scratch_operands = 0 : i64, tpu.core_type = #tpu.core_type<tc>} {
    %c0 = arith.constant 0 : index
    %c0_0 = arith.constant 0 : index
    %c0_1 = arith.constant 0 : index
    %0 = vector.load %arg0[%c0, %c0_0, %c0_1] : memref<2x16x32xf32, #tpu.memory_space<vmem>>, vector<2x16x32xf32>
    %c0_2 = arith.constant 0 : index
    %c0_3 = arith.constant 0 : index
    %c0_4 = arith.constant 0 : index
    %1 = vector.load %arg1[%c0_2, %c0_3, %c0_4] : memref<2x8x32xf32, #tpu.memory_space<vmem>>, vector<2x8x32xf32>
    %c0_5 = arith.constant 0 : index
    %c0_6 = arith.constant 0 : index
    %c0_7 = arith.constant 0 : index
    %2 = vector.load %arg2[%c0_5, %c0_6, %c0_7] : memref<2x1x16xf32, #tpu.memory_space<vmem>>, vector<2x1x16xf32>
    %c0_8 = arith.constant 0 : index
    %c0_9 = arith.constant 0 : index
    %c0_10 = arith.constant 0 : index
    %3 = vector.load %arg3[%c0_8, %c0_9, %c0_10] : memref<2x1x8xf32, #tpu.memory_space<vmem>>, vector<2x1x8xf32>
    %c0_11 = arith.constant 0 : index
    %c0_12 = arith.constant 0 : index
    %c0_13 = arith.constant 0 : index
    %4 = vector.load %arg4[%c0_11, %c0_12, %c0_13] : memref<2x1x32xf32, #tpu.memory_space<vmem>>, vector<2x1x32xf32>
    "tpu.trace_start"() <{level = 10 : i32, message = "bqd,bnd->bqn"}> : () -> ()
    %cst = arith.constant dense<0.000000e+00> : vector<2x1x16xf32>
    %5 = tpu.matmul %4, %0, %cst {dimension_numbers = #tpu.dot_dimension_numbers<[2], [2], [1], [1], [0, 0, 0, 1, 1, 1], [0], [0]>} : vector<2x1x32xf32>, vector<2x16x32xf32>, vector<2x1x16xf32> -> vector<2x1x16xf32>
    %cst_14 = arith.constant 0.000000e+00 : f32
    "tpu.trace_stop"() : () -> ()
    %6 = vector.broadcast %cst_14 : f32 to vector<2x1x16xf32>
    %7 = arith.cmpf ogt, %2, %6 : vector<2x1x16xf32>
    %cst_15 = arith.constant -1.000000e+09 : f32
    %8 = vector.broadcast %cst_15 : f32 to vector<2x1x16xf32>
    %9 = arith.select %7, %5, %8 : vector<2x1x16xi1>, vector<2x1x16xf32>
    %cst_16 = arith.constant dense<0xFF800000> : vector<2x1xf32>
    %10 = vector.multi_reduction <maximumf>, %9, %cst_16 [2] : vector<2x1x16xf32> to vector<2x1xf32>
    %11 = vector.shape_cast %10 : vector<2x1xf32> to vector<2x1x1xf32>
    %12 = vector.broadcast %11 : vector<2x1x1xf32> to vector<2x1x16xf32>
    %13 = arith.subf %9, %12 : vector<2x1x16xf32>
    %14 = math.exp %13 : vector<2x1x16xf32>
    %cst_17 = arith.constant dense<0.000000e+00> : vector<2x1xf32>
    %15 = vector.multi_reduction <add>, %14, %cst_17 [2] : vector<2x1x16xf32> to vector<2x1xf32>
    %16 = vector.shape_cast %15 : vector<2x1xf32> to vector<2x1x1xf32>
    %17 = tpu.reciprocal %16 {approx = true} : vector<2x1x1xf32> -> vector<2x1x1xf32>
    %18 = vector.broadcast %17 : vector<2x1x1xf32> to vector<2x1x16xf32>
    %19 = arith.mulf %14, %18 : vector<2x1x16xf32>
    "tpu.trace_start"() <{level = 10 : i32, message = "bqn,bnd->bqd"}> : () -> ()
    %cst_18 = arith.constant dense<0.000000e+00> : vector<2x1x32xf32>
    %20 = tpu.matmul %19, %0, %cst_18 {dimension_numbers = #tpu.dot_dimension_numbers<[2], [1], [1], [2], [0, 0, 0, 1, 1, 2], [0], [0]>} : vector<2x1x16xf32>, vector<2x16x32xf32>, vector<2x1x32xf32> -> vector<2x1x32xf32>
    "tpu.trace_stop"() : () -> ()
    %c0_19 = arith.constant 0 : index
    %c0_20 = arith.constant 0 : index
    %c0_21 = arith.constant 0 : index
    %21 = vector.load %arg5[%c0_19, %c0_20, %c0_21] : memref<2x1x32xf32, #tpu.memory_space<vmem>>, vector<2x1x32xf32>
    "tpu.trace_start"() <{level = 10 : i32, message = "bqd,btd->bqt"}> : () -> ()
    %cst_22 = arith.constant dense<0.000000e+00> : vector<2x1x8xf32>
    %22 = tpu.matmul %21, %1, %cst_22 {dimension_numbers = #tpu.dot_dimension_numbers<[2], [2], [1], [1], [0, 0, 0, 1, 1, 1], [0], [0]>} : vector<2x1x32xf32>, vector<2x8x32xf32>, vector<2x1x8xf32> -> vector<2x1x8xf32>
    %cst_23 = arith.constant 0.000000e+00 : f32
    "tpu.trace_stop"() : () -> ()
    %23 = vector.broadcast %cst_23 : f32 to vector<2x1x8xf32>
    %24 = arith.cmpf ogt, %3, %23 : vector<2x1x8xf32>
    %cst_24 = arith.constant -1.000000e+09 : f32
    %25 = vector.broadcast %cst_24 : f32 to vector<2x1x8xf32>
    %26 = arith.select %24, %22, %25 : vector<2x1x8xi1>, vector<2x1x8xf32>
    %cst_25 = arith.constant dense<0xFF800000> : vector<2x1xf32>
    %27 = vector.multi_reduction <maximumf>, %26, %cst_25 [2] : vector<2x1x8xf32> to vector<2x1xf32>
    %28 = vector.shape_cast %27 : vector<2x1xf32> to vector<2x1x1xf32>
    %29 = vector.broadcast %28 : vector<2x1x1xf32> to vector<2x1x8xf32>
    %30 = arith.subf %26, %29 : vector<2x1x8xf32>
    %31 = math.exp %30 : vector<2x1x8xf32>
    %cst_26 = arith.constant dense<0.000000e+00> : vector<2x1xf32>
    %32 = vector.multi_reduction <add>, %31, %cst_26 [2] : vector<2x1x8xf32> to vector<2x1xf32>
    %33 = vector.shape_cast %32 : vector<2x1xf32> to vector<2x1x1xf32>
    %34 = tpu.reciprocal %33 {approx = true} : vector<2x1x1xf32> -> vector<2x1x1xf32>
    %35 = vector.broadcast %34 : vector<2x1x1xf32> to vector<2x1x8xf32>
    %36 = arith.mulf %31, %35 : vector<2x1x8xf32>
    "tpu.trace_start"() <{level = 10 : i32, message = "bqt,btd->bqd"}> : () -> ()
    %cst_27 = arith.constant dense<0.000000e+00> : vector<2x1x32xf32>
    %37 = tpu.matmul %36, %1, %cst_27 {dimension_numbers = #tpu.dot_dimension_numbers<[2], [1], [1], [2], [0, 0, 0, 1, 1, 2], [0], [0]>} : vector<2x1x8xf32>, vector<2x8x32xf32>, vector<2x1x32xf32> -> vector<2x1x32xf32>
    "tpu.trace_stop"() : () -> ()
    %38 = arith.mulf %20, %37 : vector<2x1x32xf32>
    %c0_28 = arith.constant 0 : index
    %c0_29 = arith.constant 0 : index
    %c0_30 = arith.constant 0 : index
    %39 = vector.load %arg6[%c0_28, %c0_29, %c0_30] : memref<2x32x10xf32, #tpu.memory_space<vmem>>, vector<2x32x10xf32>
    "tpu.trace_start"() <{level = 10 : i32, message = "bqd,bda->bqa"}> : () -> ()
    %cst_31 = arith.constant dense<0.000000e+00> : vector<2x1x10xf32>
    %40 = tpu.matmul %38, %39, %cst_31 {dimension_numbers = #tpu.dot_dimension_numbers<[2], [1], [1], [2], [0, 0, 0, 1, 1, 2], [0], [0]>} : vector<2x1x32xf32>, vector<2x32x10xf32>, vector<2x1x10xf32> -> vector<2x1x10xf32>
    "tpu.trace_stop"() : () -> ()
    %c0_32 = arith.constant 0 : index
    %c0_33 = arith.constant 0 : index
    %c0_34 = arith.constant 0 : index
    %41 = vector.load %arg7[%c0_32, %c0_33, %c0_34] : memref<1x1x10xf32, #tpu.memory_space<vmem>>, vector<1x1x10xf32>
    %42 = vector.broadcast %41 : vector<1x1x10xf32> to vector<2x1x10xf32>
    %43 = arith.addf %40, %42 : vector<2x1x10xf32>
    %c0_35 = arith.constant 0 : index
    %c0_36 = arith.constant 0 : index
    %c0_37 = arith.constant 0 : index
    %44 = vector.load %arg8[%c0_35, %c0_36, %c0_37] : memref<2x1x10xf32, #tpu.memory_space<vmem>>, vector<2x1x10xf32>
    tpu.vector_store %arg8[%c0_35, %c0_36, %c0_37], %43 {strides = array<i32>} : memref<2x1x10xf32, #tpu.memory_space<vmem>>, vector<2x1x10xf32>,
    return
  }
}

</mosaic_0001>

<llo_original>
// kernel: dcn_forward.5
$region0: #{dcn_forward.5}
  #allocation0 [shape = 'u32[]', space=smem, size = 0x4, offset = 0x4, fixed_abs, tag = 'smem constant byte address 0x4 - core index']
  #allocation1 [shape = 'u32[144,128]{1,0:T(1,128)}', space=vmem, size = 0x12000, scoped, tag = 'internal scratch']
  %s0 = inlined_call_operand.vmem [shape: f32[32,12], index: 0, kind: input, shape index: {}]
  %s1 = inlined_call_operand.vmem [shape: f32[32,12], index: 1, kind: input, shape index: {}]
  %s2 = inlined_call_operand.vmem [shape: f32[12,32], index: 2, kind: input, shape index: {}]
  %s3 = inlined_call_operand.vmem [shape: f32[32,32], index: 3, kind: input, shape index: {}]
  %s4 = inlined_call_operand.vmem [shape: f32[32,32], index: 4, kind: output, shape index: {}]
  %s5 = sld [smem:[#allocation0]]
  $region26: #{dcn_forward.5} parent=0
    _
  %s7 = ssub.s32 1, %s5
  %s8 = scalar_select 0, %s7, %s5
  // Predicated region
  $region2: #{dcn_forward.5} parent=0 // pred_check
    _
  $region3: #{dcn_forward.5} parent=0 // pred_check_branch
    %10 = sbr.rel (0) target = $region5
  $region4: #{dcn_forward.5} parent=0 // pred_region
    _
  $region5: #{dcn_forward.5} parent=0 // pred_fallthru
    _
  // Predicated region
  $region6: #{dcn_forward.5} parent=0 // pred_check
    _
  $region7: #{dcn_forward.5} parent=0 // pred_check_branch
    %12 = sbr.rel (0) target = $region9
  $region8: #{dcn_forward.5} parent=0 // pred_region
    _
  $region9: #{dcn_forward.5} parent=0 // pred_fallthru
    _
  // Predicated region
  $region10: #{dcn_forward.5} parent=0 // pred_check
    _
  $region11: #{dcn_forward.5} parent=0 // pred_check_branch
    %14 = sbr.rel (0) target = $region13
  $region12: #{dcn_forward.5} parent=0 // pred_region
    _
  $region13: #{dcn_forward.5} parent=0 // pred_fallthru
    _
  // Predicated region
  $region14: #{dcn_forward.5} parent=0 // pred_check
    _
  $region15: #{dcn_forward.5} parent=0 // pred_check_branch
    %16 = sbr.rel (0) target = $region17
  $region16: #{dcn_forward.5} parent=0 // pred_region
    _
  $region17: #{dcn_forward.5} parent=0 // pred_fallthru
    _
  %v17 = vld [vmem:[%s0] sm:$0xff]
  %v18 = vld [vmem:[%s0 + $0x8] sm:$0xff]
  %v19 = vld [vmem:[%s0 + $0x10] sm:$0xff]
  %v20 = vld [vmem:[%s0 + $0x18] sm:$0xff]
  %v21 = vld [vmem:[%s1] sm:$0xff]
  %v22 = vld [vmem:[%s1 + $0x8] sm:$0xff]
  %v23 = vld [vmem:[%s1 + $0x10] sm:$0xff]
  %v24 = vld [vmem:[%s1 + $0x18] sm:$0xff]
  %v25 = vmul.f32 %v17, %v21
  %v26 = vmul.f32 %v18, %v22
  %v27 = vmul.f32 %v19, %v23
  %v28 = vmul.f32 %v20, %v24
  %v29 = vld [vmem:[%s2] sm:$0xff]
  %v30 = vld [vmem:[%s2 + $0x8] sm:$0xf]
  %v31 = vld [vmem:[%s3] sm:$0xff]
  %v32 = vld [vmem:[%s3 + $0x8] sm:$0xff]
  %v33 = vld [vmem:[%s3 + $0x10] sm:$0xff]
  %v34 = vld [vmem:[%s3 + $0x18] sm:$0xff]
  %vm35 = vcmask 97280
  %v37 = vsel %vm35, %v25, 0
  %v40 = vsel %vm35, %v26, 0
  %v43 = vsel %vm35, %v27, 0
  %v46 = vsel %vm35, %v28, 0
  %vm48 = vcmask 1043456
  %v50 = vsel %vm48, %v30, 0
  %52 = vmatprep.subr.mxu0 0.0
  %53 = vmatpush1.msra.mxu0 0.0
  %54 = vmatprep.subr.mxu0 0.0
  %55 = vmatpush1.msra.mxu0 0.0
  %56 = vmatprep.subr.mxu0 0.0
  %57 = vmatpush1.msra.mxu0 0.0
  %58 = vmatprep.subr.mxu0 0.0
  %59 = vmatpush1.msra.mxu0 0.0
  %60 = vmatprep.subr.mxu0 0.0
  %61 = vmatpush1.msra.mxu0 0.0
  %62 = vmatprep.subr.mxu0 0.0
  %63 = vmatpush1.msra.mxu0 0.0
  %64 = vmatprep.subr.mxu0 0.0
  %65 = vmatpush1.msra.mxu0 0.0
  %66 = vmatprep.subr.mxu0 0.0
  %67 = vmatpush1.msra.mxu0 0.0
  %68 = vmatprep.subr.mxu0 0.0
  %69 = vmatpush1.msra.mxu0 0.0
  %70 = vmatprep.subr.mxu0 0.0
  %71 = vmatpush1.msra.mxu0 0.0
  %72 = vmatprep.subr.mxu0 0.0
  %73 = vmatpush1.msra.mxu0 0.0
  %74 = vmatprep.subr.mxu0 0.0
  %75 = vmatpush1.msra.mxu0 0.0
  %76 = vmatprep.subr.mxu0 0.0
  %77 = vmatpush1.msra.mxu0 0.0
  %78 = vmatprep.subr.mxu0 0.0
  %79 = vmatpush1.msra.mxu0 0.0
  %80 = vmatprep.subr.mxu0 0.0
  %81 = vmatpush1.msra.mxu0 %v50
  %82 = vmatprep.subr.mxu0 0.0
  %83 = vmatpush1.msra.mxu0 %v29
  %84 = vmatprep.subr.mxu0 0.0
  %85 = vmatpush2.msra.mxu0 0.0
  %86 = vmatprep.subr.mxu0 0.0
  %87 = vmatpush2.msra.mxu0 0.0
  %88 = vmatprep.subr.mxu0 0.0
  %89 = vmatpush2.msra.mxu0 0.0
  %90 = vmatprep.subr.mxu0 0.0
  %91 = vmatpush2.msra.mxu0 0.0
  %92 = vmatprep.subr.mxu0 0.0
  %93 = vmatpush2.msra.mxu0 0.0
  %94 = vmatprep.subr.mxu0 0.0
  %95 = vmatpush2.msra.mxu0 0.0
  %96 = vmatprep.subr.mxu0 0.0
  %97 = vmatpush2.msra.mxu0 0.0
  %98 = vmatprep.subr.mxu0 0.0
  %99 = vmatpush2.msra.mxu0 0.0
  %100 = vmatprep.subr.mxu0 0.0
  %101 = vmatpush2.msra.mxu0 0.0
  %102 = vmatprep.subr.mxu0 0.0
  %103 = vmatpush2.msra.mxu0 0.0
  %104 = vmatprep.subr.mxu0 0.0
  %105 = vmatpush2.msra.mxu0 0.0
  %106 = vmatprep.subr.mxu0 0.0
  %107 = vmatpush2.msra.mxu0 0.0
  %108 = vmatprep.subr.mxu0 0.0
  %109 = vmatpush2.msra.mxu0 0.0
  %110 = vmatprep.subr.mxu0 0.0
  %111 = vmatpush2.msra.mxu0 0.0
  %112 = vmatprep.subr.mxu0 0.0
  %113 = vmatpush2.msra.mxu0 0.0
  %114 = vmatprep.subr.mxu0 0.0
  %115 = vmatpush2.msra.mxu0 0.0
  %116 = vmatprep.mubr.f32.mxu0 0.0
  %117 = vmatmul.mubr.f32.gmra.mxu0 %v37
  %v118 = vpop.f32.mrf.mxu0
  %v119 = vadd.f32 %v31, %v118
  %v120 = vpop.f32.mrf.mxu0
  %121 = vmatprep.mubr.f32.mxu0 0.0
  %122 = vmatmul.mubr.f32.gmra.mxu0 %v40
  %v123 = vpop.f32.mrf.mxu0
  %v124 = vadd.f32 %v32, %v123
  %v125 = vpop.f32.mrf.mxu0
  %126 = vmatprep.mubr.f32.mxu0 0.0
  %127 = vmatmul.mubr.f32.gmra.mxu0 %v43
  %v128 = vpop.f32.mrf.mxu0
  %v129 = vadd.f32 %v33, %v128
  %v130 = vpop.f32.mrf.mxu0
  %131 = vmatprep.mubr.f32.mxu0 0.0
  %132 = vmatmul.mubr.f32.gmra.mxu0 %v46
  %v133 = vpop.f32.mrf.mxu0
  %v134 = vadd.f32 %v34, %v133
  %v135 = vpop.f32.mrf.mxu0
  %136 = vdwg.mxu0
  %vm137 = vcmask 261120
  %138 = vst.msk [vmem:[%s4] sm:$0xff] %vm137, %v119
  %139 = vst.msk [vmem:[%s4 + $0x8] sm:$0xff] %vm137, %v124
  %140 = vst.msk [vmem:[%s4 + $0x10] sm:$0xff] %vm137, %v129
  %141 = vst.msk [vmem:[%s4 + $0x18] sm:$0xff] %vm137, %v134
  // Predicated region
  $region18: #{dcn_forward.5} parent=0 // pred_check
    _
  $region19: #{dcn_forward.5} parent=0 // pred_check_branch
    %143 = sbr.rel (0) target = $region21
  $region20: #{dcn_forward.5} parent=0 // pred_region
    _
  $region21: #{dcn_forward.5} parent=0 // pred_fallthru
    _
  // Predicated region
  $region22: #{dcn_forward.5} parent=0 // pred_check
    _
  $region23: #{dcn_forward.5} parent=0 // pred_check_branch
    %145 = sbr.rel (0) target = $region25
  $region24: #{dcn_forward.5} parent=0 // pred_region
    _
  $region25: #{dcn_forward.5} parent=0 // pred_fallthru
    _

// kernel: dcn_forward.4
$region0: #{dcn_forward.4}
  #allocation0 [shape = 'u32[]', space=smem, size = 0x4, offset = 0x4, fixed_abs, tag = 'smem constant byte address 0x4 - core index']
  #allocation1 [shape = 'u32[144,128]{1,0:T(1,128)}', space=vmem, size = 0x12000, scoped, tag = 'internal scratch']
  #allocation2 [shape = 'f32[2,20]{1,0:T(2,128)}', space=vmem, size = 0x400, scoped, tag = 'scratch operand']
  #allocation3 [shape = 'f32[2,20]{1,0:T(2,128)}', space=vmem, size = 0x400, scoped, tag = 'scratch operand']
  %s0 = inlined_call_operand.vmem [shape: f32[8,2,12], index: 0, kind: input, shape index: {}]
  %s1 = inlined_call_operand.vmem [shape: f32[12,80], index: 1, kind: input, shape index: {}]
  %s2 = inlined_call_operand.vmem [shape: f32[20,80], index: 2, kind: input, shape index: {}]
  %s3 = inlined_call_operand.vmem [shape: f32[1,80], index: 3, kind: input, shape index: {}]
  %s4 = inlined_call_operand.vmem [shape: f32[8,2,20], index: 4, kind: output, shape index: {0}]
  %s5 = inlined_call_operand.vmem [shape: f32[2,20], index: 5, kind: output, shape index: {1}]
  %6 = xla_tuple %s4, %s5
  %s7 = sld [smem:[#allocation0]]
  $region34: #{dcn_forward.4} parent=0
    _
  %s9 = ssub.s32 1, %s7
  %s10 = scalar_select 0, %s9, %s7
  // Predicated region
  $region2: #{dcn_forward.4} parent=0 // pred_check
    _
  $region3: #{dcn_forward.4} parent=0 // pred_check_branch
    %12 = sbr.rel (0) target = $region5
  $region4: #{dcn_forward.4} parent=0 // pred_region
    _
  $region5: #{dcn_forward.4} parent=0 // pred_fallthru
    _
  // Predicated region
  $region6: #{dcn_forward.4} parent=0 // pred_check
    _
  $region7: #{dcn_forward.4} parent=0 // pred_check_branch
    %14 = sbr.rel (0) target = $region9
  $region8: #{dcn_forward.4} parent=0 // pred_region
    _
  $region9: #{dcn_forward.4} parent=0 // pred_fallthru
    _
  // Predicated region
  $region10: #{dcn_forward.4} parent=0 // pred_check
    _
  $region11: #{dcn_forward.4} parent=0 // pred_check_branch
    %16 = sbr.rel (0) target = $region13
  $region12: #{dcn_forward.4} parent=0 // pred_region
    _
  $region13: #{dcn_forward.4} parent=0 // pred_fallthru
    _
  // Predicated region
  $region14: #{dcn_forward.4} parent=0 // pred_check
    _
  $region15: #{dcn_forward.4} parent=0 // pred_check_branch
    %18 = sbr.rel (0) target = $region17
  $region16: #{dcn_forward.4} parent=0 // pred_region
    _
  $region17: #{dcn_forward.4} parent=0 // pred_fallthru
    _
  %v19 = vld [vmem:[%s1] sm:$0xff]
  %v20 = vld [vmem:[%s1 + $0x8] sm:$0xf]
  %v21 = vld [vmem:[%s2] sm:$0xff]
  %v22 = vld [vmem:[%s2 + $0x8] sm:$0xff]
  %v23 = vld [vmem:[%s2 + $0x10] sm:$0xf]
  %v24 = vld [vmem:[%s3] sm:$0x1]
  %vm25 = vcmask 156672
  %26 = vst.msk [vmem:[#allocation2] sm:$0x3] %vm25, 0.0
  %27 = vst.msk [vmem:[#allocation3] sm:$0x3] %vm25, 0.0
  %v28 = vld [vmem:[%s0] sm:$0x3]
  %v29 = vld [vmem:[#allocation2] sm:$0x3]
  %v30 = vld [vmem:[#allocation3] sm:$0x3]
  %vm31 = vcmask 162816
  %v33 = vsel %vm31, %v29, 0
  %vm35 = vcmask 1043456
  %v37 = vsel %vm35, %v23, 0
  %39 = vmatprep.subr.mxu0 0.0
  %40 = vmatpush1.msra.mxu0 0.0
  %41 = vmatprep.subr.mxu0 0.0
  %42 = vmatpush1.msra.mxu0 0.0
  %43 = vmatprep.subr.mxu0 0.0
  %44 = vmatpush1.msra.mxu0 0.0
  %45 = vmatprep.subr.mxu0 0.0
  %46 = vmatpush1.msra.mxu0 0.0
  %47 = vmatprep.subr.mxu0 0.0
  %48 = vmatpush1.msra.mxu0 0.0
  %49 = vmatprep.subr.mxu0 0.0
  %50 = vmatpush1.msra.mxu0 0.0
  %51 = vmatprep.subr.mxu0 0.0
  %52 = vmatpush1.msra.mxu0 0.0
  %53 = vmatprep.subr.mxu0 0.0
  %54 = vmatpush1.msra.mxu0 0.0
  %55 = vmatprep.subr.mxu0 0.0
  %56 = vmatpush1.msra.mxu0 0.0
  %57 = vmatprep.subr.mxu0 0.0
  %58 = vmatpush1.msra.mxu0 0.0
  %59 = vmatprep.subr.mxu0 0.0
  %60 = vmatpush1.msra.mxu0 0.0
  %61 = vmatprep.subr.mxu0 0.0
  %62 = vmatpush1.msra.mxu0 0.0
  %63 = vmatprep.subr.mxu0 0.0
  %64 = vmatpush1.msra.mxu0 0.0
  %65 = vmatprep.subr.mxu0 0.0
  %66 = vmatpush1.msra.mxu0 %v37
  %67 = vmatprep.subr.mxu0 0.0
  %68 = vmatpush1.msra.mxu0 %v22
  %69 = vmatprep.subr.mxu0 0.0
  %70 = vmatpush1.msra.mxu0 %v21
  %71 = vmatprep.subr.mxu0 0.0
  %72 = vmatpush2.msra.mxu0 0.0
  %73 = vmatprep.subr.mxu0 0.0
  %74 = vmatpush2.msra.mxu0 0.0
  %75 = vmatprep.subr.mxu0 0.0
  %76 = vmatpush2.msra.mxu0 0.0
  %77 = vmatprep.subr.mxu0 0.0
  %78 = vmatpush2.msra.mxu0 0.0
  %79 = vmatprep.subr.mxu0 0.0
  %80 = vmatpush2.msra.mxu0 0.0
  %81 = vmatprep.subr.mxu0 0.0
  %82 = vmatpush2.msra.mxu0 0.0
  %83 = vmatprep.subr.mxu0 0.0
  %84 = vmatpush2.msra.mxu0 0.0
  %85 = vmatprep.subr.mxu0 0.0
  %86 = vmatpush2.msra.mxu0 0.0
  %87 = vmatprep.subr.mxu0 0.0
  %88 = vmatpush2.msra.mxu0 0.0
  %89 = vmatprep.subr.mxu0 0.0
  %90 = vmatpush2.msra.mxu0 0.0
  %91 = vmatprep.subr.mxu0 0.0
  %92 = vmatpush2.msra.mxu0 0.0
  %93 = vmatprep.subr.mxu0 0.0
  %94 = vmatpush2.msra.mxu0 0.0
  %95 = vmatprep.subr.mxu0 0.0
  %96 = vmatpush2.msra.mxu0 0.0
  %97 = vmatprep.subr.mxu0 0.0
  %98 = vmatpush2.msra.mxu0 0.0
  %99 = vmatprep.subr.mxu0 0.0
  %100 = vmatpush2.msra.mxu0 0.0
  %101 = vmatprep.subr.mxu0 0.0
  %102 = vmatpush2.msra.mxu0 0.0
  %103 = vmatprep.mubr.f32.mxu0 0.0
  %104 = vmatmul.mubr.f32.gmra.mxu0 %v33
  %v105 = vpop.f32.mrf.mxu0
  %v106 = vadd.f32 0.0, %v105
  %v107 = vpop.f32.mrf.mxu0
  %108 = vdwg.mxu0
  %vm109 = vcmask 97280
  %v111 = vsel %vm109, %v28, 0
  %v114 = vsel %vm35, %v20, 0
  %116 = vmatprep.subr.mxu0 0.0
  %117 = vmatpush1.msra.mxu0 0.0
  %118 = vmatprep.subr.mxu0 0.0
  %119 = vmatpush1.msra.mxu0 0.0
  %120 = vmatprep.subr.mxu0 0.0
  %121 = vmatpush1.msra.mxu0 0.0
  %122 = vmatprep.subr.mxu0 0.0
  %123 = vmatpush1.msra.mxu0 0.0
  %124 = vmatprep.subr.mxu0 0.0
  %125 = vmatpush1.msra.mxu0 0.0
  %126 = vmatprep.subr.mxu0 0.0
  %127 = vmatpush1.msra.mxu0 0.0
  %128 = vmatprep.subr.mxu0 0.0
  %129 = vmatpush1.msra.mxu0 0.0
  %130 = vmatprep.subr.mxu0 0.0
  %131 = vmatpush1.msra.mxu0 0.0
  %132 = vmatprep.subr.mxu0 0.0
  %133 = vmatpush1.msra.mxu0 0.0
  %134 = vmatprep.subr.mxu0 0.0
  %135 = vmatpush1.msra.mxu0 0.0
  %136 = vmatprep.subr.mxu0 0.0
  %137 = vmatpush1.msra.mxu0 0.0
  %138 = vmatprep.subr.mxu0 0.0
  %139 = vmatpush1.msra.mxu0 0.0
  %140 = vmatprep.subr.mxu0 0.0
  %141 = vmatpush1.msra.mxu0 0.0
  %142 = vmatprep.subr.mxu0 0.0
  %143 = vmatpush1.msra.mxu0 0.0
  %144 = vmatprep.subr.mxu0 0.0
  %145 = vmatpush1.msra.mxu0 %v114
  %146 = vmatprep.subr.mxu0 0.0
  %147 = vmatpush1.msra.mxu0 %v19
  %148 = vmatprep.subr.mxu0 0.0
  %149 = vmatpush2.msra.mxu0 0.0
  %150 = vmatprep.subr.mxu0 0.0
  %151 = vmatpush2.msra.mxu0 0.0
  %152 = vmatprep.subr.mxu0 0.0
  %153 = vmatpush2.msra.mxu0 0.0
  %154 = vmatprep.subr.mxu0 0.0
  %155 = vmatpush2.msra.mxu0 0.0
  %156 = vmatprep.subr.mxu0 0.0
  %157 = vmatpush2.msra.mxu0 0.0
  %158 = vmatprep.subr.mxu0 0.0
  %159 = vmatpush2.msra.mxu0 0.0
  %160 = vmatprep.subr.mxu0 0.0
  %161 = vmatpush2.msra.mxu0 0.0
  %162 = vmatprep.subr.mxu0 0.0
  %163 = vmatpush2.msra.mxu0 0.0
  %164 = vmatprep.subr.mxu0 0.0
  %165 = vmatpush2.msra.mxu0 0.0
  %166 = vmatprep.subr.mxu0 0.0
  %167 = vmatpush2.msra.mxu0 0.0
  %168 = vmatprep.subr.mxu0 0.0
  %169 = vmatpush2.msra.mxu0 0.0
  %170 = vmatprep.subr.mxu0 0.0
  %171 = vmatpush2.msra.mxu0 0.0
  %172 = vmatprep.subr.mxu0 0.0
  %173 = vmatpush2.msra.mxu0 0.0
  %174 = vmatprep.subr.mxu0 0.0
  %175 = vmatpush2.msra.mxu0 0.0
  %176 = vmatprep.subr.mxu0 0.0
  %177 = vmatpush2.msra.mxu0 0.0
  %178 = vmatprep.subr.mxu0 0.0
  %179 = vmatpush2.msra.mxu0 0.0
  %180 = vmatprep.mubr.f32.mxu0 0.0
  %181 = vmatmul.mubr.f32.gmra.mxu0 %v111
  %v182 = vpop.f32.mrf.mxu0
  %v183 = vadd.f32 %v106, %v182
  %v184 = vpop.f32.mrf.mxu0
  %185 = vdwg.mxu0
  %v187 = vlaneseq
  %v188 = vshrl.u32 %v187, 7
  %v189 = vsub.s32 0, %v188
  %v190 = vrot.slane %v24, %v189
  %v192 = vadd.f32 %v183, %v190
  %v193 = vxor.u32 %v192, 2147483648
  %v194 = vmul.f32 %v193, 1.442695
  %v195 = vpow.pop %v194
  %v196 = vadd.f32 %v195, 1.0
  %v197 = vrcp.pop %v196
  %v198 = vmul.f32 1.0, %v197
  %v199 = vtanh.pop %v192
  %201 = vrot.lane.b32.xlu0 %v30, 20
  %v202 = vpop.permute.xlu0 %201
  %v204 = vmul.f32 %v198, %v202
  %206 = vrot.lane.b32.xlu0 %v199, 88
  %v207 = vpop.permute.xlu0 %206
  %v209 = vmul.f32 %v198, %v207
  %211 = vrot.lane.b32.xlu0 %v209, 20
  %v212 = vpop.permute.xlu0 %211
  %v214 = vadd.f32 %v204, %v212
  %v215 = vtanh.pop %v214
  %217 = vrot.lane.b32.xlu0 %v215, 40
  %v218 = vpop.permute.xlu0 %217
  %v220 = vmul.f32 %v198, %v218
  %222 = vrot.lane.b32.xlu0 %v220, 68
  %v223 = vpop.permute.xlu0 %222
  %225 = vst.msk [vmem:[#allocation2] sm:$0x3] %vm25, %v223
  %227 = vrot.lane.b32.xlu0 %v214, 108
  %v228 = vpop.permute.xlu0 %227
  %230 = vst.msk [vmem:[#allocation3] sm:$0x3] %vm25, %v228
  %231 = vst.msk [vmem:[%s4] sm:$0x3] %vm25, %v223
  %s232 = scalar_lea.vmem %s0, 2
  %v233 = vld [vmem:[%s232] sm:$0x3]
  %v234 = vld [vmem:[#allocation2] sm:$0x3]
  %v235 = vld [vmem:[#allocation3] sm:$0x3]
  %v237 = vsel %vm31, %v234, 0
  %239 = vmatprep.subr.mxu0 0.0
  %240 = vmatpush1.msra.mxu0 0.0
  %241 = vmatprep.subr.mxu0 0.0
  %242 = vmatpush1.msra.mxu0 0.0
  %243 = vmatprep.subr.mxu0 0.0
  %244 = vmatpush1.msra.mxu0 0.0
  %245 = vmatprep.subr.mxu0 0.0
  %246 = vmatpush1.msra.mxu0 0.0
  %247 = vmatprep.subr.mxu0 0.0
  %248 = vmatpush1.msra.mxu0 0.0
  %249 = vmatprep.subr.mxu0 0.0
  %250 = vmatpush1.msra.mxu0 0.0
  %251 = vmatprep.subr.mxu0 0.0
  %252 = vmatpush1.msra.mxu0 0.0
  %253 = vmatprep.subr.mxu0 0.0
  %254 = vmatpush1.msra.mxu0 0.0
  %255 = vmatprep.subr.mxu0 0.0
  %256 = vmatpush1.msra.mxu0 0.0
  %257 = vmatprep.subr.mxu0 0.0
  %258 = vmatpush1.msra.mxu0 0.0
  %259 = vmatprep.subr.mxu0 0.0
  %260 = vmatpush1.msra.mxu0 0.0
  %261 = vmatprep.subr.mxu0 0.0
  %262 = vmatpush1.msra.mxu0 0.0
  %263 = vmatprep.subr.mxu0 0.0
  %264 = vmatpush1.msra.mxu0 0.0
  %265 = vmatprep.subr.mxu0 0.0
  %266 = vmatpush1.msra.mxu0 %v37
  %267 = vmatprep.subr.mxu0 0.0
  %268 = vmatpush1.msra.mxu0 %v22
  %269 = vmatprep.subr.mxu0 0.0
  %270 = vmatpush1.msra.mxu0 %v21
  %271 = vmatprep.subr.mxu0 0.0
  %272 = vmatpush2.msra.mxu0 0.0
  %273 = vmatprep.subr.mxu0 0.0
  %274 = vmatpush2.msra.mxu0 0.0
  %275 = vmatprep.subr.mxu0 0.0
  %276 = vmatpush2.msra.mxu0 0.0
  %277 = vmatprep.subr.mxu0 0.0
  %278 = vmatpush2.msra.mxu0 0.0
  %279 = vmatprep.subr.mxu0 0.0
  %280 = vmatpush2.msra.mxu0 0.0
  %281 = vmatprep.subr.mxu0 0.0
  %282 = vmatpush2.msra.mxu0 0.0
  %283 = vmatprep.subr.mxu0 0.0
  %284 = vmatpush2.msra.mxu0 0.0
  %285 = vmatprep.subr.mxu0 0.0
  %286 = vmatpush2.msra.mxu0 0.0
  %287 = vmatprep.subr.mxu0 0.0
  %288 = vmatpush2.msra.mxu0 0.0
  %289 = vmatprep.subr.mxu0 0.0
  %290 = vmatpush2.msra.mxu0 0.0
  %291 = vmatprep.subr.mxu0 0.0
  %292 = vmatpush2.msra.mxu0 0.0
  %293 = vmatprep.subr.mxu0 0.0
  %294 = vmatpush2.msra.mxu0 0.0
  %295 = vmatprep.subr.mxu0 0.0
  %296 = vmatpush2.msra.mxu0 0.0
  %297 = vmatprep.subr.mxu0 0.0
  %298 = vmatpush2.msra.mxu0 0.0
  %299 = vmatprep.subr.mxu0 0.0
  %300 = vmatpush2.msra.mxu0 0.0
  %301 = vmatprep.subr.mxu0 0.0
  %302 = vmatpush2.msra.mxu0 0.0
  %303 = vmatprep.mubr.f32.mxu0 0.0
  %304 = vmatmul.mubr.f32.gmra.mxu0 %v237
  %v305 = vpop.f32.mrf.mxu0
  %v306 = vadd.f32 0.0, %v305
  %v307 = vpop.f32.mrf.mxu0
  %308 = vdwg.mxu0
  %v310 = vsel %vm109, %v233, 0
  %312 = vmatprep.subr.mxu0 0.0
  %313 = vmatpush1.msra.mxu0 0.0
  %314 = vmatprep.subr.mxu0 0.0
  %315 = vmatpush1.msra.mxu0 0.0
  %316 = vmatprep.subr.mxu0 0.0
  %317 = vmatpush1.msra.mxu0 0.0
  %318 = vmatprep.subr.mxu0 0.0
  %319 = vmatpush1.msra.mxu0 0.0
  %320 = vmatprep.subr.mxu0 0.0
  %321 = vmatpush1.msra.mxu0 0.0
  %322 = vmatprep.subr.mxu0 0.0
  %323 = vmatpush1.msra.mxu0 0.0
  %324 = vmatprep.subr.mxu0 0.0
  %325 = vmatpush1.msra.mxu0 0.0
  %326 = vmatprep.subr.mxu0 0.0
  %327 = vmatpush1.msra.mxu0 0.0
  %328 = vmatprep.subr.mxu0 0.0
  %329 = vmatpush1.msra.mxu0 0.0
  %330 = vmatprep.subr.mxu0 0.0
  %331 = vmatpush1.msra.mxu0 0.0
  %332 = vmatprep.subr.mxu0 0.0
  %333 = vmatpush1.msra.mxu0 0.0
  %334 = vmatprep.subr.mxu0 0.0
  %335 = vmatpush1.msra.mxu0 0.0
  %336 = vmatprep.subr.mxu0 0.0
  %337 = vmatpush1.msra.mxu0 0.0
  %338 = vmatprep.subr.mxu0 0.0
  %339 = vmatpush1.msra.mxu0 0.0
  %340 = vmatprep.subr.mxu0 0.0
  %341 = vmatpush1.msra.mxu0 %v114
  %342 = vmatprep.subr.mxu0 0.0
  %343 = vmatpush1.msra.mxu0 %v19
  %344 = vmatprep.subr.mxu0 0.0
  %345 = vmatpush2.msra.mxu0 0.0
  %346 = vmatprep.subr.mxu0 0.0
  %347 = vmatpush2.msra.mxu0 0.0
  %348 = vmatprep.subr.mxu0 0.0
  %349 = vmatpush2.msra.mxu0 0.0
  %350 = vmatprep.subr.mxu0 0.0
  %351 = vmatpush2.msra.mxu0 0.0
  %352 = vmatprep.subr.mxu0 0.0
  %353 = vmatpush2.msra.mxu0 0.0
  %354 = vmatprep.subr.mxu0 0.0
  %355 = vmatpush2.msra.mxu0 0.0
  %356 = vmatprep.subr.mxu0 0.0
  %357 = vmatpush2.msra.mxu0 0.0
  %358 = vmatprep.subr.mxu0 0.0
  %359 = vmatpush2.msra.mxu0 0.0
  %360 = vmatprep.subr.mxu0 0.0
  %361 = vmatpush2.msra.mxu0 0.0
  %362 = vmatprep.subr.mxu0 0.0
  %363 = vmatpush2.msra.mxu0 0.0
  %364 = vmatprep.subr.mxu0 0.0
  %365 = vmatpush2.msra.mxu0 0.0
  %366 = vmatprep.subr.mxu0 0.0
  %367 = vmatpush2.msra.mxu0 0.0
  %368 = vmatprep.subr.mxu0 0.0
  %369 = vmatpush2.msra.mxu0 0.0
  %370 = vmatprep.subr.mxu0 0.0
  %371 = vmatpush2.msra.mxu0 0.0
  %372 = vmatprep.subr.mxu0 0.0
  %373 = vmatpush2.msra.mxu0 0.0
  %374 = vmatprep.subr.mxu0 0.0
  %375 = vmatpush2.msra.mxu0 0.0
  %376 = vmatprep.mubr.f32.mxu0 0.0
  %377 = vmatmul.mubr.f32.gmra.mxu0 %v310
  %v378 = vpop.f32.mrf.mxu0
  %v379 = vadd.f32 %v306, %v378
  %v380 = vpop.f32.mrf.mxu0
  %381 = vdwg.mxu0
  %v382 = vadd.f32 %v379, %v190
  %v383 = vxor.u32 %v382, 2147483648
  %v384 = vmul.f32 %v383, 1.442695
  %v385 = vpow.pop %v384
  %v386 = vadd.f32 %v385, 1.0
  %v387 = vrcp.pop %v386
  %v388 = vmul.f32 1.0, %v387
  %v389 = vtanh.pop %v382
  %391 = vrot.lane.b32.xlu0 %v235, 20
  %v392 = vpop.permute.xlu0 %391
  %v394 = vmul.f32 %v388, %v392
  %396 = vrot.lane.b32.xlu0 %v389, 88
  %v397 = vpop.permute.xlu0 %396
  %v399 = vmul.f32 %v388, %v397
  %401 = vrot.lane.b32.xlu0 %v399, 20
  %v402 = vpop.permute.xlu0 %401
  %v404 = vadd.f32 %v394, %v402
  %v405 = vtanh.pop %v404
  %407 = vrot.lane.b32.xlu0 %v405, 40
  %v408 = vpop.permute.xlu0 %407
  %v410 = vmul.f32 %v388, %v408
  %412 = vrot.lane.b32.xlu0 %v410, 68
  %v413 = vpop.permute.xlu0 %412
  %415 = vst.msk [vmem:[#allocation2] sm:$0x3] %vm25, %v413
  %417 = vrot.lane.b32.xlu0 %v404, 108
  %v418 = vpop.permute.xlu0 %417
  %420 = vst.msk [vmem:[#allocation3] sm:$0x3] %vm25, %v418
  %s421 = scalar_lea.vmem %s4, 2
  %422 = vst.msk [vmem:[%s421] sm:$0x3] %vm25, %v413
  %s423 = scalar_lea.vmem %s0, 4
  %v424 = vld [vmem:[%s423] sm:$0x3]
  %v425 = vld [vmem:[#allocation2] sm:$0x3]
  %v426 = vld [vmem:[#allocation3] sm:$0x3]
  %v428 = vsel %vm31, %v425, 0
  %430 = vmatprep.subr.mxu0 0.0
  %431 = vmatpush1.msra.mxu0 0.0
  %432 = vmatprep.subr.mxu0 0.0
  %433 = vmatpush1.msra.mxu0 0.0
  %434 = vmatprep.subr.mxu0 0.0
  %435 = vmatpush1.msra.mxu0 0.0
  %436 = vmatprep.subr.mxu0 0.0
  %437 = vmatpush1.msra.mxu0 0.0
  %438 = vmatprep.subr.mxu0 0.0
  %439 = vmatpush1.msra.mxu0 0.0
  %440 = vmatprep.subr.mxu0 0.0
  %441 = vmatpush1.msra.mxu0 0.0
  %442 = vmatprep.subr.mxu0 0.0
  %443 = vmatpush1.msra.mxu0 0.0
  %444 = vmatprep.subr.mxu0 0.0
  %445 = vmatpush1.msra.mxu0 0.0
  %446 = vmatprep.subr.mxu0 0.0
  %447 = vmatpush1.msra.mxu0 0.0
  %448 = vmatprep.subr.mxu0 0.0
  %449 = vmatpush1.msra.mxu0 0.0
  %450 = vmatprep.subr.mxu0 0.0
  %451 = vmatpush1.msra.mxu0 0.0
  %452 = vmatprep.subr.mxu0 0.0
  %453 = vmatpush1.msra.mxu0 0.0
  %454 = vmatprep.subr.mxu0 0.0
  %455 = vmatpush1.msra.mxu0 0.0
  %456 = vmatprep.subr.mxu0 0.0
  %457 = vmatpush1.msra.mxu0 %v37
  %458 = vmatprep.subr.mxu0 0.0
  %459 = vmatpush1.msra.mxu0 %v22
  %460 = vmatprep.subr.mxu0 0.0
  %461 = vmatpush1.msra.mxu0 %v21
  %462 = vmatprep.subr.mxu0 0.0
  %463 = vmatpush2.msra.mxu0 0.0
  %464 = vmatprep.subr.mxu0 0.0
  %465 = vmatpush2.msra.mxu0 0.0
  %466 = vmatprep.subr.mxu0 0.0
  %467 = vmatpush2.msra.mxu0 0.0
  %468 = vmatprep.subr.mxu0 0.0
  %469 = vmatpush2.msra.mxu0 0.0
  %470 = vmatprep.subr.mxu0 0.0
  %471 = vmatpush2.msra.mxu0 0.0
  %472 = vmatprep.subr.mxu0 0.0
  %473 = vmatpush2.msra.mxu0 0.0
  %474 = vmatprep.subr.mxu0 0.0
  %475 = vmatpush2.msra.mxu0 0.0
  %476 = vmatprep.subr.mxu0 0.0
  %477 = vmatpush2.msra.mxu0 0.0
  %478 = vmatprep.subr.mxu0 0.0
  %479 = vmatpush2.msra.mxu0 0.0
  %480 = vmatprep.subr.mxu0 0.0
  %481 = vmatpush2.msra.mxu0 0.0
  %482 = vmatprep.subr.mxu0 0.0
  %483 = vmatpush2.msra.mxu0 0.0
  %484 = vmatprep.subr.mxu0 0.0
  %485 = vmatpush2.msra.mxu0 0.0
  %486 = vmatprep.subr.mxu0 0.0
  %487 = vmatpush2.msra.mxu0 0.0
  %488 = vmatprep.subr.mxu0 0.0
  %489 = vmatpush2.msra.mxu0 0.0
  %490 = vmatprep.subr.mxu0 0.0
  %491 = vmatpush2.msra.mxu0 0.0
  %492 = vmatprep.subr.mxu0 0.0
  %493 = vmatpush2.msra.mxu0 0.0
  %494 = vmatprep.mubr.f32.mxu0 0.0
  %495 = vmatmul.mubr.f32.gmra.mxu0 %v428
  %v496 = vpop.f32.mrf.mxu0
  %v497 = vadd.f32 0.0, %v496
  %v498 = vpop.f32.mrf.mxu0
  %499 = vdwg.mxu0
  %v501 = vsel %vm109, %v424, 0
  %503 = vmatprep.subr.mxu0 0.0
  %504 = vmatpush1.msra.mxu0 0.0
  %505 = vmatprep.subr.mxu0 0.0
  %506 = vmatpush1.msra.mxu0 0.0
  %507 = vmatprep.subr.mxu0 0.0
  %508 = vmatpush1.msra.mxu0 0.0
  %509 = vmatprep.subr.mxu0 0.0
  %510 = vmatpush1.msra.mxu0 0.0
  %511 = vmatprep.subr.mxu0 0.0
  %512 = vmatpush1.msra.mxu0 0.0
  %513 = vmatprep.subr.mxu0 0.0
  %514 = vmatpush1.msra.mxu0 0.0
  %515 = vmatprep.subr.mxu0 0.0
  %516 = vmatpush1.msra.mxu0 0.0
  %517 = vmatprep.subr.mxu0 0.0
  %518 = vmatpush1.msra.mxu0 0.0
  %519 = vmatprep.subr.mxu0 0.0
  %520 = vmatpush1.msra.mxu0 0.0
  %521 = vmatprep.subr.mxu0 0.0
  %522 = vmatpush1.msra.mxu0 0.0
  %523 = vmatprep.subr.mxu0 0.0
  %524 = vmatpush1.msra.mxu0 0.0
  %525 = vmatprep.subr.mxu0 0.0
  %526 = vmatpush1.msra.mxu0 0.0
  %527 = vmatprep.subr.mxu0 0.0
  %528 = vmatpush1.msra.mxu0 0.0
  %529 = vmatprep.subr.mxu0 0.0
  %530 = vmatpush1.msra.mxu0 0.0
  %531 = vmatprep.subr.mxu0 0.0
  %532 = vmatpush1.msra.mxu0 %v114
  %533 = vmatprep.subr.mxu0 0.0
  %534 = vmatpush1.msra.mxu0 %v19
  %535 = vmatprep.subr.mxu0 0.0
  %536 = vmatpush2.msra.mxu0 0.0
  %537 = vmatprep.subr.mxu0 0.0
  %538 = vmatpush2.msra.mxu0 0.0
  %539 = vmatprep.subr.mxu0 0.0
  %540 = vmatpush2.msra.mxu0 0.0
  %541 = vmatprep.subr.mxu0 0.0
  %542 = vmatpush2.msra.mxu0 0.0
  %543 = vmatprep.subr.mxu0 0.0
  %544 = vmatpush2.msra.mxu0 0.0
  %545 = vmatprep.subr.mxu0 0.0
  %546 = vmatpush2.msra.mxu0 0.0
  %547 = vmatprep.subr.mxu0 0.0
  %548 = vmatpush2.msra.mxu0 0.0
  %549 = vmatprep.subr.mxu0 0.0
  %550 = vmatpush2.msra.mxu0 0.0
  %551 = vmatprep.subr.mxu0 0.0
  %552 = vmatpush2.msra.mxu0 0.0
  %553 = vmatprep.subr.mxu0 0.0
  %554 = vmatpush2.msra.mxu0 0.0
  %555 = vmatprep.subr.mxu0 0.0
  %556 = vmatpush2.msra.mxu0 0.0
  %557 = vmatprep.subr.mxu0 0.0
  %558 = vmatpush2.msra.mxu0 0.0
  %559 = vmatprep.subr.mxu0 0.0
  %560 = vmatpush2.msra.mxu0 0.0
  %561 = vmatprep.subr.mxu0 0.0
  %562 = vmatpush2.msra.mxu0 0.0
  %563 = vmatprep.subr.mxu0 0.0
  %564 = vmatpush2.msra.mxu0 0.0
  %565 = vmatprep.subr.mxu0 0.0
  %566 = vmatpush2.msra.mxu0 0.0
  %567 = vmatprep.mubr.f32.mxu0 0.0
  %568 = vmatmul.mubr.f32.gmra.mxu0 %v501
  %v569 = vpop.f32.mrf.mxu0
  %v570 = vadd.f32 %v497, %v569
  %v571 = vpop.f32.mrf.mxu0
  %572 = vdwg.mxu0
  %v573 = vadd.f32 %v570, %v190
  %v574 = vxor.u32 %v573, 2147483648
  %v575 = vmul.f32 %v574, 1.442695
  %v576 = vpow.pop %v575
  %v577 = vadd.f32 %v576, 1.0
  %v578 = vrcp.pop %v577
  %v579 = vmul.f32 1.0, %v578
  %v580 = vtanh.pop %v573
  %582 = vrot.lane.b32.xlu0 %v426, 20
  %v583 = vpop.permute.xlu0 %582
  %v585 = vmul.f32 %v579, %v583
  %587 = vrot.lane.b32.xlu0 %v580, 88
  %v588 = vpop.permute.xlu0 %587
  %v590 = vmul.f32 %v579, %v588
  %592 = vrot.lane.b32.xlu0 %v590, 20
  %v593 = vpop.permute.xlu0 %592
  %v595 = vadd.f32 %v585, %v593
  %v596 = vtanh.pop %v595
  %598 = vrot.lane.b32.xlu0 %v596, 40
  %v599 = vpop.permute.xlu0 %598
  %v601 = vmul.f32 %v579, %v599
  %603 = vrot.lane.b32.xlu0 %v601, 68
  %v604 = vpop.permute.xlu0 %603
  %606 = vst.msk [vmem:[#allocation2] sm:$0x3] %vm25, %v604
  %608 = vrot.lane.b32.xlu0 %v595, 108
  %v609 = vpop.permute.xlu0 %608
  %611 = vst.msk [vmem:[#allocation3] sm:$0x3] %vm25, %v609
  %s612 = scalar_lea.vmem %s4, 4
  %613 = vst.msk [vmem:[%s612] sm:$0x3] %vm25, %v604
  %s614 = scalar_lea.vmem %s0, 6
  %v615 = vld [vmem:[%s614] sm:$0x3]
  %v616 = vld [vmem:[#allocation2] sm:$0x3]
  %v617 = vld [vmem:[#allocation3] sm:$0x3]
  %v619 = vsel %vm31, %v616, 0
  %621 = vmatprep.subr.mxu0 0.0
  %622 = vmatpush1.msra.mxu0 0.0
  %623 = vmatprep.subr.mxu0 0.0
  %624 = vmatpush1.msra.mxu0 0.0
  %625 = vmatprep.subr.mxu0 0.0
  %626 = vmatpush1.msra.mxu0 0.0
  %627 = vmatprep.subr.mxu0 0.0
  %628 = vmatpush1.msra.mxu0 0.0
  %629 = vmatprep.subr.mxu0 0.0
  %630 = vmatpush1.msra.mxu0 0.0
  %631 = vmatprep.subr.mxu0 0.0
  %632 = vmatpush1.msra.mxu0 0.0
  %633 = vmatprep.subr.mxu0 0.0
  %634 = vmatpush1.msra.mxu0 0.0
  %635 = vmatprep.subr.mxu0 0.0
  %636 = vmatpush1.msra.mxu0 0.0
  %637 = vmatprep.subr.mxu0 0.0
  %638 = vmatpush1.msra.mxu0 0.0
  %639 = vmatprep.subr.mxu0 0.0
  %640 = vmatpush1.msra.mxu0 0.0
  %641 = vmatprep.subr.mxu0 0.0
  %642 = vmatpush1.msra.mxu0 0.0
  %643 = vmatprep.subr.mxu0 0.0
  %644 = vmatpush1.msra.mxu0 0.0
  %645 = vmatprep.subr.mxu0 0.0
  %646 = vmatpush1.msra.mxu0 0.0
  %647 = vmatprep.subr.mxu0 0.0
  %648 = vmatpush1.msra.mxu0 %v37
  %649 = vmatprep.subr.mxu0 0.0
  %650 = vmatpush1.msra.mxu0 %v22
  %651 = vmatprep.subr.mxu0 0.0
  %652 = vmatpush1.msra.mxu0 %v21
  %653 = vmatprep.subr.mxu0 0.0
  %654 = vmatpush2.msra.mxu0 0.0
  %655 = vmatprep.subr.mxu0 0.0
  %656 = vmatpush2.msra.mxu0 0.0
  %657 = vmatprep.subr.mxu0 0.0
  %658 = vmatpush2.msra.mxu0 0.0
  %659 = vmatprep.subr.mxu0 0.0
  %660 = vmatpush2.msra.mxu0 0.0
  %661 = vmatprep.subr.mxu0 0.0
  %662 = vmatpush2.msra.mxu0 0.0
  %663 = vmatprep.subr.mxu0 0.0
  %664 = vmatpush2.msra.mxu0 0.0
  %665 = vmatprep.subr.mxu0 0.0
  %666 = vmatpush2.msra.mxu0 0.0
  %667 = vmatprep.subr.mxu0 0.0
  %668 = vmatpush2.msra.mxu0 0.0
  %669 = vmatprep.subr.mxu0 0.0
  %670 = vmatpush2.msra.mxu0 0.0
  %671 = vmatprep.subr.mxu0 0.0
  %672 = vmatpush2.msra.mxu0 0.0
  %673 = vmatprep.subr.mxu0 0.0
  %674 = vmatpush2.msra.mxu0 0.0
  %675 = vmatprep.subr.mxu0 0.0
  %676 = vmatpush2.msra.mxu0 0.0
  %677 = vmatprep.subr.mxu0 0.0
  %678 = vmatpush2.msra.mxu0 0.0
  %679 = vmatprep.subr.mxu0 0.0
  %680 = vmatpush2.msra.mxu0 0.0
  %681 = vmatprep.subr.mxu0 0.0
  %682 = vmatpush2.msra.mxu0 0.0
  %683 = vmatprep.subr.mxu0 0.0
  %684 = vmatpush2.msra.mxu0 0.0
  %685 = vmatprep.mubr.f32.mxu0 0.0
  %686 = vmatmul.mubr.f32.gmra.mxu0 %v619
  %v687 = vpop.f32.mrf.mxu0
  %v688 = vadd.f32 0.0, %v687
  %v689 = vpop.f32.mrf.mxu0
  %690 = vdwg.mxu0
  %v692 = vsel %vm109, %v615, 0
  %694 = vmatprep.subr.mxu0 0.0
  %695 = vmatpush1.msra.mxu0 0.0
  %696 = vmatprep.subr.mxu0 0.0
  %697 = vmatpush1.msra.mxu0 0.0
  %698 = vmatprep.subr.mxu0 0.0
  %699 = vmatpush1.msra.mxu0 0.0
  %700 = vmatprep.subr.mxu0 0.0
  %701 = vmatpush1.msra.mxu0 0.0
  %702 = vmatprep.subr.mxu0 0.0
  %703 = vmatpush1.msra.mxu0 0.0
  %704 = vmatprep.subr.mxu0 0.0
  %705 = vmatpush1.msra.mxu0 0.0
  %706 = vmatprep.subr.mxu0 0.0
  %707 = vmatpush1.msra.mxu0 0.0
  %708 = vmatprep.subr.mxu0 0.0
  %709 = vmatpush1.msra.mxu0 0.0
  %710 = vmatprep.subr.mxu0 0.0
  %711 = vmatpush1.msra.mxu0 0.0
  %712 = vmatprep.subr.mxu0 0.0
  %713 = vmatpush1.msra.mxu0 0.0
  %714 = vmatprep.subr.mxu0 0.0
  %715 = vmatpush1.msra.mxu0 0.0
  %716 = vmatprep.subr.mxu0 0.0
  %717 = vmatpush1.msra.mxu0 0.0
  %718 = vmatprep.subr.mxu0 0.0
  %719 = vmatpush1.msra.mxu0 0.0
  %720 = vmatprep.subr.mxu0 0.0
  %721 = vmatpush1.msra.mxu0 0.0
  %722 = vmatprep.subr.mxu0 0.0
  %723 = vmatpush1.msra.mxu0 %v114
  %724 = vmatprep.subr.mxu0 0.0
  %725 = vmatpush1.msra.mxu0 %v19
  %726 = vmatprep.subr.mxu0 0.0
  %727 = vmatpush2.msra.mxu0 0.0
  %728 = vmatprep.subr.mxu0 0.0
  %729 = vmatpush2.msra.mxu0 0.0
  %730 = vmatprep.subr.mxu0 0.0
  %731 = vmatpush2.msra.mxu0 0.0
  %732 = vmatprep.subr.mxu0 0.0
  %733 = vmatpush2.msra.mxu0 0.0
  %734 = vmatprep.subr.mxu0 0.0
  %735 = vmatpush2.msra.mxu0 0.0
  %736 = vmatprep.subr.mxu0 0.0
  %737 = vmatpush2.msra.mxu0 0.0
  %738 = vmatprep.subr.mxu0 0.0
  %739 = vmatpush2.msra.mxu0 0.0
  %740 = vmatprep.subr.mxu0 0.0
  %741 = vmatpush2.msra.mxu0 0.0
  %742 = vmatprep.subr.mxu0 0.0
  %743 = vmatpush2.msra.mxu0 0.0
  %744 = vmatprep.subr.mxu0 0.0
  %745 = vmatpush2.msra.mxu0 0.0
  %746 = vmatprep.subr.mxu0 0.0
  %747 = vmatpush2.msra.mxu0 0.0
  %748 = vmatprep.subr.mxu0 0.0
  %749 = vmatpush2.msra.mxu0 0.0
  %750 = vmatprep.subr.mxu0 0.0
  %751 = vmatpush2.msra.mxu0 0.0
  %752 = vmatprep.subr.mxu0 0.0
  %753 = vmatpush2.msra.mxu0 0.0
  %754 = vmatprep.subr.mxu0 0.0
  %755 = vmatpush2.msra.mxu0 0.0
  %756 = vmatprep.subr.mxu0 0.0
  %757 = vmatpush2.msra.mxu0 0.0
  %758 = vmatprep.mubr.f32.mxu0 0.0
  %759 = vmatmul.mubr.f32.gmra.mxu0 %v692
  %v760 = vpop.f32.mrf.mxu0
  %v761 = vadd.f32 %v688, %v760
  %v762 = vpop.f32.mrf.mxu0
  %763 = vdwg.mxu0
  %v764 = vadd.f32 %v761, %v190
  %v765 = vxor.u32 %v764, 2147483648
  %v766 = vmul.f32 %v765, 1.442695
  %v767 = vpow.pop %v766
  %v768 = vadd.f32 %v767, 1.0
  %v769 = vrcp.pop %v768
  %v770 = vmul.f32 1.0, %v769
  %v771 = vtanh.pop %v764
  %773 = vrot.lane.b32.xlu0 %v617, 20
  %v774 = vpop.permute.xlu0 %773
  %v776 = vmul.f32 %v770, %v774
  %778 = vrot.lane.b32.xlu0 %v771, 88
  %v779 = vpop.permute.xlu0 %778
  %v781 = vmul.f32 %v770, %v779
  %783 = vrot.lane.b32.xlu0 %v781, 20
  %v784 = vpop.permute.xlu0 %783
  %v786 = vadd.f32 %v776, %v784
  %v787 = vtanh.pop %v786
  %789 = vrot.lane.b32.xlu0 %v787, 40
  %v790 = vpop.permute.xlu0 %789
  %v792 = vmul.f32 %v770, %v790
  %794 = vrot.lane.b32.xlu0 %v792, 68
  %v795 = vpop.permute.xlu0 %794
  %797 = vst.msk [vmem:[#allocation2] sm:$0x3] %vm25, %v795
  %799 = vrot.lane.b32.xlu0 %v786, 108
  %v800 = vpop.permute.xlu0 %799
  %802 = vst.msk [vmem:[#allocation3] sm:$0x3] %vm25, %v800
  %s803 = scalar_lea.vmem %s4, 6
  %804 = vst.msk [vmem:[%s803] sm:$0x3] %vm25, %v795
  %s805 = scalar_lea.vmem %s0, 8
  %v806 = vld [vmem:[%s805] sm:$0x3]
  %v807 = vld [vmem:[#allocation2] sm:$0x3]
  %v808 = vld [vmem:[#allocation3] sm:$0x3]
  %v810 = vsel %vm31, %v807, 0
  %812 = vmatprep.subr.mxu0 0.0
  %813 = vmatpush1.msra.mxu0 0.0
  %814 = vmatprep.subr.mxu0 0.0
  %815 = vmatpush1.msra.mxu0 0.0
  %816 = vmatprep.subr.mxu0 0.0
  %817 = vmatpush1.msra.mxu0 0.0
  %818 = vmatprep.subr.mxu0 0.0
  %819 = vmatpush1.msra.mxu0 0.0
  %820 = vmatprep.subr.mxu0 0.0
  %821 = vmatpush1.msra.mxu0 0.0
  %822 = vmatprep.subr.mxu0 0.0
  %823 = vmatpush1.msra.mxu0 0.0
  %824 = vmatprep.subr.mxu0 0.0
  %825 = vmatpush1.msra.mxu0 0.0
  %826 = vmatprep.subr.mxu0 0.0
  %827 = vmatpush1.msra.mxu0 0.0
  %828 = vmatprep.subr.mxu0 0.0
  %829 = vmatpush1.msra.mxu0 0.0
  %830 = vmatprep.subr.mxu0 0.0
  %831 = vmatpush1.msra.mxu0 0.0
  %832 = vmatprep.subr.mxu0 0.0
  %833 = vmatpush1.msra.mxu0 0.0
  %834 = vmatprep.subr.mxu0 0.0
  %835 = vmatpush1.msra.mxu0 0.0
  %836 = vmatprep.subr.mxu0 0.0
  %837 = vmatpush1.msra.mxu0 0.0
  %838 = vmatprep.subr.mxu0 0.0
  %839 = vmatpush1.msra.mxu0 %v37
  %840 = vmatprep.subr.mxu0 0.0
  %841 = vmatpush1.msra.mxu0 %v22
  %842 = vmatprep.subr.mxu0 0.0
  %843 = vmatpush1.msra.mxu0 %v21
  %844 = vmatprep.subr.mxu0 0.0
  %845 = vmatpush2.msra.mxu0 0.0
  %846 = vmatprep.subr.mxu0 0.0
  %847 = vmatpush2.msra.mxu0 0.0
  %848 = vmatprep.subr.mxu0 0.0
  %849 = vmatpush2.msra.mxu0 0.0
  %850 = vmatprep.subr.mxu0 0.0
  %851 = vmatpush2.msra.mxu0 0.0
  %852 = vmatprep.subr.mxu0 0.0
  %853 = vmatpush2.msra.mxu0 0.0
  %854 = vmatprep.subr.mxu0 0.0
  %855 = vmatpush2.msra.mxu0 0.0
  %856 = vmatprep.subr.mxu0 0.0
  %857 = vmatpush2.msra.mxu0 0.0
  %858 = vmatprep.subr.mxu0 0.0
  %859 = vmatpush2.msra.mxu0 0.0
  %860 = vmatprep.subr.mxu0 0.0
  %861 = vmatpush2.msra.mxu0 0.0
  %862 = vmatprep.subr.mxu0 0.0
  %863 = vmatpush2.msra.mxu0 0.0
  %864 = vmatprep.subr.mxu0 0.0
  %865 = vmatpush2.msra.mxu0 0.0
  %866 = vmatprep.subr.mxu0 0.0
  %867 = vmatpush2.msra.mxu0 0.0
  %868 = vmatprep.subr.mxu0 0.0
  %869 = vmatpush2.msra.mxu0 0.0
  %870 = vmatprep.subr.mxu0 0.0
  %871 = vmatpush2.msra.mxu0 0.0
  %872 = vmatprep.subr.mxu0 0.0
  %873 = vmatpush2.msra.mxu0 0.0
  %874 = vmatprep.subr.mxu0 0.0
  %875 = vmatpush2.msra.mxu0 0.0
  %876 = vmatprep.mubr.f32.mxu0 0.0
  %877 = vmatmul.mubr.f32.gmra.mxu0 %v810
  %v878 = vpop.f32.mrf.mxu0
  %v879 = vadd.f32 0.0, %v878
  %v880 = vpop.f32.mrf.mxu0
  %881 = vdwg.mxu0
  %v883 = vsel %vm109, %v806, 0
  %885 = vmatprep.subr.mxu0 0.0
  %886 = vmatpush1.msra.mxu0 0.0
  %887 = vmatprep.subr.mxu0 0.0
  %888 = vmatpush1.msra.mxu0 0.0
  %889 = vmatprep.subr.mxu0 0.0
  %890 = vmatpush1.msra.mxu0 0.0
  %891 = vmatprep.subr.mxu0 0.0
  %892 = vmatpush1.msra.mxu0 0.0
  %893 = vmatprep.subr.mxu0 0.0
  %894 = vmatpush1.msra.mxu0 0.0
  %895 = vmatprep.subr.mxu0 0.0
  %896 = vmatpush1.msra.mxu0 0.0
  %897 = vmatprep.subr.mxu0 0.0
  %898 = vmatpush1.msra.mxu0 0.0
  %899 = vmatprep.subr.mxu0 0.0
  %900 = vmatpush1.msra.mxu0 0.0
  %901 = vmatprep.subr.mxu0 0.0
  %902 = vmatpush1.msra.mxu0 0.0
  %903 = vmatprep.subr.mxu0 0.0
  %904 = vmatpush1.msra.mxu0 0.0
  %905 = vmatprep.subr.mxu0 0.0
  %906 = vmatpush1.msra.mxu0 0.0
  %907 = vmatprep.subr.mxu0 0.0
  %908 = vmatpush1.msra.mxu0 0.0
  %909 = vmatprep.subr.mxu0 0.0
  %910 = vmatpush1.msra.mxu0 0.0
  %911 = vmatprep.subr.mxu0 0.0
  %912 = vmatpush1.msra.mxu0 0.0
  %913 = vmatprep.subr.mxu0 0.0
  %914 = vmatpush1.msra.mxu0 %v114
  %915 = vmatprep.subr.mxu0 0.0
  %916 = vmatpush1.msra.mxu0 %v19
  %917 = vmatprep.subr.mxu0 0.0
  %918 = vmatpush2.msra.mxu0 0.0
  %919 = vmatprep.subr.mxu0 0.0
  %920 = vmatpush2.msra.mxu0 0.0
  %921 = vmatprep.subr.mxu0 0.0
  %922 = vmatpush2.msra.mxu0 0.0
  %923 = vmatprep.subr.mxu0 0.0
  %924 = vmatpush2.msra.mxu0 0.0
  %925 = vmatprep.subr.mxu0 0.0
  %926 = vmatpush2.msra.mxu0 0.0
  %927 = vmatprep.subr.mxu0 0.0
  %928 = vmatpush2.msra.mxu0 0.0
  %929 = vmatprep.subr.mxu0 0.0
  %930 = vmatpush2.msra.mxu0 0.0
  %931 = vmatprep.subr.mxu0 0.0
  %932 = vmatpush2.msra.mxu0 0.0
  %933 = vmatprep.subr.mxu0 0.0
  %934 = vmatpush2.msra.mxu0 0.0
  %935 = vmatprep.subr.mxu0 0.0
  %936 = vmatpush2.msra.mxu0 0.0
  %937 = vmatprep.subr.mxu0 0.0
  %938 = vmatpush2.msra.mxu0 0.0
  %939 = vmatprep.subr.mxu0 0.0
  %940 = vmatpush2.msra.mxu0 0.0
  %941 = vmatprep.subr.mxu0 0.0
  %942 = vmatpush2.msra.mxu0 0.0
  %943 = vmatprep.subr.mxu0 0.0
  %944 = vmatpush2.msra.mxu0 0.0
  %945 = vmatprep.subr.mxu0 0.0
  %946 = vmatpush2.msra.mxu0 0.0
  %947 = vmatprep.subr.mxu0 0.0
  %948 = vmatpush2.msra.mxu0 0.0
  %949 = vmatprep.mubr.f32.mxu0 0.0
  %950 = vmatmul.mubr.f32.gmra.mxu0 %v883
  %v951 = vpop.f32.mrf.mxu0
  %v952 = vadd.f32 %v879, %v951
  %v953 = vpop.f32.mrf.mxu0
  %954 = vdwg.mxu0
  %v955 = vadd.f32 %v952, %v190
  %v956 = vxor.u32 %v955, 2147483648
  %v957 = vmul.f32 %v956, 1.442695
  %v958 = vpow.pop %v957
  %v959 = vadd.f32 %v958, 1.0
  %v960 = vrcp.pop %v959
  %v961 = vmul.f32 1.0, %v960
  %v962 = vtanh.pop %v955
  %964 = vrot.lane.b32.xlu0 %v808, 20
  %v965 = vpop.permute.xlu0 %964
  %v967 = vmul.f32 %v961, %v965
  %969 = vrot.lane.b32.xlu0 %v962, 88
  %v970 = vpop.permute.xlu0 %969
  %v972 = vmul.f32 %v961, %v970
  %974 = vrot.lane.b32.xlu0 %v972, 20
  %v975 = vpop.permute.xlu0 %974
  %v977 = vadd.f32 %v967, %v975
  %v978 = vtanh.pop %v977
  %980 = vrot.lane.b32.xlu0 %v978, 40
  %v981 = vpop.permute.xlu0 %980
  %v983 = vmul.f32 %v961, %v981
  %985 = vrot.lane.b32.xlu0 %v983, 68
  %v986 = vpop.permute.xlu0 %985
  %988 = vst.msk [vmem:[#allocation2] sm:$0x3] %vm25, %v986
  %990 = vrot.lane.b32.xlu0 %v977, 108
  %v991 = vpop.permute.xlu0 %990
  %993 = vst.msk [vmem:[#allocation3] sm:$0x3] %vm25, %v991
  %s994 = scalar_lea.vmem %s4, 8
  %995 = vst.msk [vmem:[%s994] sm:$0x3] %vm25, %v986
  %s996 = scalar_lea.vmem %s0, 10
  %v997 = vld [vmem:[%s996] sm:$0x3]
  %v998 = vld [vmem:[#allocation2] sm:$0x3]
  %v999 = vld [vmem:[#allocation3] sm:$0x3]
  %v1001 = vsel %vm31, %v998, 0
  %1003 = vmatprep.subr.mxu0 0.0
  %1004 = vmatpush1.msra.mxu0 0.0
  %1005 = vmatprep.subr.mxu0 0.0
  %1006 = vmatpush1.msra.mxu0 0.0
  %1007 = vmatprep.subr.mxu0 0.0
  %1008 = vmatpush1.msra.mxu0 0.0
  %1009 = vmatprep.subr.mxu0 0.0
  %1010 = vmatpush1.msra.mxu0 0.0
  %1011 = vmatprep.subr.mxu0 0.0
  %1012 = vmatpush1.msra.mxu0 0.0
  %1013 = vmatprep.subr.mxu0 0.0
  %1014 = vmatpush1.msra.mxu0 0.0
  %1015 = vmatprep.subr.mxu0 0.0
  %1016 = vmatpush1.msra.mxu0 0.0
  %1017 = vmatprep.subr.mxu0 0.0
  %1018 = vmatpush1.msra.mxu0 0.0
  %1019 = vmatprep.subr.mxu0 0.0
  %1020 = vmatpush1.msra.mxu0 0.0
  %1021 = vmatprep.subr.mxu0 0.0
  %1022 = vmatpush1.msra.mxu0 0.0
  %1023 = vmatprep.subr.mxu0 0.0
  %1024 = vmatpush1.msra.mxu0 0.0
  %1025 = vmatprep.subr.mxu0 0.0
  %1026 = vmatpush1.msra.mxu0 0.0
  %1027 = vmatprep.subr.mxu0 0.0
  %1028 = vmatpush1.msra.mxu0 0.0
  %1029 = vmatprep.subr.mxu0 0.0
  %1030 = vmatpush1.msra.mxu0 %v37
  %1031 = vmatprep.subr.mxu0 0.0
  %1032 = vmatpush1.msra.mxu0 %v22
  %1033 = vmatprep.subr.mxu0 0.0
  %1034 = vmatpush1.msra.mxu0 %v21
  %1035 = vmatprep.subr.mxu0 0.0
  %1036 = vmatpush2.msra.mxu0 0.0
  %1037 = vmatprep.subr.mxu0 0.0
  %1038 = vmatpush2.msra.mxu0 0.0
  %1039 = vmatprep.subr.mxu0 0.0
  %1040 = vmatpush2.msra.mxu0 0.0
  %1041 = vmatprep.subr.mxu0 0.0
  %1042 = vmatpush2.msra.mxu0 0.0
  %1043 = vmatprep.subr.mxu0 0.0
  %1044 = vmatpush2.msra.mxu0 0.0
  %1045 = vmatprep.subr.mxu0 0.0
  %1046 = vmatpush2.msra.mxu0 0.0
  %1047 = vmatprep.subr.mxu0 0.0
  %1048 = vmatpush2.msra.mxu0 0.0
  %1049 = vmatprep.subr.mxu0 0.0
  %1050 = vmatpush2.msra.mxu0 0.0
  %1051 = vmatprep.subr.mxu0 0.0
  %1052 = vmatpush2.msra.mxu0 0.0
  %1053 = vmatprep.subr.mxu0 0.0
  %1054 = vmatpush2.msra.mxu0 0.0
  %1055 = vmatprep.subr.mxu0 0.0
  %1056 = vmatpush2.msra.mxu0 0.0
  %1057 = vmatprep.subr.mxu0 0.0
  %1058 = vmatpush2.msra.mxu0 0.0
  %1059 = vmatprep.subr.mxu0 0.0
  %1060 = vmatpush2.msra.mxu0 0.0
  %1061 = vmatprep.subr.mxu0 0.0
  %1062 = vmatpush2.msra.mxu0 0.0
  %1063 = vmatprep.subr.mxu0 0.0
  %1064 = vmatpush2.msra.mxu0 0.0
  %1065 = vmatprep.subr.mxu0 0.0
  %1066 = vmatpush2.msra.mxu0 0.0
  %1067 = vmatprep.mubr.f32.mxu0 0.0
  %1068 = vmatmul.mubr.f32.gmra.mxu0 %v1001
  %v1069 = vpop.f32.mrf.mxu0
  %v1070 = vadd.f32 0.0, %v1069
  %v1071 = vpop.f32.mrf.mxu0
  %1072 = vdwg.mxu0
  %v1074 = vsel %vm109, %v997, 0
  %1076 = vmatprep.subr.mxu0 0.0
  %1077 = vmatpush1.msra.mxu0 0.0
  %1078 = vmatprep.subr.mxu0 0.0
  %1079 = vmatpush1.msra.mxu0 0.0
  %1080 = vmatprep.subr.mxu0 0.0
  %1081 = vmatpush1.msra.mxu0 0.0
  %1082 = vmatprep.subr.mxu0 0.0
  %1083 = vmatpush1.msra.mxu0 0.0
  %1084 = vmatprep.subr.mxu0 0.0
  %1085 = vmatpush1.msra.mxu0 0.0
  %1086 = vmatprep.subr.mxu0 0.0
  %1087 = vmatpush1.msra.mxu0 0.0
  %1088 = vmatprep.subr.mxu0 0.0
  %1089 = vmatpush1.msra.mxu0 0.0
  %1090 = vmatprep.subr.mxu0 0.0
  %1091 = vmatpush1.msra.mxu0 0.0
  %1092 = vmatprep.subr.mxu0 0.0
  %1093 = vmatpush1.msra.mxu0 0.0
  %1094 = vmatprep.subr.mxu0 0.0
  %1095 = vmatpush1.msra.mxu0 0.0
  %1096 = vmatprep.subr.mxu0 0.0
  %1097 = vmatpush1.msra.mxu0 0.0
  %1098 = vmatprep.subr.mxu0 0.0
  %1099 = vmatpush1.msra.mxu0 0.0
  %1100 = vmatprep.subr.mxu0 0.0
  %1101 = vmatpush1.msra.mxu0 0.0
  %1102 = vmatprep.subr.mxu0 0.0
  %1103 = vmatpush1.msra.mxu0 0.0
  %1104 = vmatprep.subr.mxu0 0.0
  %1105 = vmatpush1.msra.mxu0 %v114
  %1106 = vmatprep.subr.mxu0 0.0
  %1107 = vmatpush1.msra.mxu0 %v19
  %1108 = vmatprep.subr.mxu0 0.0
  %1109 = vmatpush2.msra.mxu0 0.0
  %1110 = vmatprep.subr.mxu0 0.0
  %1111 = vmatpush2.msra.mxu0 0.0
  %1112 = vmatprep.subr.mxu0 0.0
  %1113 = vmatpush2.msra.mxu0 0.0
  %1114 = vmatprep.subr.mxu0 0.0
  %1115 = vmatpush2.msra.mxu0 0.0
  %1116 = vmatprep.subr.mxu0 0.0
  %1117 = vmatpush2.msra.mxu0 0.0
  %1118 = vmatprep.subr.mxu0 0.0
  %1119 = vmatpush2.msra.mxu0 0.0
  %1120 = vmatprep.subr.mxu0 0.0
  %1121 = vmatpush2.msra.mxu0 0.0
  %1122 = vmatprep.subr.mxu0 0.0
  %1123 = vmatpush2.msra.mxu0 0.0
  %1124 = vmatprep.subr.mxu0 0.0
  %1125 = vmatpush2.msra.mxu0 0.0
  %1126 = vmatprep.subr.mxu0 0.0
  %1127 = vmatpush2.msra.mxu0 0.0
  %1128 = vmatprep.subr.mxu0 0.0
  %1129 = vmatpush2.msra.mxu0 0.0
  %1130 = vmatprep.subr.mxu0 0.0
  %1131 = vmatpush2.msra.mxu0 0.0
  %1132 = vmatprep.subr.mxu0 0.0
  %1133 = vmatpush2.msra.mxu0 0.0
  %1134 = vmatprep.subr.mxu0 0.0
  %1135 = vmatpush2.msra.mxu0 0.0
  %1136 = vmatprep.subr.mxu0 0.0
  %1137 = vmatpush2.msra.mxu0 0.0
  %1138 = vmatprep.subr.mxu0 0.0
  %1139 = vmatpush2.msra.mxu0 0.0
  %1140 = vmatprep.mubr.f32.mxu0 0.0
  %1141 = vmatmul.mubr.f32.gmra.mxu0 %v1074
  %v1142 = vpop.f32.mrf.mxu0
  %v1143 = vadd.f32 %v1070, %v1142
  %v1144 = vpop.f32.mrf.mxu0
  %1145 = vdwg.mxu0
  %v1146 = vadd.f32 %v1143, %v190
  %v1147 = vxor.u32 %v1146, 2147483648
  %v1148 = vmul.f32 %v1147, 1.442695
  %v1149 = vpow.pop %v1148
  %v1150 = vadd.f32 %v1149, 1.0
  %v1151 = vrcp.pop %v1150
  %v1152 = vmul.f32 1.0, %v1151
  %v1153 = vtanh.pop %v1146
  %1155 = vrot.lane.b32.xlu0 %v999, 20
  %v1156 = vpop.permute.xlu0 %1155
  %v1158 = vmul.f32 %v1152, %v1156
  %1160 = vrot.lane.b32.xlu0 %v1153, 88
  %v1161 = vpop.permute.xlu0 %1160
  %v1163 = vmul.f32 %v1152, %v1161
  %1165 = vrot.lane.b32.xlu0 %v1163, 20
  %v1166 = vpop.permute.xlu0 %1165
  %v1168 = vadd.f32 %v1158, %v1166
  %v1169 = vtanh.pop %v1168
  %1171 = vrot.lane.b32.xlu0 %v1169, 40
  %v1172 = vpop.permute.xlu0 %1171
  %v1174 = vmul.f32 %v1152, %v1172
  %1176 = vrot.lane.b32.xlu0 %v1174, 68
  %v1177 = vpop.permute.xlu0 %1176
  %1179 = vst.msk [vmem:[#allocation2] sm:$0x3] %vm25, %v1177
  %1181 = vrot.lane.b32.xlu0 %v1168, 108
  %v1182 = vpop.permute.xlu0 %1181
  %1184 = vst.msk [vmem:[#allocation3] sm:$0x3] %vm25, %v1182
  %s1185 = scalar_lea.vmem %s4, 10
  %1186 = vst.msk [vmem:[%s1185] sm:$0x3] %vm25, %v1177
  %s1187 = scalar_lea.vmem %s0, 12
  %v1188 = vld [vmem:[%s1187] sm:$0x3]
  %v1189 = vld [vmem:[#allocation2] sm:$0x3]
  %v1190 = vld [vmem:[#allocation3] sm:$0x3]
  %v1192 = vsel %vm31, %v1189, 0
  %1194 = vmatprep.subr.mxu0 0.0
  %1195 = vmatpush1.msra.mxu0 0.0
  %1196 = vmatprep.subr.mxu0 0.0
  %1197 = vmatpush1.msra.mxu0 0.0
  %1198 = vmatprep.subr.mxu0 0.0
  %1199 = vmatpush1.msra.mxu0 0.0
  %1200 = vmatprep.subr.mxu0 0.0
  %1201 = vmatpush1.msra.mxu0 0.0
  %1202 = vmatprep.subr.mxu0 0.0
  %1203 = vmatpush1.msra.mxu0 0.0
  %1204 = vmatprep.subr.mxu0 0.0
  %1205 = vmatpush1.msra.mxu0 0.0
  %1206 = vmatprep.subr.mxu0 0.0
  %1207 = vmatpush1.msra.mxu0 0.0
  %1208 = vmatprep.subr.mxu0 0.0
  %1209 = vmatpush1.msra.mxu0 0.0
  %1210 = vmatprep.subr.mxu0 0.0
  %1211 = vmatpush1.msra.mxu0 0.0
  %1212 = vmatprep.subr.mxu0 0.0
  %1213 = vmatpush1.msra.mxu0 0.0
  %1214 = vmatprep.subr.mxu0 0.0
  %1215 = vmatpush1.msra.mxu0 0.0
  %1216 = vmatprep.subr.mxu0 0.0
  %1217 = vmatpush1.msra.mxu0 0.0
  %1218 = vmatprep.subr.mxu0 0.0
  %1219 = vmatpush1.msra.mxu0 0.0
  %1220 = vmatprep.subr.mxu0 0.0
  %1221 = vmatpush1.msra.mxu0 %v37
  %1222 = vmatprep.subr.mxu0 0.0
  %1223 = vmatpush1.msra.mxu0 %v22
  %1224 = vmatprep.subr.mxu0 0.0
  %1225 = vmatpush1.msra.mxu0 %v21
  %1226 = vmatprep.subr.mxu0 0.0
  %1227 = vmatpush2.msra.mxu0 0.0
  %1228 = vmatprep.subr.mxu0 0.0
  %1229 = vmatpush2.msra.mxu0 0.0
  %1230 = vmatprep.subr.mxu0 0.0
  %1231 = vmatpush2.msra.mxu0 0.0
  %1232 = vmatprep.subr.mxu0 0.0
  %1233 = vmatpush2.msra.mxu0 0.0
  %1234 = vmatprep.subr.mxu0 0.0
  %1235 = vmatpush2.msra.mxu0 0.0
  %1236 = vmatprep.subr.mxu0 0.0
  %1237 = vmatpush2.msra.mxu0 0.0
  %1238 = vmatprep.subr.mxu0 0.0
  %1239 = vmatpush2.msra.mxu0 0.0
  %1240 = vmatprep.subr.mxu0 0.0
  %1241 = vmatpush2.msra.mxu0 0.0
  %1242 = vmatprep.subr.mxu0 0.0
  %1243 = vmatpush2.msra.mxu0 0.0
  %1244 = vmatprep.subr.mxu0 0.0
  %1245 = vmatpush2.msra.mxu0 0.0
  %1246 = vmatprep.subr.mxu0 0.0
  %1247 = vmatpush2.msra.mxu0 0.0
  %1248 = vmatprep.subr.mxu0 0.0
  %1249 = vmatpush2.msra.mxu0 0.0
  %1250 = vmatprep.subr.mxu0 0.0
  %1251 = vmatpush2.msra.mxu0 0.0
  %1252 = vmatprep.subr.mxu0 0.0
  %1253 = vmatpush2.msra.mxu0 0.0
  %1254 = vmatprep.subr.mxu0 0.0
  %1255 = vmatpush2.msra.mxu0 0.0
  %1256 = vmatprep.subr.mxu0 0.0
  %1257 = vmatpush2.msra.mxu0 0.0
  %1258 = vmatprep.mubr.f32.mxu0 0.0
  %1259 = vmatmul.mubr.f32.gmra.mxu0 %v1192
  %v1260 = vpop.f32.mrf.mxu0
  %v1261 = vadd.f32 0.0, %v1260
  %v1262 = vpop.f32.mrf.mxu0
  %1263 = vdwg.mxu0
  %v1265 = vsel %vm109, %v1188, 0
  %1267 = vmatprep.subr.mxu0 0.0
  %1268 = vmatpush1.msra.mxu0 0.0
  %1269 = vmatprep.subr.mxu0 0.0
  %1270 = vmatpush1.msra.mxu0 0.0
  %1271 = vmatprep.subr.mxu0 0.0
  %1272 = vmatpush1.msra.mxu0 0.0
  %1273 = vmatprep.subr.mxu0 0.0
  %1274 = vmatpush1.msra.mxu0 0.0
  %1275 = vmatprep.subr.mxu0 0.0
  %1276 = vmatpush1.msra.mxu0 0.0
  %1277 = vmatprep.subr.mxu0 0.0
  %1278 = vmatpush1.msra.mxu0 0.0
  %1279 = vmatprep.subr.mxu0 0.0
  %1280 = vmatpush1.msra.mxu0 0.0
  %1281 = vmatprep.subr.mxu0 0.0
  %1282 = vmatpush1.msra.mxu0 0.0
  %1283 = vmatprep.subr.mxu0 0.0
  %1284 = vmatpush1.msra.mxu0 0.0
  %1285 = vmatprep.subr.mxu0 0.0
  %1286 = vmatpush1.msra.mxu0 0.0
  %1287 = vmatprep.subr.mxu0 0.0
  %1288 = vmatpush1.msra.mxu0 0.0
  %1289 = vmatprep.subr.mxu0 0.0
  %1290 = vmatpush1.msra.mxu0 0.0
  %1291 = vmatprep.subr.mxu0 0.0
  %1292 = vmatpush1.msra.mxu0 0.0
  %1293 = vmatprep.subr.mxu0 0.0
  %1294 = vmatpush1.msra.mxu0 0.0
  %1295 = vmatprep.subr.mxu0 0.0
  %1296 = vmatpush1.msra.mxu0 %v114
  %1297 = vmatprep.subr.mxu0 0.0
  %1298 = vmatpush1.msra.mxu0 %v19
  %1299 = vmatprep.subr.mxu0 0.0
  %1300 = vmatpush2.msra.mxu0 0.0
  %1301 = vmatprep.subr.mxu0 0.0
  %1302 = vmatpush2.msra.mxu0 0.0
  %1303 = vmatprep.subr.mxu0 0.0
  %1304 = vmatpush2.msra.mxu0 0.0
  %1305 = vmatprep.subr.mxu0 0.0
  %1306 = vmatpush2.msra.mxu0 0.0
  %1307 = vmatprep.subr.mxu0 0.0
  %1308 = vmatpush2.msra.mxu0 0.0
  %1309 = vmatprep.subr.mxu0 0.0
  %1310 = vmatpush2.msra.mxu0 0.0
  %1311 = vmatprep.subr.mxu0 0.0
  %1312 = vmatpush2.msra.mxu0 0.0
  %1313 = vmatprep.subr.mxu0 0.0
  %1314 = vmatpush2.msra.mxu0 0.0
  %1315 = vmatprep.subr.mxu0 0.0
  %1316 = vmatpush2.msra.mxu0 0.0
  %1317 = vmatprep.subr.mxu0 0.0
  %1318 = vmatpush2.msra.mxu0 0.0
  %1319 = vmatprep.subr.mxu0 0.0
  %1320 = vmatpush2.msra.mxu0 0.0
  %1321 = vmatprep.subr.mxu0 0.0
  %1322 = vmatpush2.msra.mxu0 0.0
  %1323 = vmatprep.subr.mxu0 0.0
  %1324 = vmatpush2.msra.mxu0 0.0
  %1325 = vmatprep.subr.mxu0 0.0
  %1326 = vmatpush2.msra.mxu0 0.0
  %1327 = vmatprep.subr.mxu0 0.0
  %1328 = vmatpush2.msra.mxu0 0.0
  %1329 = vmatprep.subr.mxu0 0.0
  %1330 = vmatpush2.msra.mxu0 0.0
  %1331 = vmatprep.mubr.f32.mxu0 0.0
  %1332 = vmatmul.mubr.f32.gmra.mxu0 %v1265
  %v1333 = vpop.f32.mrf.mxu0
  %v1334 = vadd.f32 %v1261, %v1333
  %v1335 = vpop.f32.mrf.mxu0
  %1336 = vdwg.mxu0
  %v1337 = vadd.f32 %v1334, %v190
  %v1338 = vxor.u32 %v1337, 2147483648
  %v1339 = vmul.f32 %v1338, 1.442695
  %v1340 = vpow.pop %v1339
  %v1341 = vadd.f32 %v1340, 1.0
  %v1342 = vrcp.pop %v1341
  %v1343 = vmul.f32 1.0, %v1342
  %v1344 = vtanh.pop %v1337
  %1346 = vrot.lane.b32.xlu0 %v1190, 20
  %v1347 = vpop.permute.xlu0 %1346
  %v1349 = vmul.f32 %v1343, %v1347
  %1351 = vrot.lane.b32.xlu0 %v1344, 88
  %v1352 = vpop.permute.xlu0 %1351
  %v1354 = vmul.f32 %v1343, %v1352
  %1356 = vrot.lane.b32.xlu0 %v1354, 20
  %v1357 = vpop.permute.xlu0 %1356
  %v1359 = vadd.f32 %v1349, %v1357
  %v1360 = vtanh.pop %v1359
  %1362 = vrot.lane.b32.xlu0 %v1360, 40
  %v1363 = vpop.permute.xlu0 %1362
  %v1365 = vmul.f32 %v1343, %v1363
  %1367 = vrot.lane.b32.xlu0 %v1365, 68
  %v1368 = vpop.permute.xlu0 %1367
  %1370 = vst.msk [vmem:[#allocation2] sm:$0x3] %vm25, %v1368
  %1372 = vrot.lane.b32.xlu0 %v1359, 108
  %v1373 = vpop.permute.xlu0 %1372
  %1375 = vst.msk [vmem:[#allocation3] sm:$0x3] %vm25, %v1373
  %s1376 = scalar_lea.vmem %s4, 12
  %1377 = vst.msk [vmem:[%s1376] sm:$0x3] %vm25, %v1368
  %s1378 = scalar_lea.vmem %s0, 14
  %v1379 = vld [vmem:[%s1378] sm:$0x3]
  %v1380 = vld [vmem:[#allocation2] sm:$0x3]
  %v1381 = vld [vmem:[#allocation3] sm:$0x3]
  %v1383 = vsel %vm31, %v1380, 0
  %1385 = vmatprep.subr.mxu0 0.0
  %1386 = vmatpush1.msra.mxu0 0.0
  %1387 = vmatprep.subr.mxu0 0.0
  %1388 = vmatpush1.msra.mxu0 0.0
  %1389 = vmatprep.subr.mxu0 0.0
  %1390 = vmatpush1.msra.mxu0 0.0
  %1391 = vmatprep.subr.mxu0 0.0
  %1392 = vmatpush1.msra.mxu0 0.0
  %1393 = vmatprep.subr.mxu0 0.0
  %1394 = vmatpush1.msra.mxu0 0.0
  %1395 = vmatprep.subr.mxu0 0.0
  %1396 = vmatpush1.msra.mxu0 0.0
  %1397 = vmatprep.subr.mxu0 0.0
  %1398 = vmatpush1.msra.mxu0 0.0
  %1399 = vmatprep.subr.mxu0 0.0
  %1400 = vmatpush1.msra.mxu0 0.0
  %1401 = vmatprep.subr.mxu0 0.0
  %1402 = vmatpush1.msra.mxu0 0.0
  %1403 = vmatprep.subr.mxu0 0.0
  %1404 = vmatpush1.msra.mxu0 0.0
  %1405 = vmatprep.subr.mxu0 0.0
  %1406 = vmatpush1.msra.mxu0 0.0
  %1407 = vmatprep.subr.mxu0 0.0
  %1408 = vmatpush1.msra.mxu0 0.0
  %1409 = vmatprep.subr.mxu0 0.0
  %1410 = vmatpush1.msra.mxu0 0.0
  %1411 = vmatprep.subr.mxu0 0.0
  %1412 = vmatpush1.msra.mxu0 %v37
  %1413 = vmatprep.subr.mxu0 0.0
  %1414 = vmatpush1.msra.mxu0 %v22
  %1415 = vmatprep.subr.mxu0 0.0
  %1416 = vmatpush1.msra.mxu0 %v21
  %1417 = vmatprep.subr.mxu0 0.0
  %1418 = vmatpush2.msra.mxu0 0.0
  %1419 = vmatprep.subr.mxu0 0.0
  %1420 = vmatpush2.msra.mxu0 0.0
  %1421 = vmatprep.subr.mxu0 0.0
  %1422 = vmatpush2.msra.mxu0 0.0
  %1423 = vmatprep.subr.mxu0 0.0
  %1424 = vmatpush2.msra.mxu0 0.0
  %1425 = vmatprep.subr.mxu0 0.0
  %1426 = vmatpush2.msra.mxu0 0.0
  %1427 = vmatprep.subr.mxu0 0.0
  %1428 = vmatpush2.msra.mxu0 0.0
  %1429 = vmatprep.subr.mxu0 0.0
  %1430 = vmatpush2.msra.mxu0 0.0
  %1431 = vmatprep.subr.mxu0 0.0
  %1432 = vmatpush2.msra.mxu0 0.0
  %1433 = vmatprep.subr.mxu0 0.0
  %1434 = vmatpush2.msra.mxu0 0.0
  %1435 = vmatprep.subr.mxu0 0.0
  %1436 = vmatpush2.msra.mxu0 0.0
  %1437 = vmatprep.subr.mxu0 0.0
  %1438 = vmatpush2.msra.mxu0 0.0
  %1439 = vmatprep.subr.mxu0 0.0
  %1440 = vmatpush2.msra.mxu0 0.0
  %1441 = vmatprep.subr.mxu0 0.0
  %1442 = vmatpush2.msra.mxu0 0.0
  %1443 = vmatprep.subr.mxu0 0.0
  %1444 = vmatpush2.msra.mxu0 0.0
  %1445 = vmatprep.subr.mxu0 0.0
  %1446 = vmatpush2.msra.mxu0 0.0
  %1447 = vmatprep.subr.mxu0 0.0
  %1448 = vmatpush2.msra.mxu0 0.0
  %1449 = vmatprep.mubr.f32.mxu0 0.0
  %1450 = vmatmul.mubr.f32.gmra.mxu0 %v1383
  %v1451 = vpop.f32.mrf.mxu0
  %v1452 = vadd.f32 0.0, %v1451
  %v1453 = vpop.f32.mrf.mxu0
  %1454 = vdwg.mxu0
  %v1456 = vsel %vm109, %v1379, 0
  %1458 = vmatprep.subr.mxu0 0.0
  %1459 = vmatpush1.msra.mxu0 0.0
  %1460 = vmatprep.subr.mxu0 0.0
  %1461 = vmatpush1.msra.mxu0 0.0
  %1462 = vmatprep.subr.mxu0 0.0
  %1463 = vmatpush1.msra.mxu0 0.0
  %1464 = vmatprep.subr.mxu0 0.0
  %1465 = vmatpush1.msra.mxu0 0.0
  %1466 = vmatprep.subr.mxu0 0.0
  %1467 = vmatpush1.msra.mxu0 0.0
  %1468 = vmatprep.subr.mxu0 0.0
  %1469 = vmatpush1.msra.mxu0 0.0
  %1470 = vmatprep.subr.mxu0 0.0
  %1471 = vmatpush1.msra.mxu0 0.0
  %1472 = vmatprep.subr.mxu0 0.0
  %1473 = vmatpush1.msra.mxu0 0.0
  %1474 = vmatprep.subr.mxu0 0.0
  %1475 = vmatpush1.msra.mxu0 0.0
  %1476 = vmatprep.subr.mxu0 0.0
  %1477 = vmatpush1.msra.mxu0 0.0
  %1478 = vmatprep.subr.mxu0 0.0
  %1479 = vmatpush1.msra.mxu0 0.0
  %1480 = vmatprep.subr.mxu0 0.0
  %1481 = vmatpush1.msra.mxu0 0.0
  %1482 = vmatprep.subr.mxu0 0.0
  %1483 = vmatpush1.msra.mxu0 0.0
  %1484 = vmatprep.subr.mxu0 0.0
  %1485 = vmatpush1.msra.mxu0 0.0
  %1486 = vmatprep.subr.mxu0 0.0
  %1487 = vmatpush1.msra.mxu0 %v114
  %1488 = vmatprep.subr.mxu0 0.0
  %1489 = vmatpush1.msra.mxu0 %v19
  %1490 = vmatprep.subr.mxu0 0.0
  %1491 = vmatpush2.msra.mxu0 0.0
  %1492 = vmatprep.subr.mxu0 0.0
  %1493 = vmatpush2.msra.mxu0 0.0
  %1494 = vmatprep.subr.mxu0 0.0
  %1495 = vmatpush2.msra.mxu0 0.0
  %1496 = vmatprep.subr.mxu0 0.0
  %1497 = vmatpush2.msra.mxu0 0.0
  %1498 = vmatprep.subr.mxu0 0.0
  %1499 = vmatpush2.msra.mxu0 0.0
  %1500 = vmatprep.subr.mxu0 0.0
  %1501 = vmatpush2.msra.mxu0 0.0
  %1502 = vmatprep.subr.mxu0 0.0
  %1503 = vmatpush2.msra.mxu0 0.0
  %1504 = vmatprep.subr.mxu0 0.0
  %1505 = vmatpush2.msra.mxu0 0.0
  %1506 = vmatprep.subr.mxu0 0.0
  %1507 = vmatpush2.msra.mxu0 0.0
  %1508 = vmatprep.subr.mxu0 0.0
  %1509 = vmatpush2.msra.mxu0 0.0
  %1510 = vmatprep.subr.mxu0 0.0
  %1511 = vmatpush2.msra.mxu0 0.0
  %1512 = vmatprep.subr.mxu0 0.0
  %1513 = vmatpush2.msra.mxu0 0.0
  %1514 = vmatprep.subr.mxu0 0.0
  %1515 = vmatpush2.msra.mxu0 0.0
  %1516 = vmatprep.subr.mxu0 0.0
  %1517 = vmatpush2.msra.mxu0 0.0
  %1518 = vmatprep.subr.mxu0 0.0
  %1519 = vmatpush2.msra.mxu0 0.0
  %1520 = vmatprep.subr.mxu0 0.0
  %1521 = vmatpush2.msra.mxu0 0.0
  %1522 = vmatprep.mubr.f32.mxu0 0.0
  %1523 = vmatmul.mubr.f32.gmra.mxu0 %v1456
  %v1524 = vpop.f32.mrf.mxu0
  %v1525 = vadd.f32 %v1452, %v1524
  %v1526 = vpop.f32.mrf.mxu0
  %1527 = vdwg.mxu0
  %v1528 = vadd.f32 %v1525, %v190
  %v1529 = vxor.u32 %v1528, 2147483648
  %v1530 = vmul.f32 %v1529, 1.442695
  %v1531 = vpow.pop %v1530
  %v1532 = vadd.f32 %v1531, 1.0
  %v1533 = vrcp.pop %v1532
  %v1534 = vmul.f32 1.0, %v1533
  %v1535 = vtanh.pop %v1528
  %1537 = vrot.lane.b32.xlu0 %v1381, 20
  %v1538 = vpop.permute.xlu0 %1537
  %v1540 = vmul.f32 %v1534, %v1538
  %1542 = vrot.lane.b32.xlu0 %v1535, 88
  %v1543 = vpop.permute.xlu0 %1542
  %v1545 = vmul.f32 %v1534, %v1543
  %1547 = vrot.lane.b32.xlu0 %v1545, 20
  %v1548 = vpop.permute.xlu0 %1547
  %v1550 = vadd.f32 %v1540, %v1548
  %v1551 = vtanh.pop %v1550
  %1553 = vrot.lane.b32.xlu0 %v1551, 40
  %v1554 = vpop.permute.xlu0 %1553
  %v1556 = vmul.f32 %v1534, %v1554
  %1558 = vrot.lane.b32.xlu0 %v1556, 68
  %v1559 = vpop.permute.xlu0 %1558
  %1561 = vst.msk [vmem:[#allocation2] sm:$0x3] %vm25, %v1559
  %1563 = vrot.lane.b32.xlu0 %v1550, 108
  %v1564 = vpop.permute.xlu0 %1563
  %1566 = vst.msk [vmem:[#allocation3] sm:$0x3] %vm25, %v1564
  %s1567 = scalar_lea.vmem %s4, 14
  %1568 = vst.msk [vmem:[%s1567] sm:$0x3] %vm25, %v1559
  %v1569 = vld [vmem:[#allocation2] sm:$0x3]
  %1570 = vst.msk [vmem:[%s5] sm:$0x3] %vm25, %v1569
  // Predicated region
  $region18: #{dcn_forward.4} parent=0 // pred_check
    _
  $region19: #{dcn_forward.4} parent=0 // pred_check_branch
    %1572 = sbr.rel (0) target = $region21
  $region20: #{dcn_forward.4} parent=0 // pred_region
    _
  $region21: #{dcn_forward.4} parent=0 // pred_fallthru
    _
  // Predicated region
  $region22: #{dcn_forward.4} parent=0 // pred_check
    _
  $region23: #{dcn_forward.4} parent=0 // pred_check_branch
    %1574 = sbr.rel (0) target = $region25
  $region24: #{dcn_forward.4} parent=0 // pred_region
    _
  $region25: #{dcn_forward.4} parent=0 // pred_fallthru
    _
  // Predicated region
  $region26: #{dcn_forward.4} parent=0 // pred_check
    _
  $region27: #{dcn_forward.4} parent=0 // pred_check_branch
    %1576 = sbr.rel (0) target = $region29
  $region28: #{dcn_forward.4} parent=0 // pred_region
    _
  $region29: #{dcn_forward.4} parent=0 // pred_fallthru
    _
  // Predicated region
  $region30: #{dcn_forward.4} parent=0 // pred_check
    _
  $region31: #{dcn_forward.4} parent=0 // pred_check_branch
    %1578 = sbr.rel (0) target = $region33
  $region32: #{dcn_forward.4} parent=0 // pred_region
    _
  $region33: #{dcn_forward.4} parent=0 // pred_fallthru
    _

// kernel: dcn_forward.7
$region0: #{dcn_forward.7}
  #allocation0 [shape = 'u32[]', space=smem, size = 0x4, offset = 0x4, fixed_abs, tag = 'smem constant byte address 0x4 - core index']
  #allocation1 [shape = 'u32[144,128]{1,0:T(1,128)}', space=vmem, size = 0x12000, scoped, tag = 'internal scratch']
  %s0 = inlined_call_operand.vmem [shape: f32[2,16,32], index: 0, kind: input, shape index: {}]
  %s1 = inlined_call_operand.vmem [shape: f32[2,8,32], index: 1, kind: input, shape index: {}]
  %s2 = inlined_call_operand.vmem [shape: f32[2,1,16], index: 2, kind: input, shape index: {}]
  %s3 = inlined_call_operand.vmem [shape: f32[2,1,8], index: 3, kind: input, shape index: {}]
  %s4 = inlined_call_operand.vmem [shape: f32[2,1,32], index: 4, kind: input, shape index: {}]
  %s5 = inlined_call_operand.vmem [shape: f32[2,1,32], index: 5, kind: input, shape index: {}]
  %s6 = inlined_call_operand.vmem [shape: f32[2,32,10], index: 6, kind: input, shape index: {}]
  %s7 = inlined_call_operand.vmem [shape: f32[1,1,10], index: 7, kind: input, shape index: {}]
  %s8 = inlined_call_operand.hbm [shape: f32[2,1,10], index: 8, kind: output, shape index: {}]
  %s9 = sld [smem:[#allocation0]]
  $region42: #{dcn_forward.7} parent=0
    _
  %s11 = ssub.s32 1, %s9
  %s12 = scalar_select 0, %s11, %s9
  $region1: #{dcn_forward.7} parent=0
    #allocation2 [shape = 'u8[1024]{0}', space=vmem, size = 0x400, scoped, tag = 'output window, operand 0, single buffered']
    #allocation3 [shape = 's32[1]{0}', space=sflag, size = 0x4, scoped, tag = 'scoped memory for dcn_forward.7']
    %13 = vsyncpa [#allocation3], 0
    // Predicated region
    $region2: #{dcn_forward.7} parent=1 // pred_check
      _
    $region3: #{dcn_forward.7} parent=1 // pred_check_branch
      %15 = sbr.rel (0) target = $region5
    $region4: #{dcn_forward.7} parent=1 // pred_region
      _
    $region5: #{dcn_forward.7} parent=1 // pred_fallthru
      _
    // Predicated region
    $region6: #{dcn_forward.7} parent=1 // pred_check
      _
    $region7: #{dcn_forward.7} parent=1 // pred_check_branch
      %17 = sbr.rel (0) target = $region9
    $region8: #{dcn_forward.7} parent=1 // pred_region
      _
    $region9: #{dcn_forward.7} parent=1 // pred_fallthru
      _
    // Predicated region
    $region10: #{dcn_forward.7} parent=1 // pred_check
      _
    $region11: #{dcn_forward.7} parent=1 // pred_check_branch
      %19 = sbr.rel (0) target = $region13
    $region12: #{dcn_forward.7} parent=1 // pred_region
      _
    $region13: #{dcn_forward.7} parent=1 // pred_fallthru
      _
    // Predicated region
    $region14: #{dcn_forward.7} parent=1 // pred_check
      _
    $region15: #{dcn_forward.7} parent=1 // pred_check_branch
      %21 = sbr.rel (0) target = $region17
    $region16: #{dcn_forward.7} parent=1 // pred_region
      _
    $region17: #{dcn_forward.7} parent=1 // pred_fallthru
      _
    // Predicated region
    $region18: #{dcn_forward.7} parent=1 // pred_check
      _
    $region19: #{dcn_forward.7} parent=1 // pred_check_branch
      %23 = sbr.rel (0) target = $region21
    $region20: #{dcn_forward.7} parent=1 // pred_region
      _
    $region21: #{dcn_forward.7} parent=1 // pred_fallthru
      _
    // Predicated region
    $region22: #{dcn_forward.7} parent=1 // pred_check
      _
    $region23: #{dcn_forward.7} parent=1 // pred_check_branch
      %25 = sbr.rel (0) target = $region25
    $region24: #{dcn_forward.7} parent=1 // pred_region
      _
    $region25: #{dcn_forward.7} parent=1 // pred_fallthru
      _
    // Predicated region
    $region26: #{dcn_forward.7} parent=1 // pred_check
      _
    $region27: #{dcn_forward.7} parent=1 // pred_check_branch
      %27 = sbr.rel (0) target = $region29
    $region28: #{dcn_forward.7} parent=1 // pred_region
      _
    $region29: #{dcn_forward.7} parent=1 // pred_fallthru
      _
    // Predicated region
    $region30: #{dcn_forward.7} parent=1 // pred_check
      _
    $region31: #{dcn_forward.7} parent=1 // pred_check_branch
      %29 = sbr.rel (0) target = $region33
    $region32: #{dcn_forward.7} parent=1 // pred_region
      _
    $region33: #{dcn_forward.7} parent=1 // pred_fallthru
      _
    %v30 = vld [vmem:[%s0] sm:$0xff]
    %v31 = vld [vmem:[%s0 + $0x8] sm:$0xff]
    %v32 = vld [vmem:[%s0 + $0x10] sm:$0xff]
    %v33 = vld [vmem:[%s0 + $0x18] sm:$0xff]
    %v34 = vld [vmem:[%s1] sm:$0xff]
    %v35 = vld [vmem:[%s1 + $0x8] sm:$0xff]
    %v36 = vld [vmem:[%s2] sm:$0x1]
    %v37 = vld [vmem:[%s2 + $0x1] sm:$0x1]
    %v38 = vld [vmem:[%s3] sm:$0x1]
    %v39 = vld [vmem:[%s3 + $0x1] sm:$0x1]
    %v40 = vld [vmem:[%s4] sm:$0x1]
    %v41 = vld [vmem:[%s4 + $0x1] sm:$0x1]
    %vm42 = vcmask 261120
    %v44 = vsel %vm42, %v40, 0
    %v47 = vsel %vm42, %v30, 0
    %v50 = vsel %vm42, %v31, 0
    %52 = vmatprep.subr.mxu0 0.0
    %53 = vmatpush1.xpose.msra.mxu0 0.0
    %54 = vmatprep.subr.mxu0 0.0
    %55 = vmatpush1.xpose.msra.mxu0 0.0
    %56 = vmatprep.subr.mxu0 0.0
    %57 = vmatpush1.xpose.msra.mxu0 0.0
    %58 = vmatprep.subr.mxu0 0.0
    %59 = vmatpush1.xpose.msra.mxu0 0.0
    %60 = vmatprep.subr.mxu0 0.0
    %61 = vmatpush1.xpose.msra.mxu0 0.0
    %62 = vmatprep.subr.mxu0 0.0
    %63 = vmatpush1.xpose.msra.mxu0 0.0
    %64 = vmatprep.subr.mxu0 0.0
    %65 = vmatpush1.xpose.msra.mxu0 0.0
    %66 = vmatprep.subr.mxu0 0.0
    %67 = vmatpush1.xpose.msra.mxu0 0.0
    %68 = vmatprep.subr.mxu0 0.0
    %69 = vmatpush1.xpose.msra.mxu0 0.0
    %70 = vmatprep.subr.mxu0 0.0
    %71 = vmatpush1.xpose.msra.mxu0 0.0
    %72 = vmatprep.subr.mxu0 0.0
    %73 = vmatpush1.xpose.msra.mxu0 0.0
    %74 = vmatprep.subr.mxu0 0.0
    %75 = vmatpush1.xpose.msra.mxu0 0.0
    %76 = vmatprep.subr.mxu0 0.0
    %77 = vmatpush1.xpose.msra.mxu0 0.0
    %78 = vmatprep.subr.mxu0 0.0
    %79 = vmatpush1.xpose.msra.mxu0 0.0
    %80 = vmatprep.subr.mxu0 0.0
    %81 = vmatpush1.xpose.msra.mxu0 %v50
    %82 = vmatprep.subr.mxu0 0.0
    %83 = vmatpush1.xpose.msra.mxu0 %v47
    %84 = vmatprep.subr.mxu0 0.0
    %85 = vmatpush2.xpose.msra.mxu0 0.0
    %86 = vmatprep.subr.mxu0 0.0
    %87 = vmatpush2.xpose.msra.mxu0 0.0
    %88 = vmatprep.subr.mxu0 0.0
    %89 = vmatpush2.xpose.msra.mxu0 0.0
    %90 = vmatprep.subr.mxu0 0.0
    %91 = vmatpush2.xpose.msra.mxu0 0.0
    %92 = vmatprep.subr.mxu0 0.0
    %93 = vmatpush2.xpose.msra.mxu0 0.0
    %94 = vmatprep.subr.mxu0 0.0
    %95 = vmatpush2.xpose.msra.mxu0 0.0
    %96 = vmatprep.subr.mxu0 0.0
    %97 = vmatpush2.xpose.msra.mxu0 0.0
    %98 = vmatprep.subr.mxu0 0.0
    %99 = vmatpush2.xpose.msra.mxu0 0.0
    %100 = vmatprep.subr.mxu0 0.0
    %101 = vmatpush2.xpose.msra.mxu0 0.0
    %102 = vmatprep.subr.mxu0 0.0
    %103 = vmatpush2.xpose.msra.mxu0 0.0
    %104 = vmatprep.subr.mxu0 0.0
    %105 = vmatpush2.xpose.msra.mxu0 0.0
    %106 = vmatprep.subr.mxu0 0.0
    %107 = vmatpush2.xpose.msra.mxu0 0.0
    %108 = vmatprep.subr.mxu0 0.0
    %109 = vmatpush2.xpose.msra.mxu0 0.0
    %110 = vmatprep.subr.mxu0 0.0
    %111 = vmatpush2.xpose.msra.mxu0 0.0
    %112 = vmatprep.subr.mxu0 0.0
    %113 = vmatpush2.xpose.msra.mxu0 0.0
    %114 = vmatprep.subr.mxu0 0.0
    %115 = vmatpush2.xpose.msra.mxu0 0.0
    %116 = vmatprep.mubr.f32.mxu0 0.0
    %117 = vmatmul.mubr.f32.gmra.mxu0 %v44
    %v118 = vpop.f32.mrf.mxu0
    %v119 = vadd.f32 0.0, %v118
    %v120 = vpop.f32.mrf.mxu0
    %121 = vdwg.mxu0
    %v123 = vsel %vm42, %v41, 0
    %v126 = vsel %vm42, %v32, 0
    %v129 = vsel %vm42, %v33, 0
    %131 = vmatprep.subr.mxu0 0.0
    %132 = vmatpush1.xpose.msra.mxu0 0.0
    %133 = vmatprep.subr.mxu0 0.0
    %134 = vmatpush1.xpose.msra.mxu0 0.0
    %135 = vmatprep.subr.mxu0 0.0
    %136 = vmatpush1.xpose.msra.mxu0 0.0
    %137 = vmatprep.subr.mxu0 0.0
    %138 = vmatpush1.xpose.msra.mxu0 0.0
    %139 = vmatprep.subr.mxu0 0.0
    %140 = vmatpush1.xpose.msra.mxu0 0.0
    %141 = vmatprep.subr.mxu0 0.0
    %142 = vmatpush1.xpose.msra.mxu0 0.0
    %143 = vmatprep.subr.mxu0 0.0
    %144 = vmatpush1.xpose.msra.mxu0 0.0
    %145 = vmatprep.subr.mxu0 0.0
    %146 = vmatpush1.xpose.msra.mxu0 0.0
    %147 = vmatprep.subr.mxu0 0.0
    %148 = vmatpush1.xpose.msra.mxu0 0.0
    %149 = vmatprep.subr.mxu0 0.0
    %150 = vmatpush1.xpose.msra.mxu0 0.0
    %151 = vmatprep.subr.mxu0 0.0
    %152 = vmatpush1.xpose.msra.mxu0 0.0
    %153 = vmatprep.subr.mxu0 0.0
    %154 = vmatpush1.xpose.msra.mxu0 0.0
    %155 = vmatprep.subr.mxu0 0.0
    %156 = vmatpush1.xpose.msra.mxu0 0.0
    %157 = vmatprep.subr.mxu0 0.0
    %158 = vmatpush1.xpose.msra.mxu0 0.0
    %159 = vmatprep.subr.mxu0 0.0
    %160 = vmatpush1.xpose.msra.mxu0 %v129
    %161 = vmatprep.subr.mxu0 0.0
    %162 = vmatpush1.xpose.msra.mxu0 %v126
    %163 = vmatprep.subr.mxu0 0.0
    %164 = vmatpush2.xpose.msra.mxu0 0.0
    %165 = vmatprep.subr.mxu0 0.0
    %166 = vmatpush2.xpose.msra.mxu0 0.0
    %167 = vmatprep.subr.mxu0 0.0
    %168 = vmatpush2.xpose.msra.mxu0 0.0
    %169 = vmatprep.subr.mxu0 0.0
    %170 = vmatpush2.xpose.msra.mxu0 0.0
    %171 = vmatprep.subr.mxu0 0.0
    %172 = vmatpush2.xpose.msra.mxu0 0.0
    %173 = vmatprep.subr.mxu0 0.0
    %174 = vmatpush2.xpose.msra.mxu0 0.0
    %175 = vmatprep.subr.mxu0 0.0
    %176 = vmatpush2.xpose.msra.mxu0 0.0
    %177 = vmatprep.subr.mxu0 0.0
    %178 = vmatpush2.xpose.msra.mxu0 0.0
    %179 = vmatprep.subr.mxu0 0.0
    %180 = vmatpush2.xpose.msra.mxu0 0.0
    %181 = vmatprep.subr.mxu0 0.0
    %182 = vmatpush2.xpose.msra.mxu0 0.0
    %183 = vmatprep.subr.mxu0 0.0
    %184 = vmatpush2.xpose.msra.mxu0 0.0
    %185 = vmatprep.subr.mxu0 0.0
    %186 = vmatpush2.xpose.msra.mxu0 0.0
    %187 = vmatprep.subr.mxu0 0.0
    %188 = vmatpush2.xpose.msra.mxu0 0.0
    %189 = vmatprep.subr.mxu0 0.0
    %190 = vmatpush2.xpose.msra.mxu0 0.0
    %191 = vmatprep.subr.mxu0 0.0
    %192 = vmatpush2.xpose.msra.mxu0 0.0
    %193 = vmatprep.subr.mxu0 0.0
    %194 = vmatpush2.xpose.msra.mxu0 0.0
    %195 = vmatprep.mubr.f32.mxu0 0.0
    %196 = vmatmul.mubr.f32.gmra.mxu0 %v123
    %v197 = vpop.f32.mrf.mxu0
    %v198 = vadd.f32 0.0, %v197
    %v199 = vpop.f32.mrf.mxu0
    %200 = vdwg.mxu0
    %vm201 = vcmp.gt.f32.partialorder %v36, 0.0
    %vm202 = vcmp.gt.f32.partialorder %v37, 0.0
    %v203 = vsel %vm201, %v119, -1e+09
    %v204 = vsel %vm202, %v198, -1e+09
    %vm205 = vcmask 122880
    %v206 = vsel %vm205, %v203, -inf
    %207 = vmax.xlane.f32.xlu0 %v206
    %v208 = vpop.xlane.xlu0 %207
    %v209 = vsel %vm205, %v204, -inf
    %210 = vmax.xlane.f32.xlu0 %v209
    %v211 = vpop.xlane.xlu0 %210
    %v212 = vsub.f32 %v203, %v208
    %v213 = vsub.f32 %v204, %v211
    %v214 = vmul.f32 %v212, 1.442695
    %v215 = vpow.pop %v214
    %v216 = vmul.f32 %v213, 1.442695
    %v217 = vpow.pop %v216
    %v218 = vsel %vm205, %v215, 0.0
    %219 = vadd.xlane.f32.xlu0 %v218
    %v220 = vpop.xlane.xlu0 %219
    %v221 = vsel %vm205, %v217, 0.0
    %222 = vadd.xlane.f32.xlu0 %v221
    %v223 = vpop.xlane.xlu0 %222
    %v224 = vrcp.pop %v220
    %v225 = vrcp.pop %v223
    %v226 = vmul.f32 %v215, %v224
    %v227 = vmul.f32 %v217, %v225
    %vm228 = vcmask 130048
    %v230 = vsel %vm228, %v226, 0
    %232 = vmatprep.subr.mxu0 0.0
    %233 = vmatpush1.msra.mxu0 0.0
    %234 = vmatprep.subr.mxu0 0.0
    %235 = vmatpush1.msra.mxu0 0.0
    %236 = vmatprep.subr.mxu0 0.0
    %237 = vmatpush1.msra.mxu0 0.0
    %238 = vmatprep.subr.mxu0 0.0
    %239 = vmatpush1.msra.mxu0 0.0
    %240 = vmatprep.subr.mxu0 0.0
    %241 = vmatpush1.msra.mxu0 0.0
    %242 = vmatprep.subr.mxu0 0.0
    %243 = vmatpush1.msra.mxu0 0.0
    %244 = vmatprep.subr.mxu0 0.0
    %245 = vmatpush1.msra.mxu0 0.0
    %246 = vmatprep.subr.mxu0 0.0
    %247 = vmatpush1.msra.mxu0 0.0
    %248 = vmatprep.subr.mxu0 0.0
    %249 = vmatpush1.msra.mxu0 0.0
    %250 = vmatprep.subr.mxu0 0.0
    %251 = vmatpush1.msra.mxu0 0.0
    %252 = vmatprep.subr.mxu0 0.0
    %253 = vmatpush1.msra.mxu0 0.0
    %254 = vmatprep.subr.mxu0 0.0
    %255 = vmatpush1.msra.mxu0 0.0
    %256 = vmatprep.subr.mxu0 0.0
    %257 = vmatpush1.msra.mxu0 0.0
    %258 = vmatprep.subr.mxu0 0.0
    %259 = vmatpush1.msra.mxu0 0.0
    %260 = vmatprep.subr.mxu0 0.0
    %261 = vmatpush1.msra.mxu0 %v31
    %262 = vmatprep.subr.mxu0 0.0
    %263 = vmatpush1.msra.mxu0 %v30
    %264 = vmatprep.subr.mxu0 0.0
    %265 = vmatpush2.msra.mxu0 0.0
    %266 = vmatprep.subr.mxu0 0.0
    %267 = vmatpush2.msra.mxu0 0.0
    %268 = vmatprep.subr.mxu0 0.0
    %269 = vmatpush2.msra.mxu0 0.0
    %270 = vmatprep.subr.mxu0 0.0
    %271 = vmatpush2.msra.mxu0 0.0
    %272 = vmatprep.subr.mxu0 0.0
    %273 = vmatpush2.msra.mxu0 0.0
    %274 = vmatprep.subr.mxu0 0.0
    %275 = vmatpush2.msra.mxu0 0.0
    %276 = vmatprep.subr.mxu0 0.0
    %277 = vmatpush2.msra.mxu0 0.0
    %278 = vmatprep.subr.mxu0 0.0
    %279 = vmatpush2.msra.mxu0 0.0
    %280 = vmatprep.subr.mxu0 0.0
    %281 = vmatpush2.msra.mxu0 0.0
    %282 = vmatprep.subr.mxu0 0.0
    %283 = vmatpush2.msra.mxu0 0.0
    %284 = vmatprep.subr.mxu0 0.0
    %285 = vmatpush2.msra.mxu0 0.0
    %286 = vmatprep.subr.mxu0 0.0
    %287 = vmatpush2.msra.mxu0 0.0
    %288 = vmatprep.subr.mxu0 0.0
    %289 = vmatpush2.msra.mxu0 0.0
    %290 = vmatprep.subr.mxu0 0.0
    %291 = vmatpush2.msra.mxu0 0.0
    %292 = vmatprep.subr.mxu0 0.0
    %293 = vmatpush2.msra.mxu0 0.0
    %294 = vmatprep.subr.mxu0 0.0
    %295 = vmatpush2.msra.mxu0 0.0
    %296 = vmatprep.mubr.f32.mxu0 0.0
    %297 = vmatmul.mubr.f32.gmra.mxu0 %v230
    %v298 = vpop.f32.mrf.mxu0
    %v299 = vadd.f32 0.0, %v298
    %v300 = vpop.f32.mrf.mxu0
    %301 = vdwg.mxu0
    %v303 = vsel %vm228, %v227, 0
    %305 = vmatprep.subr.mxu0 0.0
    %306 = vmatpush1.msra.mxu0 0.0
    %307 = vmatprep.subr.mxu0 0.0
    %308 = vmatpush1.msra.mxu0 0.0
    %309 = vmatprep.subr.mxu0 0.0
    %310 = vmatpush1.msra.mxu0 0.0
    %311 = vmatprep.subr.mxu0 0.0
    %312 = vmatpush1.msra.mxu0 0.0
    %313 = vmatprep.subr.mxu0 0.0
    %314 = vmatpush1.msra.mxu0 0.0
    %315 = vmatprep.subr.mxu0 0.0
    %316 = vmatpush1.msra.mxu0 0.0
    %317 = vmatprep.subr.mxu0 0.0
    %318 = vmatpush1.msra.mxu0 0.0
    %319 = vmatprep.subr.mxu0 0.0
    %320 = vmatpush1.msra.mxu0 0.0
    %321 = vmatprep.subr.mxu0 0.0
    %322 = vmatpush1.msra.mxu0 0.0
    %323 = vmatprep.subr.mxu0 0.0
    %324 = vmatpush1.msra.mxu0 0.0
    %325 = vmatprep.subr.mxu0 0.0
    %326 = vmatpush1.msra.mxu0 0.0
    %327 = vmatprep.subr.mxu0 0.0
    %328 = vmatpush1.msra.mxu0 0.0
    %329 = vmatprep.subr.mxu0 0.0
    %330 = vmatpush1.msra.mxu0 0.0
    %331 = vmatprep.subr.mxu0 0.0
    %332 = vmatpush1.msra.mxu0 0.0
    %333 = vmatprep.subr.mxu0 0.0
    %334 = vmatpush1.msra.mxu0 %v33
    %335 = vmatprep.subr.mxu0 0.0
    %336 = vmatpush1.msra.mxu0 %v32
    %337 = vmatprep.subr.mxu0 0.0
    %338 = vmatpush2.msra.mxu0 0.0
    %339 = vmatprep.subr.mxu0 0.0
    %340 = vmatpush2.msra.mxu0 0.0
    %341 = vmatprep.subr.mxu0 0.0
    %342 = vmatpush2.msra.mxu0 0.0
    %343 = vmatprep.subr.mxu0 0.0
    %344 = vmatpush2.msra.mxu0 0.0
    %345 = vmatprep.subr.mxu0 0.0
    %346 = vmatpush2.msra.mxu0 0.0
    %347 = vmatprep.subr.mxu0 0.0
    %348 = vmatpush2.msra.mxu0 0.0
    %349 = vmatprep.subr.mxu0 0.0
    %350 = vmatpush2.msra.mxu0 0.0
    %351 = vmatprep.subr.mxu0 0.0
    %352 = vmatpush2.msra.mxu0 0.0
    %353 = vmatprep.subr.mxu0 0.0
    %354 = vmatpush2.msra.mxu0 0.0
    %355 = vmatprep.subr.mxu0 0.0
    %356 = vmatpush2.msra.mxu0 0.0
    %357 = vmatprep.subr.mxu0 0.0
    %358 = vmatpush2.msra.mxu0 0.0
    %359 = vmatprep.subr.mxu0 0.0
    %360 = vmatpush2.msra.mxu0 0.0
    %361 = vmatprep.subr.mxu0 0.0
    %362 = vmatpush2.msra.mxu0 0.0
    %363 = vmatprep.subr.mxu0 0.0
    %364 = vmatpush2.msra.mxu0 0.0
    %365 = vmatprep.subr.mxu0 0.0
    %366 = vmatpush2.msra.mxu0 0.0
    %367 = vmatprep.subr.mxu0 0.0
    %368 = vmatpush2.msra.mxu0 0.0
    %369 = vmatprep.mubr.f32.mxu0 0.0
    %370 = vmatmul.mubr.f32.gmra.mxu0 %v303
    %v371 = vpop.f32.mrf.mxu0
    %v372 = vadd.f32 0.0, %v371
    %v373 = vpop.f32.mrf.mxu0
    %374 = vdwg.mxu0
    %v375 = vld [vmem:[%s5] sm:$0x1]
    %v376 = vld [vmem:[%s5 + $0x1] sm:$0x1]
    %v378 = vsel %vm42, %v375, 0
    %v381 = vsel %vm42, %v34, 0
    %383 = vmatprep.subr.mxu0 0.0
    %384 = vmatpush1.xpose.msra.mxu0 0.0
    %385 = vmatprep.subr.mxu0 0.0
    %386 = vmatpush1.xpose.msra.mxu0 0.0
    %387 = vmatprep.subr.mxu0 0.0
    %388 = vmatpush1.xpose.msra.mxu0 0.0
    %389 = vmatprep.subr.mxu0 0.0
    %390 = vmatpush1.xpose.msra.mxu0 0.0
    %391 = vmatprep.subr.mxu0 0.0
    %392 = vmatpush1.xpose.msra.mxu0 0.0
    %393 = vmatprep.subr.mxu0 0.0
    %394 = vmatpush1.xpose.msra.mxu0 0.0
    %395 = vmatprep.subr.mxu0 0.0
    %396 = vmatpush1.xpose.msra.mxu0 0.0
    %397 = vmatprep.subr.mxu0 0.0
    %398 = vmatpush1.xpose.msra.mxu0 0.0
    %399 = vmatprep.subr.mxu0 0.0
    %400 = vmatpush1.xpose.msra.mxu0 0.0
    %401 = vmatprep.subr.mxu0 0.0
    %402 = vmatpush1.xpose.msra.mxu0 0.0
    %403 = vmatprep.subr.mxu0 0.0
    %404 = vmatpush1.xpose.msra.mxu0 0.0
    %405 = vmatprep.subr.mxu0 0.0
    %406 = vmatpush1.xpose.msra.mxu0 0.0
    %407 = vmatprep.subr.mxu0 0.0
    %408 = vmatpush1.xpose.msra.mxu0 0.0
    %409 = vmatprep.subr.mxu0 0.0
    %410 = vmatpush1.xpose.msra.mxu0 0.0
    %411 = vmatprep.subr.mxu0 0.0
    %412 = vmatpush1.xpose.msra.mxu0 0.0
    %413 = vmatprep.subr.mxu0 0.0
    %414 = vmatpush1.xpose.msra.mxu0 %v381
    %415 = vmatprep.subr.mxu0 0.0
    %416 = vmatpush2.xpose.msra.mxu0 0.0
    %417 = vmatprep.subr.mxu0 0.0
    %418 = vmatpush2.xpose.msra.mxu0 0.0
    %419 = vmatprep.subr.mxu0 0.0
    %420 = vmatpush2.xpose.msra.mxu0 0.0
    %421 = vmatprep.subr.mxu0 0.0
    %422 = vmatpush2.xpose.msra.mxu0 0.0
    %423 = vmatprep.subr.mxu0 0.0
    %424 = vmatpush2.xpose.msra.mxu0 0.0
    %425 = vmatprep.subr.mxu0 0.0
    %426 = vmatpush2.xpose.msra.mxu0 0.0
    %427 = vmatprep.subr.mxu0 0.0
    %428 = vmatpush2.xpose.msra.mxu0 0.0
    %429 = vmatprep.subr.mxu0 0.0
    %430 = vmatpush2.xpose.msra.mxu0 0.0
    %431 = vmatprep.subr.mxu0 0.0
    %432 = vmatpush2.xpose.msra.mxu0 0.0
    %433 = vmatprep.subr.mxu0 0.0
    %434 = vmatpush2.xpose.msra.mxu0 0.0
    %435 = vmatprep.subr.mxu0 0.0
    %436 = vmatpush2.xpose.msra.mxu0 0.0
    %437 = vmatprep.subr.mxu0 0.0
    %438 = vmatpush2.xpose.msra.mxu0 0.0
    %439 = vmatprep.subr.mxu0 0.0
    %440 = vmatpush2.xpose.msra.mxu0 0.0
    %441 = vmatprep.subr.mxu0 0.0
    %442 = vmatpush2.xpose.msra.mxu0 0.0
    %443 = vmatprep.subr.mxu0 0.0
    %444 = vmatpush2.xpose.msra.mxu0 0.0
    %445 = vmatprep.subr.mxu0 0.0
    %446 = vmatpush2.xpose.msra.mxu0 0.0
    %447 = vmatprep.mubr.f32.mxu0 0.0
    %448 = vmatmul.mubr.f32.gmra.mxu0 %v378
    %v449 = vpop.f32.mrf.mxu0
    %v450 = vadd.f32 0.0, %v449
    %v451 = vpop.f32.mrf.mxu0
    %452 = vdwg.mxu0
    %v454 = vsel %vm42, %v376, 0
    %v457 = vsel %vm42, %v35, 0
    %459 = vmatprep.subr.mxu0 0.0
    %460 = vmatpush1.xpose.msra.mxu0 0.0
    %461 = vmatprep.subr.mxu0 0.0
    %462 = vmatpush1.xpose.msra.mxu0 0.0
    %463 = vmatprep.subr.mxu0 0.0
    %464 = vmatpush1.xpose.msra.mxu0 0.0
    %465 = vmatprep.subr.mxu0 0.0
    %466 = vmatpush1.xpose.msra.mxu0 0.0
    %467 = vmatprep.subr.mxu0 0.0
    %468 = vmatpush1.xpose.msra.mxu0 0.0
    %469 = vmatprep.subr.mxu0 0.0
    %470 = vmatpush1.xpose.msra.mxu0 0.0
    %471 = vmatprep.subr.mxu0 0.0
    %472 = vmatpush1.xpose.msra.mxu0 0.0
    %473 = vmatprep.subr.mxu0 0.0
    %474 = vmatpush1.xpose.msra.mxu0 0.0
    %475 = vmatprep.subr.mxu0 0.0
    %476 = vmatpush1.xpose.msra.mxu0 0.0
    %477 = vmatprep.subr.mxu0 0.0
    %478 = vmatpush1.xpose.msra.mxu0 0.0
    %479 = vmatprep.subr.mxu0 0.0
    %480 = vmatpush1.xpose.msra.mxu0 0.0
    %481 = vmatprep.subr.mxu0 0.0
    %482 = vmatpush1.xpose.msra.mxu0 0.0
    %483 = vmatprep.subr.mxu0 0.0
    %484 = vmatpush1.xpose.msra.mxu0 0.0
    %485 = vmatprep.subr.mxu0 0.0
    %486 = vmatpush1.xpose.msra.mxu0 0.0
    %487 = vmatprep.subr.mxu0 0.0
    %488 = vmatpush1.xpose.msra.mxu0 0.0
    %489 = vmatprep.subr.mxu0 0.0
    %490 = vmatpush1.xpose.msra.mxu0 %v457
    %491 = vmatprep.subr.mxu0 0.0
    %492 = vmatpush2.xpose.msra.mxu0 0.0
    %493 = vmatprep.subr.mxu0 0.0
    %494 = vmatpush2.xpose.msra.mxu0 0.0
    %495 = vmatprep.subr.mxu0 0.0
    %496 = vmatpush2.xpose.msra.mxu0 0.0
    %497 = vmatprep.subr.mxu0 0.0
    %498 = vmatpush2.xpose.msra.mxu0 0.0
    %499 = vmatprep.subr.mxu0 0.0
    %500 = vmatpush2.xpose.msra.mxu0 0.0
    %501 = vmatprep.subr.mxu0 0.0
    %502 = vmatpush2.xpose.msra.mxu0 0.0
    %503 = vmatprep.subr.mxu0 0.0
    %504 = vmatpush2.xpose.msra.mxu0 0.0
    %505 = vmatprep.subr.mxu0 0.0
    %506 = vmatpush2.xpose.msra.mxu0 0.0
    %507 = vmatprep.subr.mxu0 0.0
    %508 = vmatpush2.xpose.msra.mxu0 0.0
    %509 = vmatprep.subr.mxu0 0.0
    %510 = vmatpush2.xpose.msra.mxu0 0.0
    %511 = vmatprep.subr.mxu0 0.0
    %512 = vmatpush2.xpose.msra.mxu0 0.0
    %513 = vmatprep.subr.mxu0 0.0
    %514 = vmatpush2.xpose.msra.mxu0 0.0
    %515 = vmatprep.subr.mxu0 0.0
    %516 = vmatpush2.xpose.msra.mxu0 0.0
    %517 = vmatprep.subr.mxu0 0.0
    %518 = vmatpush2.xpose.msra.mxu0 0.0
    %519 = vmatprep.subr.mxu0 0.0
    %520 = vmatpush2.xpose.msra.mxu0 0.0
    %521 = vmatprep.subr.mxu0 0.0
    %522 = vmatpush2.xpose.msra.mxu0 0.0
    %523 = vmatprep.mubr.f32.mxu0 0.0
    %524 = vmatmul.mubr.f32.gmra.mxu0 %v454
    %v525 = vpop.f32.mrf.mxu0
    %v526 = vadd.f32 0.0, %v525
    %v527 = vpop.f32.mrf.mxu0
    %528 = vdwg.mxu0
    %vm529 = vcmp.gt.f32.partialorder %v38, 0.0
    %vm530 = vcmp.gt.f32.partialorder %v39, 0.0
    %v531 = vsel %vm529, %v450, -1e+09
    %v532 = vsel %vm530, %v526, -1e+09
    %vm533 = vcmask 57344
    %v534 = vsel %vm533, %v531, -inf
    %535 = vmax.xlane.f32.xlu0 %v534
    %v536 = vpop.xlane.xlu0 %535
    %v537 = vsel %vm533, %v532, -inf
    %538 = vmax.xlane.f32.xlu0 %v537
    %v539 = vpop.xlane.xlu0 %538
    %v540 = vsub.f32 %v531, %v536
    %v541 = vsub.f32 %v532, %v539
    %v542 = vmul.f32 %v540, 1.442695
    %v543 = vpow.pop %v542
    %v544 = vmul.f32 %v541, 1.442695
    %v545 = vpow.pop %v544
    %v546 = vsel %vm533, %v543, 0.0
    %547 = vadd.xlane.f32.xlu0 %v546
    %v548 = vpop.xlane.xlu0 %547
    %v549 = vsel %vm533, %v545, 0.0
    %550 = vadd.xlane.f32.xlu0 %v549
    %v551 = vpop.xlane.xlu0 %550
    %v552 = vrcp.pop %v548
    %v553 = vrcp.pop %v551
    %v554 = vmul.f32 %v543, %v552
    %v555 = vmul.f32 %v545, %v553
    %vm556 = vcmask 64512
    %v558 = vsel %vm556, %v554, 0
    %560 = vmatprep.subr.mxu0 0.0
    %561 = vmatpush1.msra.mxu0 0.0
    %562 = vmatprep.subr.mxu0 0.0
    %563 = vmatpush1.msra.mxu0 0.0
    %564 = vmatprep.subr.mxu0 0.0
    %565 = vmatpush1.msra.mxu0 0.0
    %566 = vmatprep.subr.mxu0 0.0
    %567 = vmatpush1.msra.mxu0 0.0
    %568 = vmatprep.subr.mxu0 0.0
    %569 = vmatpush1.msra.mxu0 0.0
    %570 = vmatprep.subr.mxu0 0.0
    %571 = vmatpush1.msra.mxu0 0.0
    %572 = vmatprep.subr.mxu0 0.0
    %573 = vmatpush1.msra.mxu0 0.0
    %574 = vmatprep.subr.mxu0 0.0
    %575 = vmatpush1.msra.mxu0 0.0
    %576 = vmatprep.subr.mxu0 0.0
    %577 = vmatpush1.msra.mxu0 0.0
    %578 = vmatprep.subr.mxu0 0.0
    %579 = vmatpush1.msra.mxu0 0.0
    %580 = vmatprep.subr.mxu0 0.0
    %581 = vmatpush1.msra.mxu0 0.0
    %582 = vmatprep.subr.mxu0 0.0
    %583 = vmatpush1.msra.mxu0 0.0
    %584 = vmatprep.subr.mxu0 0.0
    %585 = vmatpush1.msra.mxu0 0.0
    %586 = vmatprep.subr.mxu0 0.0
    %587 = vmatpush1.msra.mxu0 0.0
    %588 = vmatprep.subr.mxu0 0.0
    %589 = vmatpush1.msra.mxu0 0.0
    %590 = vmatprep.subr.mxu0 0.0
    %591 = vmatpush1.msra.mxu0 %v34
    %592 = vmatprep.subr.mxu0 0.0
    %593 = vmatpush2.msra.mxu0 0.0
    %594 = vmatprep.subr.mxu0 0.0
    %595 = vmatpush2.msra.mxu0 0.0
    %596 = vmatprep.subr.mxu0 0.0
    %597 = vmatpush2.msra.mxu0 0.0
    %598 = vmatprep.subr.mxu0 0.0
    %599 = vmatpush2.msra.mxu0 0.0
    %600 = vmatprep.subr.mxu0 0.0
    %601 = vmatpush2.msra.mxu0 0.0
    %602 = vmatprep.subr.mxu0 0.0
    %603 = vmatpush2.msra.mxu0 0.0
    %604 = vmatprep.subr.mxu0 0.0
    %605 = vmatpush2.msra.mxu0 0.0
    %606 = vmatprep.subr.mxu0 0.0
    %607 = vmatpush2.msra.mxu0 0.0
    %608 = vmatprep.subr.mxu0 0.0
    %609 = vmatpush2.msra.mxu0 0.0
    %610 = vmatprep.subr.mxu0 0.0
    %611 = vmatpush2.msra.mxu0 0.0
    %612 = vmatprep.subr.mxu0 0.0
    %613 = vmatpush2.msra.mxu0 0.0
    %614 = vmatprep.subr.mxu0 0.0
    %615 = vmatpush2.msra.mxu0 0.0
    %616 = vmatprep.subr.mxu0 0.0
    %617 = vmatpush2.msra.mxu0 0.0
    %618 = vmatprep.subr.mxu0 0.0
    %619 = vmatpush2.msra.mxu0 0.0
    %620 = vmatprep.subr.mxu0 0.0
    %621 = vmatpush2.msra.mxu0 0.0
    %622 = vmatprep.subr.mxu0 0.0
    %623 = vmatpush2.msra.mxu0 0.0
    %624 = vmatprep.mubr.f32.mxu0 0.0
    %625 = vmatmul.mubr.f32.gmra.mxu0 %v558
    %v626 = vpop.f32.mrf.mxu0
    %v627 = vadd.f32 0.0, %v626
    %v628 = vpop.f32.mrf.mxu0
    %629 = vdwg.mxu0
    %v631 = vsel %vm556, %v555, 0
    %633 = vmatprep.subr.mxu0 0.0
    %634 = vmatpush1.msra.mxu0 0.0
    %635 = vmatprep.subr.mxu0 0.0
    %636 = vmatpush1.msra.mxu0 0.0
    %637 = vmatprep.subr.mxu0 0.0
    %638 = vmatpush1.msra.mxu0 0.0
    %639 = vmatprep.subr.mxu0 0.0
    %640 = vmatpush1.msra.mxu0 0.0
    %641 = vmatprep.subr.mxu0 0.0
    %642 = vmatpush1.msra.mxu0 0.0
    %643 = vmatprep.subr.mxu0 0.0
    %644 = vmatpush1.msra.mxu0 0.0
    %645 = vmatprep.subr.mxu0 0.0
    %646 = vmatpush1.msra.mxu0 0.0
    %647 = vmatprep.subr.mxu0 0.0
    %648 = vmatpush1.msra.mxu0 0.0
    %649 = vmatprep.subr.mxu0 0.0
    %650 = vmatpush1.msra.mxu0 0.0
    %651 = vmatprep.subr.mxu0 0.0
    %652 = vmatpush1.msra.mxu0 0.0
    %653 = vmatprep.subr.mxu0 0.0
    %654 = vmatpush1.msra.mxu0 0.0
    %655 = vmatprep.subr.mxu0 0.0
    %656 = vmatpush1.msra.mxu0 0.0
    %657 = vmatprep.subr.mxu0 0.0
    %658 = vmatpush1.msra.mxu0 0.0
    %659 = vmatprep.subr.mxu0 0.0
    %660 = vmatpush1.msra.mxu0 0.0
    %661 = vmatprep.subr.mxu0 0.0
    %662 = vmatpush1.msra.mxu0 0.0
    %663 = vmatprep.subr.mxu0 0.0
    %664 = vmatpush1.msra.mxu0 %v35
    %665 = vmatprep.subr.mxu0 0.0
    %666 = vmatpush2.msra.mxu0 0.0
    %667 = vmatprep.subr.mxu0 0.0
    %668 = vmatpush2.msra.mxu0 0.0
    %669 = vmatprep.subr.mxu0 0.0
    %670 = vmatpush2.msra.mxu0 0.0
    %671 = vmatprep.subr.mxu0 0.0
    %672 = vmatpush2.msra.mxu0 0.0
    %673 = vmatprep.subr.mxu0 0.0
    %674 = vmatpush2.msra.mxu0 0.0
    %675 = vmatprep.subr.mxu0 0.0
    %676 = vmatpush2.msra.mxu0 0.0
    %677 = vmatprep.subr.mxu0 0.0
    %678 = vmatpush2.msra.mxu0 0.0
    %679 = vmatprep.subr.mxu0 0.0
    %680 = vmatpush2.msra.mxu0 0.0
    %681 = vmatprep.subr.mxu0 0.0
    %682 = vmatpush2.msra.mxu0 0.0
    %683 = vmatprep.subr.mxu0 0.0
    %684 = vmatpush2.msra.mxu0 0.0
    %685 = vmatprep.subr.mxu0 0.0
    %686 = vmatpush2.msra.mxu0 0.0
    %687 = vmatprep.subr.mxu0 0.0
    %688 = vmatpush2.msra.mxu0 0.0
    %689 = vmatprep.subr.mxu0 0.0
    %690 = vmatpush2.msra.mxu0 0.0
    %691 = vmatprep.subr.mxu0 0.0
    %692 = vmatpush2.msra.mxu0 0.0
    %693 = vmatprep.subr.mxu0 0.0
    %694 = vmatpush2.msra.mxu0 0.0
    %695 = vmatprep.subr.mxu0 0.0
    %696 = vmatpush2.msra.mxu0 0.0
    %697 = vmatprep.mubr.f32.mxu0 0.0
    %698 = vmatmul.mubr.f32.gmra.mxu0 %v631
    %v699 = vpop.f32.mrf.mxu0
    %v700 = vadd.f32 0.0, %v699
    %v701 = vpop.f32.mrf.mxu0
    %702 = vdwg.mxu0
    %v703 = vmul.f32 %v299, %v627
    %v704 = vmul.f32 %v372, %v700
    %v705 = vld [vmem:[%s6] sm:$0xff]
    %v706 = vld [vmem:[%s6 + $0x8] sm:$0xff]
    %v707 = vld [vmem:[%s6 + $0x10] sm:$0xff]
    %v708 = vld [vmem:[%s6 + $0x18] sm:$0xff]
    %v709 = vld [vmem:[%s6 + $0x20] sm:$0xff]
    %v710 = vld [vmem:[%s6 + $0x28] sm:$0xff]
    %v711 = vld [vmem:[%s6 + $0x30] sm:$0xff]
    %v712 = vld [vmem:[%s6 + $0x38] sm:$0xff]
    %v713 = vld [vmem:[%s7] sm:$0x1]
    %v715 = vsel %vm42, %v703, 0
    %717 = vmatprep.subr.mxu0 0.0
    %718 = vmatpush1.msra.mxu0 0.0
    %719 = vmatprep.subr.mxu0 0.0
    %720 = vmatpush1.msra.mxu0 0.0
    %721 = vmatprep.subr.mxu0 0.0
    %722 = vmatpush1.msra.mxu0 0.0
    %723 = vmatprep.subr.mxu0 0.0
    %724 = vmatpush1.msra.mxu0 0.0
    %725 = vmatprep.subr.mxu0 0.0
    %726 = vmatpush1.msra.mxu0 0.0
    %727 = vmatprep.subr.mxu0 0.0
    %728 = vmatpush1.msra.mxu0 0.0
    %729 = vmatprep.subr.mxu0 0.0
    %730 = vmatpush1.msra.mxu0 0.0
    %731 = vmatprep.subr.mxu0 0.0
    %732 = vmatpush1.msra.mxu0 0.0
    %733 = vmatprep.subr.mxu0 0.0
    %734 = vmatpush1.msra.mxu0 0.0
    %735 = vmatprep.subr.mxu0 0.0
    %736 = vmatpush1.msra.mxu0 0.0
    %737 = vmatprep.subr.mxu0 0.0
    %738 = vmatpush1.msra.mxu0 0.0
    %739 = vmatprep.subr.mxu0 0.0
    %740 = vmatpush1.msra.mxu0 0.0
    %741 = vmatprep.subr.mxu0 0.0
    %742 = vmatpush1.msra.mxu0 %v708
    %743 = vmatprep.subr.mxu0 0.0
    %744 = vmatpush1.msra.mxu0 %v707
    %745 = vmatprep.subr.mxu0 0.0
    %746 = vmatpush1.msra.mxu0 %v706
    %747 = vmatprep.subr.mxu0 0.0
    %748 = vmatpush1.msra.mxu0 %v705
    %749 = vmatprep.subr.mxu0 0.0
    %750 = vmatpush2.msra.mxu0 0.0
    %751 = vmatprep.subr.mxu0 0.0
    %752 = vmatpush2.msra.mxu0 0.0
    %753 = vmatprep.subr.mxu0 0.0
    %754 = vmatpush2.msra.mxu0 0.0
    %755 = vmatprep.subr.mxu0 0.0
    %756 = vmatpush2.msra.mxu0 0.0
    %757 = vmatprep.subr.mxu0 0.0
    %758 = vmatpush2.msra.mxu0 0.0
    %759 = vmatprep.subr.mxu0 0.0
    %760 = vmatpush2.msra.mxu0 0.0
    %761 = vmatprep.subr.mxu0 0.0
    %762 = vmatpush2.msra.mxu0 0.0
    %763 = vmatprep.subr.mxu0 0.0
    %764 = vmatpush2.msra.mxu0 0.0
    %765 = vmatprep.subr.mxu0 0.0
    %766 = vmatpush2.msra.mxu0 0.0
    %767 = vmatprep.subr.mxu0 0.0
    %768 = vmatpush2.msra.mxu0 0.0
    %769 = vmatprep.subr.mxu0 0.0
    %770 = vmatpush2.msra.mxu0 0.0
    %771 = vmatprep.subr.mxu0 0.0
    %772 = vmatpush2.msra.mxu0 0.0
    %773 = vmatprep.subr.mxu0 0.0
    %774 = vmatpush2.msra.mxu0 0.0
    %775 = vmatprep.subr.mxu0 0.0
    %776 = vmatpush2.msra.mxu0 0.0
    %777 = vmatprep.subr.mxu0 0.0
    %778 = vmatpush2.msra.mxu0 0.0
    %779 = vmatprep.subr.mxu0 0.0
    %780 = vmatpush2.msra.mxu0 0.0
    %781 = vmatprep.mubr.f32.mxu0 0.0
    %782 = vmatmul.mubr.f32.gmra.mxu0 %v715
    %v783 = vpop.f32.mrf.mxu0
    %v784 = vadd.f32 %v713, %v783
    %v785 = vpop.f32.mrf.mxu0
    %786 = vdwg.mxu0
    %v788 = vsel %vm42, %v704, 0
    %790 = vmatprep.subr.mxu0 0.0
    %791 = vmatpush1.msra.mxu0 0.0
    %792 = vmatprep.subr.mxu0 0.0
    %793 = vmatpush1.msra.mxu0 0.0
    %794 = vmatprep.subr.mxu0 0.0
    %795 = vmatpush1.msra.mxu0 0.0
    %796 = vmatprep.subr.mxu0 0.0
    %797 = vmatpush1.msra.mxu0 0.0
    %798 = vmatprep.subr.mxu0 0.0
    %799 = vmatpush1.msra.mxu0 0.0
    %800 = vmatprep.subr.mxu0 0.0
    %801 = vmatpush1.msra.mxu0 0.0
    %802 = vmatprep.subr.mxu0 0.0
    %803 = vmatpush1.msra.mxu0 0.0
    %804 = vmatprep.subr.mxu0 0.0
    %805 = vmatpush1.msra.mxu0 0.0
    %806 = vmatprep.subr.mxu0 0.0
    %807 = vmatpush1.msra.mxu0 0.0
    %808 = vmatprep.subr.mxu0 0.0
    %809 = vmatpush1.msra.mxu0 0.0
    %810 = vmatprep.subr.mxu0 0.0
    %811 = vmatpush1.msra.mxu0 0.0
    %812 = vmatprep.subr.mxu0 0.0
    %813 = vmatpush1.msra.mxu0 0.0
    %814 = vmatprep.subr.mxu0 0.0
    %815 = vmatpush1.msra.mxu0 %v712
    %816 = vmatprep.subr.mxu0 0.0
    %817 = vmatpush1.msra.mxu0 %v711
    %818 = vmatprep.subr.mxu0 0.0
    %819 = vmatpush1.msra.mxu0 %v710
    %820 = vmatprep.subr.mxu0 0.0
    %821 = vmatpush1.msra.mxu0 %v709
    %822 = vmatprep.subr.mxu0 0.0
    %823 = vmatpush2.msra.mxu0 0.0
    %824 = vmatprep.subr.mxu0 0.0
    %825 = vmatpush2.msra.mxu0 0.0
    %826 = vmatprep.subr.mxu0 0.0
    %827 = vmatpush2.msra.mxu0 0.0
    %828 = vmatprep.subr.mxu0 0.0
    %829 = vmatpush2.msra.mxu0 0.0
    %830 = vmatprep.subr.mxu0 0.0
    %831 = vmatpush2.msra.mxu0 0.0
    %832 = vmatprep.subr.mxu0 0.0
    %833 = vmatpush2.msra.mxu0 0.0
    %834 = vmatprep.subr.mxu0 0.0
    %835 = vmatpush2.msra.mxu0 0.0
    %836 = vmatprep.subr.mxu0 0.0
    %837 = vmatpush2.msra.mxu0 0.0
    %838 = vmatprep.subr.mxu0 0.0
    %839 = vmatpush2.msra.mxu0 0.0
    %840 = vmatprep.subr.mxu0 0.0
    %841 = vmatpush2.msra.mxu0 0.0
    %842 = vmatprep.subr.mxu0 0.0
    %843 = vmatpush2.msra.mxu0 0.0
    %844 = vmatprep.subr.mxu0 0.0
    %845 = vmatpush2.msra.mxu0 0.0
    %846 = vmatprep.subr.mxu0 0.0
    %847 = vmatpush2.msra.mxu0 0.0
    %848 = vmatprep.subr.mxu0 0.0
    %849 = vmatpush2.msra.mxu0 0.0
    %850 = vmatprep.subr.mxu0 0.0
    %851 = vmatpush2.msra.mxu0 0.0
    %852 = vmatprep.subr.mxu0 0.0
    %853 = vmatpush2.msra.mxu0 0.0
    %854 = vmatprep.mubr.f32.mxu0 0.0
    %855 = vmatmul.mubr.f32.gmra.mxu0 %v788
    %v856 = vpop.f32.mrf.mxu0
    %v857 = vadd.f32 %v713, %v856
    %v858 = vpop.f32.mrf.mxu0
    %859 = vdwg.mxu0
    %vm860 = vcmask 73728
    %861 = vst.msk [vmem:[#allocation2] sm:$0x1] %vm860, %v784
    %862 = vst.msk [vmem:[#allocation2 + $0x1] sm:$0x1] %vm860, %v857
    // Predicated region
    $region34: #{dcn_forward.7} parent=1 // pred_check
      _
    $region35: #{dcn_forward.7} parent=1 // pred_check_branch
      %864 = sbr.rel (0) target = $region37
    $region36: #{dcn_forward.7} parent=1 // pred_region
      %s866 = ssub.s32 32, 32
      %867 = vsyncadd [#allocation3], %s866
      %s868 = sshll.u32 [#allocation2], 4
      %s869 = int_to_ptr.vmem [resolvable:$true] %s868
      %874 = dma.vmem_to_hbm [thread:$0]  %s869, 32, %s8, [#allocation3], 16, 16, 1
    $region37: #{dcn_forward.7} parent=1 // pred_fallthru
      _
    // Predicated region
    $region38: #{dcn_forward.7} parent=1 // pred_check
      _
    $region39: #{dcn_forward.7} parent=1 // pred_check_branch
      %876 = sbr.rel (0) target = $region41
    $region40: #{dcn_forward.7} parent=1 // pred_region
      %877 = dma.done [#allocation3], 32
    $region41: #{dcn_forward.7} parent=1 // pred_fallthru
      _
    %878 = vsyncpa [#allocation3], 1

// kernel: dcn_forward.6
$region0: #{dcn_forward.6}
  #allocation0 [shape = 'u32[]', space=smem, size = 0x4, offset = 0x4, fixed_abs, tag = 'smem constant byte address 0x4 - core index']
  #allocation1 [shape = 'u32[144,128]{1,0:T(1,128)}', space=vmem, size = 0x12000, scoped, tag = 'internal scratch']
  %s0 = inlined_call_operand.vmem [shape: f32[2,18,32], index: 0, kind: input, shape index: {}]
  %s1 = inlined_call_operand.vmem [shape: f32[2,10,32], index: 1, kind: input, shape index: {}]
  %s2 = inlined_call_operand.vmem [shape: f32[2,1,18], index: 2, kind: input, shape index: {}]
  %s3 = inlined_call_operand.vmem [shape: f32[2,1,10], index: 3, kind: input, shape index: {}]
  %s4 = inlined_call_operand.vmem [shape: f32[2,32,32], index: 4, kind: input, shape index: {}]
  %s5 = inlined_call_operand.vmem [shape: f32[2,32,32], index: 5, kind: input, shape index: {}]
  %s6 = inlined_call_operand.vmem [shape: f32[1,1,32], index: 6, kind: input, shape index: {}, may-alias: {6,9}]
  %s7 = inlined_call_operand.vmem [shape: f32[2,32,32], index: 7, kind: input, shape index: {}]
  %s8 = inlined_call_operand.vmem [shape: f32[2,32,32], index: 8, kind: input, shape index: {}]
  %s9 = inlined_call_operand.vmem [shape: f32[1,1,32], index: 9, kind: input, shape index: {}, may-alias: {6,9}]
  %s10 = inlined_call_operand.vmem [shape: f32[2,16,32], index: 10, kind: output, shape index: {0}]
  %s11 = inlined_call_operand.vmem [shape: f32[2,8,32], index: 11, kind: output, shape index: {1}]
  %12 = xla_tuple %s10, %s11
  %s13 = sld [smem:[#allocation0]]
  $region58: #{dcn_forward.6} parent=0
    _
  %s15 = ssub.s32 1, %s13
  %s16 = scalar_select 0, %s15, %s13
  // Predicated region
  $region2: #{dcn_forward.6} parent=0 // pred_check
    _
  $region3: #{dcn_forward.6} parent=0 // pred_check_branch
    %18 = sbr.rel (0) target = $region5
  $region4: #{dcn_forward.6} parent=0 // pred_region
    _
  $region5: #{dcn_forward.6} parent=0 // pred_fallthru
    _
  // Predicated region
  $region6: #{dcn_forward.6} parent=0 // pred_check
    _
  $region7: #{dcn_forward.6} parent=0 // pred_check_branch
    %20 = sbr.rel (0) target = $region9
  $region8: #{dcn_forward.6} parent=0 // pred_region
    _
  $region9: #{dcn_forward.6} parent=0 // pred_fallthru
    _
  // Predicated region
  $region10: #{dcn_forward.6} parent=0 // pred_check
    _
  $region11: #{dcn_forward.6} parent=0 // pred_check_branch
    %22 = sbr.rel (0) target = $region13
  $region12: #{dcn_forward.6} parent=0 // pred_region
    _
  $region13: #{dcn_forward.6} parent=0 // pred_fallthru
    _
  // Predicated region
  $region14: #{dcn_forward.6} parent=0 // pred_check
    _
  $region15: #{dcn_forward.6} parent=0 // pred_check_branch
    %24 = sbr.rel (0) target = $region17
  $region16: #{dcn_forward.6} parent=0 // pred_region
    _
  $region17: #{dcn_forward.6} parent=0 // pred_fallthru
    _
  // Predicated region
  $region18: #{dcn_forward.6} parent=0 // pred_check
    _
  $region19: #{dcn_forward.6} parent=0 // pred_check_branch
    %26 = sbr.rel (0) target = $region21
  $region20: #{dcn_forward.6} parent=0 // pred_region
    _
  $region21: #{dcn_forward.6} parent=0 // pred_fallthru
    _
  // Predicated region
  $region22: #{dcn_forward.6} parent=0 // pred_check
    _
  $region23: #{dcn_forward.6} parent=0 // pred_check_branch
    %28 = sbr.rel (0) target = $region25
  $region24: #{dcn_forward.6} parent=0 // pred_region
    _
  $region25: #{dcn_forward.6} parent=0 // pred_fallthru
    _
  // Predicated region
  $region26: #{dcn_forward.6} parent=0 // pred_check
    _
  $region27: #{dcn_forward.6} parent=0 // pred_check_branch
    %30 = sbr.rel (0) target = $region29
  $region28: #{dcn_forward.6} parent=0 // pred_region
    _
  $region29: #{dcn_forward.6} parent=0 // pred_fallthru
    _
  // Predicated region
  $region30: #{dcn_forward.6} parent=0 // pred_check
    _
  $region31: #{dcn_forward.6} parent=0 // pred_check_branch
    %32 = sbr.rel (0) target = $region33
  $region32: #{dcn_forward.6} parent=0 // pred_region
    _
  $region33: #{dcn_forward.6} parent=0 // pred_fallthru
    _
  // Predicated region
  $region34: #{dcn_forward.6} parent=0 // pred_check
    _
  $region35: #{dcn_forward.6} parent=0 // pred_check_branch
    %34 = sbr.rel (0) target = $region37
  $region36: #{dcn_forward.6} parent=0 // pred_region
    _
  $region37: #{dcn_forward.6} parent=0 // pred_fallthru
    _
  // Predicated region
  $region38: #{dcn_forward.6} parent=0 // pred_check
    _
  $region39: #{dcn_forward.6} parent=0 // pred_check_branch
    %36 = sbr.rel (0) target = $region41
  $region40: #{dcn_forward.6} parent=0 // pred_region
    _
  $region41: #{dcn_forward.6} parent=0 // pred_fallthru
    _
  %v37 = vld [vmem:[%s0] sm:$0xff]
  %v38 = vld [vmem:[%s0 + $0x8] sm:$0xff]
  %v39 = vld [vmem:[%s0 + $0x10] sm:$0x3]
  %v40 = vld [vmem:[%s0 + $0x18] sm:$0xff]
  %v41 = vld [vmem:[%s0 + $0x20] sm:$0xff]
  %v42 = vld [vmem:[%s0 + $0x28] sm:$0x3]
  %v43 = vld [vmem:[%s1] sm:$0xff]
  %v44 = vld [vmem:[%s1 + $0x8] sm:$0x3]
  %v45 = vld [vmem:[%s1 + $0x10] sm:$0xff]
  %v46 = vld [vmem:[%s1 + $0x18] sm:$0x3]
  %v47 = vld [vmem:[%s2] sm:$0x1]
  %v48 = vld [vmem:[%s2 + $0x1] sm:$0x1]
  %v49 = vld [vmem:[%s3] sm:$0x1]
  %v50 = vld [vmem:[%s3 + $0x1] sm:$0x1]
  %vm51 = vcmask 261120
  %v53 = vsel %vm51, %v37, 0
  %v56 = vsel %vm51, %v38, 0
  %v59 = vsel %vm51, %v39, 0
  %v62 = vsel %vm51, %v43, 0
  %v65 = vsel %vm51, %v44, 0
  %67 = vmatprep.subr.mxu0 0.0
  %68 = vmatpush1.xpose.msra.mxu0 0.0
  %69 = vmatprep.subr.mxu0 0.0
  %70 = vmatpush1.xpose.msra.mxu0 0.0
  %71 = vmatprep.subr.mxu0 0.0
  %72 = vmatpush1.xpose.msra.mxu0 0.0
  %73 = vmatprep.subr.mxu0 0.0
  %74 = vmatpush1.xpose.msra.mxu0 0.0
  %75 = vmatprep.subr.mxu0 0.0
  %76 = vmatpush1.xpose.msra.mxu0 0.0
  %77 = vmatprep.subr.mxu0 0.0
  %78 = vmatpush1.xpose.msra.mxu0 0.0
  %79 = vmatprep.subr.mxu0 0.0
  %80 = vmatpush1.xpose.msra.mxu0 0.0
  %81 = vmatprep.subr.mxu0 0.0
  %82 = vmatpush1.xpose.msra.mxu0 0.0
  %83 = vmatprep.subr.mxu0 0.0
  %84 = vmatpush1.xpose.msra.mxu0 0.0
  %85 = vmatprep.subr.mxu0 0.0
  %86 = vmatpush1.xpose.msra.mxu0 0.0
  %87 = vmatprep.subr.mxu0 0.0
  %88 = vmatpush1.xpose.msra.mxu0 0.0
  %89 = vmatprep.subr.mxu0 0.0
  %90 = vmatpush1.xpose.msra.mxu0 0.0
  %91 = vmatprep.subr.mxu0 0.0
  %92 = vmatpush1.xpose.msra.mxu0 0.0
  %93 = vmatprep.subr.mxu0 0.0
  %94 = vmatpush1.xpose.msra.mxu0 0.0
  %95 = vmatprep.subr.mxu0 0.0
  %96 = vmatpush1.xpose.msra.mxu0 %v65
  %97 = vmatprep.subr.mxu0 0.0
  %98 = vmatpush1.xpose.msra.mxu0 %v62
  %99 = vmatprep.subr.mxu0 0.0
  %100 = vmatpush2.xpose.msra.mxu0 0.0
  %101 = vmatprep.subr.mxu0 0.0
  %102 = vmatpush2.xpose.msra.mxu0 0.0
  %103 = vmatprep.subr.mxu0 0.0
  %104 = vmatpush2.xpose.msra.mxu0 0.0
  %105 = vmatprep.subr.mxu0 0.0
  %106 = vmatpush2.xpose.msra.mxu0 0.0
  %107 = vmatprep.subr.mxu0 0.0
  %108 = vmatpush2.xpose.msra.mxu0 0.0
  %109 = vmatprep.subr.mxu0 0.0
  %110 = vmatpush2.xpose.msra.mxu0 0.0
  %111 = vmatprep.subr.mxu0 0.0
  %112 = vmatpush2.xpose.msra.mxu0 0.0
  %113 = vmatprep.subr.mxu0 0.0
  %114 = vmatpush2.xpose.msra.mxu0 0.0
  %115 = vmatprep.subr.mxu0 0.0
  %116 = vmatpush2.xpose.msra.mxu0 0.0
  %117 = vmatprep.subr.mxu0 0.0
  %118 = vmatpush2.xpose.msra.mxu0 0.0
  %119 = vmatprep.subr.mxu0 0.0
  %120 = vmatpush2.xpose.msra.mxu0 0.0
  %121 = vmatprep.subr.mxu0 0.0
  %122 = vmatpush2.xpose.msra.mxu0 0.0
  %123 = vmatprep.subr.mxu0 0.0
  %124 = vmatpush2.xpose.msra.mxu0 0.0
  %125 = vmatprep.subr.mxu0 0.0
  %126 = vmatpush2.xpose.msra.mxu0 0.0
  %127 = vmatprep.subr.mxu0 0.0
  %128 = vmatpush2.xpose.msra.mxu0 0.0
  %129 = vmatprep.subr.mxu0 0.0
  %130 = vmatpush2.xpose.msra.mxu0 0.0
  %131 = vmatprep.mubr.f32.mxu0 0.0
  %132 = vmatmul.mubr.f32.gmra.mxu0 %v53
  %v133 = vpop.f32.mrf.mxu0
  %v134 = vadd.f32 0.0, %v133
  %v135 = vpop.f32.mrf.mxu0
  %136 = vmatprep.mubr.f32.mxu0 0.0
  %137 = vmatmul.mubr.f32.gmra.mxu0 %v56
  %v138 = vpop.f32.mrf.mxu0
  %v139 = vadd.f32 0.0, %v138
  %v140 = vpop.f32.mrf.mxu0
  %141 = vmatprep.mubr.f32.mxu0 0.0
  %142 = vmatmul.mubr.f32.gmra.mxu0 %v59
  %v143 = vpop.f32.mrf.mxu0
  %v144 = vadd.f32 0.0, %v143
  %v145 = vpop.f32.mrf.mxu0
  %146 = vdwg.mxu0
  %v148 = vsel %vm51, %v40, 0
  %v151 = vsel %vm51, %v41, 0
  %v154 = vsel %vm51, %v42, 0
  %v157 = vsel %vm51, %v45, 0
  %v160 = vsel %vm51, %v46, 0
  %162 = vmatprep.subr.mxu0 0.0
  %163 = vmatpush1.xpose.msra.mxu0 0.0
  %164 = vmatprep.subr.mxu0 0.0
  %165 = vmatpush1.xpose.msra.mxu0 0.0
  %166 = vmatprep.subr.mxu0 0.0
  %167 = vmatpush1.xpose.msra.mxu0 0.0
  %168 = vmatprep.subr.mxu0 0.0
  %169 = vmatpush1.xpose.msra.mxu0 0.0
  %170 = vmatprep.subr.mxu0 0.0
  %171 = vmatpush1.xpose.msra.mxu0 0.0
  %172 = vmatprep.subr.mxu0 0.0
  %173 = vmatpush1.xpose.msra.mxu0 0.0
  %174 = vmatprep.subr.mxu0 0.0
  %175 = vmatpush1.xpose.msra.mxu0 0.0
  %176 = vmatprep.subr.mxu0 0.0
  %177 = vmatpush1.xpose.msra.mxu0 0.0
  %178 = vmatprep.subr.mxu0 0.0
  %179 = vmatpush1.xpose.msra.mxu0 0.0
  %180 = vmatprep.subr.mxu0 0.0
  %181 = vmatpush1.xpose.msra.mxu0 0.0
  %182 = vmatprep.subr.mxu0 0.0
  %183 = vmatpush1.xpose.msra.mxu0 0.0
  %184 = vmatprep.subr.mxu0 0.0
  %185 = vmatpush1.xpose.msra.mxu0 0.0
  %186 = vmatprep.subr.mxu0 0.0
  %187 = vmatpush1.xpose.msra.mxu0 0.0
  %188 = vmatprep.subr.mxu0 0.0
  %189 = vmatpush1.xpose.msra.mxu0 0.0
  %190 = vmatprep.subr.mxu0 0.0
  %191 = vmatpush1.xpose.msra.mxu0 %v160
  %192 = vmatprep.subr.mxu0 0.0
  %193 = vmatpush1.xpose.msra.mxu0 %v157
  %194 = vmatprep.subr.mxu0 0.0
  %195 = vmatpush2.xpose.msra.mxu0 0.0
  %196 = vmatprep.subr.mxu0 0.0
  %197 = vmatpush2.xpose.msra.mxu0 0.0
  %198 = vmatprep.subr.mxu0 0.0
  %199 = vmatpush2.xpose.msra.mxu0 0.0
  %200 = vmatprep.subr.mxu0 0.0
  %201 = vmatpush2.xpose.msra.mxu0 0.0
  %202 = vmatprep.subr.mxu0 0.0
  %203 = vmatpush2.xpose.msra.mxu0 0.0
  %204 = vmatprep.subr.mxu0 0.0
  %205 = vmatpush2.xpose.msra.mxu0 0.0
  %206 = vmatprep.subr.mxu0 0.0
  %207 = vmatpush2.xpose.msra.mxu0 0.0
  %208 = vmatprep.subr.mxu0 0.0
  %209 = vmatpush2.xpose.msra.mxu0 0.0
  %210 = vmatprep.subr.mxu0 0.0
  %211 = vmatpush2.xpose.msra.mxu0 0.0
  %212 = vmatprep.subr.mxu0 0.0
  %213 = vmatpush2.xpose.msra.mxu0 0.0
  %214 = vmatprep.subr.mxu0 0.0
  %215 = vmatpush2.xpose.msra.mxu0 0.0
  %216 = vmatprep.subr.mxu0 0.0
  %217 = vmatpush2.xpose.msra.mxu0 0.0
  %218 = vmatprep.subr.mxu0 0.0
  %219 = vmatpush2.xpose.msra.mxu0 0.0
  %220 = vmatprep.subr.mxu0 0.0
  %221 = vmatpush2.xpose.msra.mxu0 0.0
  %222 = vmatprep.subr.mxu0 0.0
  %223 = vmatpush2.xpose.msra.mxu0 0.0
  %224 = vmatprep.subr.mxu0 0.0
  %225 = vmatpush2.xpose.msra.mxu0 0.0
  %226 = vmatprep.mubr.f32.mxu0 0.0
  %227 = vmatmul.mubr.f32.gmra.mxu0 %v148
  %v228 = vpop.f32.mrf.mxu0
  %v229 = vadd.f32 0.0, %v228
  %v230 = vpop.f32.mrf.mxu0
  %231 = vmatprep.mubr.f32.mxu0 0.0
  %232 = vmatmul.mubr.f32.gmra.mxu0 %v151
  %v233 = vpop.f32.mrf.mxu0
  %v234 = vadd.f32 0.0, %v233
  %v235 = vpop.f32.mrf.mxu0
  %236 = vmatprep.mubr.f32.mxu0 0.0
  %237 = vmatmul.mubr.f32.gmra.mxu0 %v154
  %v238 = vpop.f32.mrf.mxu0
  %v239 = vadd.f32 0.0, %v238
  %v240 = vpop.f32.mrf.mxu0
  %241 = vdwg.mxu0
  %v242 = vmul.f32 %v134, 0.17677669
  %v243 = vmul.f32 %v139, 0.17677669
  %v244 = vmul.f32 %v144, 0.17677669
  %v245 = vmul.f32 %v229, 0.17677669
  %v246 = vmul.f32 %v234, 0.17677669
  %v247 = vmul.f32 %v239, 0.17677669
  %vm248 = vcmp.gt.f32.partialorder %v49, 0.0
  %vm249 = vcmp.gt.f32.partialorder %v50, 0.0
  %v250 = vsel %vm248, 1, 0
  %v251 = vsel %vm249, 1, 0
  %v252 = vlaneseq
  %v253 = vshrl.u32 %v252, 7
  %v254 = vsub.s32 0, %v253
  %v255 = vrot.slane %v250, %v254
  %v256 = vlaneseq
  %v257 = vshrl.u32 %v256, 7
  %v258 = vsub.s32 0, %v257
  %v259 = vrot.slane %v251, %v258
  %vm260 = vcmp.eq.s32.totalorder %v255, 1
  %vm261 = vcmp.eq.s32.totalorder %v259, 1
  %v262 = vsel %vm260, %v242, -1e+09
  %v263 = vsel %vm260, %v243, -1e+09
  %v264 = vsel %vm260, %v244, -1e+09
  %v265 = vsel %vm261, %v245, -1e+09
  %v266 = vsel %vm261, %v246, -1e+09
  %v267 = vsel %vm261, %v247, -1e+09
  %vm268 = vcmask 80896
  %v269 = vsel %vm268, %v262, -inf
  %270 = vmax.xlane.f32.xlu0 %v269
  %v271 = vpop.xlane.xlu0 %270
  %v272 = vsel %vm268, %v263, -inf
  %273 = vmax.xlane.f32.xlu0 %v272
  %v274 = vpop.xlane.xlu0 %273
  %vm275 = vcmask 74752
  %v276 = vsel %vm275, %v264, -inf
  %277 = vmax.xlane.f32.xlu0 %v276
  %v278 = vpop.xlane.xlu0 %277
  %v279 = vsel %vm268, %v265, -inf
  %280 = vmax.xlane.f32.xlu0 %v279
  %v281 = vpop.xlane.xlu0 %280
  %v282 = vsel %vm268, %v266, -inf
  %283 = vmax.xlane.f32.xlu0 %v282
  %v284 = vpop.xlane.xlu0 %283
  %v285 = vsel %vm275, %v267, -inf
  %286 = vmax.xlane.f32.xlu0 %v285
  %v287 = vpop.xlane.xlu0 %286
  %v288 = vsub.f32 %v262, %v271
  %v289 = vsub.f32 %v263, %v274
  %v290 = vsub.f32 %v264, %v278
  %v291 = vsub.f32 %v265, %v281
  %v292 = vsub.f32 %v266, %v284
  %v293 = vsub.f32 %v267, %v287
  %v294 = vmul.f32 %v288, 1.442695
  %v295 = vpow.pop %v294
  %v296 = vmul.f32 %v289, 1.442695
  %v297 = vpow.pop %v296
  %v298 = vmul.f32 %v290, 1.442695
  %v299 = vpow.pop %v298
  %v300 = vmul.f32 %v291, 1.442695
  %v301 = vpow.pop %v300
  %v302 = vmul.f32 %v292, 1.442695
  %v303 = vpow.pop %v302
  %v304 = vmul.f32 %v293, 1.442695
  %v305 = vpow.pop %v304
  %v306 = vsel %vm268, %v295, 0.0
  %307 = vadd.xlane.f32.xlu0 %v306
  %v308 = vpop.xlane.xlu0 %307
  %v309 = vsel %vm268, %v297, 0.0
  %310 = vadd.xlane.f32.xlu0 %v309
  %v311 = vpop.xlane.xlu0 %310
  %v312 = vsel %vm275, %v299, 0.0
  %313 = vadd.xlane.f32.xlu0 %v312
  %v314 = vpop.xlane.xlu0 %313
  %v315 = vsel %vm268, %v301, 0.0
  %316 = vadd.xlane.f32.xlu0 %v315
  %v317 = vpop.xlane.xlu0 %316
  %v318 = vsel %vm268, %v303, 0.0
  %319 = vadd.xlane.f32.xlu0 %v318
  %v320 = vpop.xlane.xlu0 %319
  %v321 = vsel %vm275, %v305, 0.0
  %322 = vadd.xlane.f32.xlu0 %v321
  %v323 = vpop.xlane.xlu0 %322
  %v324 = vrcp.pop %v308
  %v325 = vrcp.pop %v311
  %v326 = vrcp.pop %v314
  %v327 = vrcp.pop %v317
  %v328 = vrcp.pop %v320
  %v329 = vrcp.pop %v323
  %v330 = vmul.f32 %v295, %v324
  %v331 = vmul.f32 %v297, %v325
  %v332 = vmul.f32 %v299, %v326
  %v333 = vmul.f32 %v301, %v327
  %v334 = vmul.f32 %v303, %v328
  %v335 = vmul.f32 %v305, %v329
  %v337 = vsel %vm268, %v330, 0
  %v340 = vsel %vm268, %v331, 0
  %v343 = vsel %vm268, %v332, 0
  %vm345 = vcmask 1041408
  %v346 = vsel %vm345, %v44, 0
  %348 = vmatprep.subr.mxu0 0.0
  %349 = vmatpush1.msra.mxu0 0.0
  %350 = vmatprep.subr.mxu0 0.0
  %351 = vmatpush1.msra.mxu0 0.0
  %352 = vmatprep.subr.mxu0 0.0
  %353 = vmatpush1.msra.mxu0 0.0
  %354 = vmatprep.subr.mxu0 0.0
  %355 = vmatpush1.msra.mxu0 0.0
  %356 = vmatprep.subr.mxu0 0.0
  %357 = vmatpush1.msra.mxu0 0.0
  %358 = vmatprep.subr.mxu0 0.0
  %359 = vmatpush1.msra.mxu0 0.0
  %360 = vmatprep.subr.mxu0 0.0
  %361 = vmatpush1.msra.mxu0 0.0
  %362 = vmatprep.subr.mxu0 0.0
  %363 = vmatpush1.msra.mxu0 0.0
  %364 = vmatprep.subr.mxu0 0.0
  %365 = vmatpush1.msra.mxu0 0.0
  %366 = vmatprep.subr.mxu0 0.0
  %367 = vmatpush1.msra.mxu0 0.0
  %368 = vmatprep.subr.mxu0 0.0
  %369 = vmatpush1.msra.mxu0 0.0
  %370 = vmatprep.subr.mxu0 0.0
  %371 = vmatpush1.msra.mxu0 0.0
  %372 = vmatprep.subr.mxu0 0.0
  %373 = vmatpush1.msra.mxu0 0.0
  %374 = vmatprep.subr.mxu0 0.0
  %375 = vmatpush1.msra.mxu0 0.0
  %376 = vmatprep.subr.mxu0 0.0
  %377 = vmatpush1.msra.mxu0 %v346
  %378 = vmatprep.subr.mxu0 0.0
  %379 = vmatpush1.msra.mxu0 %v43
  %380 = vmatprep.subr.mxu0 0.0
  %381 = vmatpush2.msra.mxu0 0.0
  %382 = vmatprep.subr.mxu0 0.0
  %383 = vmatpush2.msra.mxu0 0.0
  %384 = vmatprep.subr.mxu0 0.0
  %385 = vmatpush2.msra.mxu0 0.0
  %386 = vmatprep.subr.mxu0 0.0
  %387 = vmatpush2.msra.mxu0 0.0
  %388 = vmatprep.subr.mxu0 0.0
  %389 = vmatpush2.msra.mxu0 0.0
  %390 = vmatprep.subr.mxu0 0.0
  %391 = vmatpush2.msra.mxu0 0.0
  %392 = vmatprep.subr.mxu0 0.0
  %393 = vmatpush2.msra.mxu0 0.0
  %394 = vmatprep.subr.mxu0 0.0
  %395 = vmatpush2.msra.mxu0 0.0
  %396 = vmatprep.subr.mxu0 0.0
  %397 = vmatpush2.msra.mxu0 0.0
  %398 = vmatprep.subr.mxu0 0.0
  %399 = vmatpush2.msra.mxu0 0.0
  %400 = vmatprep.subr.mxu0 0.0
  %401 = vmatpush2.msra.mxu0 0.0
  %402 = vmatprep.subr.mxu0 0.0
  %403 = vmatpush2.msra.mxu0 0.0
  %404 = vmatprep.subr.mxu0 0.0
  %405 = vmatpush2.msra.mxu0 0.0
  %406 = vmatprep.subr.mxu0 0.0
  %407 = vmatpush2.msra.mxu0 0.0
  %408 = vmatprep.subr.mxu0 0.0
  %409 = vmatpush2.msra.mxu0 0.0
  %410 = vmatprep.subr.mxu0 0.0
  %411 = vmatpush2.msra.mxu0 0.0
  %412 = vmatprep.mubr.f32.mxu0 0.0
  %413 = vmatmul.mubr.f32.gmra.mxu0 %v337
  %v414 = vpop.f32.mrf.mxu0
  %v415 = vadd.f32 0.0, %v414
  %v416 = vpop.f32.mrf.mxu0
  %417 = vmatprep.mubr.f32.mxu0 0.0
  %418 = vmatmul.mubr.f32.gmra.mxu0 %v340
  %v419 = vpop.f32.mrf.mxu0
  %v420 = vadd.f32 0.0, %v419
  %v421 = vpop.f32.mrf.mxu0
  %422 = vmatprep.mubr.f32.mxu0 0.0
  %423 = vmatmul.mubr.f32.gmra.mxu0 %v343
  %v424 = vpop.f32.mrf.mxu0
  %v425 = vpop.f32.mrf.mxu0
  %426 = vdwg.mxu0
  %v428 = vsel %vm268, %v333, 0
  %v431 = vsel %vm268, %v334, 0
  %v434 = vsel %vm268, %v335, 0
  %v436 = vsel %vm345, %v46, 0
  %438 = vmatprep.subr.mxu0 0.0
  %439 = vmatpush1.msra.mxu0 0.0
  %440 = vmatprep.subr.mxu0 0.0
  %441 = vmatpush1.msra.mxu0 0.0
  %442 = vmatprep.subr.mxu0 0.0
  %443 = vmatpush1.msra.mxu0 0.0
  %444 = vmatprep.subr.mxu0 0.0
  %445 = vmatpush1.msra.mxu0 0.0
  %446 = vmatprep.subr.mxu0 0.0
  %447 = vmatpush1.msra.mxu0 0.0
  %448 = vmatprep.subr.mxu0 0.0
  %449 = vmatpush1.msra.mxu0 0.0
  %450 = vmatprep.subr.mxu0 0.0
  %451 = vmatpush1.msra.mxu0 0.0
  %452 = vmatprep.subr.mxu0 0.0
  %453 = vmatpush1.msra.mxu0 0.0
  %454 = vmatprep.subr.mxu0 0.0
  %455 = vmatpush1.msra.mxu0 0.0
  %456 = vmatprep.subr.mxu0 0.0
  %457 = vmatpush1.msra.mxu0 0.0
  %458 = vmatprep.subr.mxu0 0.0
  %459 = vmatpush1.msra.mxu0 0.0
  %460 = vmatprep.subr.mxu0 0.0
  %461 = vmatpush1.msra.mxu0 0.0
  %462 = vmatprep.subr.mxu0 0.0
  %463 = vmatpush1.msra.mxu0 0.0
  %464 = vmatprep.subr.mxu0 0.0
  %465 = vmatpush1.msra.mxu0 0.0
  %466 = vmatprep.subr.mxu0 0.0
  %467 = vmatpush1.msra.mxu0 %v436
  %468 = vmatprep.subr.mxu0 0.0
  %469 = vmatpush1.msra.mxu0 %v45
  %470 = vmatprep.subr.mxu0 0.0
  %471 = vmatpush2.msra.mxu0 0.0
  %472 = vmatprep.subr.mxu0 0.0
  %473 = vmatpush2.msra.mxu0 0.0
  %474 = vmatprep.subr.mxu0 0.0
  %475 = vmatpush2.msra.mxu0 0.0
  %476 = vmatprep.subr.mxu0 0.0
  %477 = vmatpush2.msra.mxu0 0.0
  %478 = vmatprep.subr.mxu0 0.0
  %479 = vmatpush2.msra.mxu0 0.0
  %480 = vmatprep.subr.mxu0 0.0
  %481 = vmatpush2.msra.mxu0 0.0
  %482 = vmatprep.subr.mxu0 0.0
  %483 = vmatpush2.msra.mxu0 0.0
  %484 = vmatprep.subr.mxu0 0.0
  %485 = vmatpush2.msra.mxu0 0.0
  %486 = vmatprep.subr.mxu0 0.0
  %487 = vmatpush2.msra.mxu0 0.0
  %488 = vmatprep.subr.mxu0 0.0
  %489 = vmatpush2.msra.mxu0 0.0
  %490 = vmatprep.subr.mxu0 0.0
  %491 = vmatpush2.msra.mxu0 0.0
  %492 = vmatprep.subr.mxu0 0.0
  %493 = vmatpush2.msra.mxu0 0.0
  %494 = vmatprep.subr.mxu0 0.0
  %495 = vmatpush2.msra.mxu0 0.0
  %496 = vmatprep.subr.mxu0 0.0
  %497 = vmatpush2.msra.mxu0 0.0
  %498 = vmatprep.subr.mxu0 0.0
  %499 = vmatpush2.msra.mxu0 0.0
  %500 = vmatprep.subr.mxu0 0.0
  %501 = vmatpush2.msra.mxu0 0.0
  %502 = vmatprep.mubr.f32.mxu0 0.0
  %503 = vmatmul.mubr.f32.gmra.mxu0 %v428
  %v504 = vpop.f32.mrf.mxu0
  %v505 = vadd.f32 0.0, %v504
  %v506 = vpop.f32.mrf.mxu0
  %507 = vmatprep.mubr.f32.mxu0 0.0
  %508 = vmatmul.mubr.f32.gmra.mxu0 %v431
  %v509 = vpop.f32.mrf.mxu0
  %v510 = vadd.f32 0.0, %v509
  %v511 = vpop.f32.mrf.mxu0
  %512 = vmatprep.mubr.f32.mxu0 0.0
  %513 = vmatmul.mubr.f32.gmra.mxu0 %v434
  %v514 = vpop.f32.mrf.mxu0
  %v515 = vpop.f32.mrf.mxu0
  %516 = vdwg.mxu0
  %517 = vmatprep.subr.mxu0 0.0
  %518 = vmatpush1.xpose.msra.mxu0 0.0
  %519 = vmatprep.subr.mxu0 0.0
  %520 = vmatpush1.xpose.msra.mxu0 0.0
  %521 = vmatprep.subr.mxu0 0.0
  %522 = vmatpush1.xpose.msra.mxu0 0.0
  %523 = vmatprep.subr.mxu0 0.0
  %524 = vmatpush1.xpose.msra.mxu0 0.0
  %525 = vmatprep.subr.mxu0 0.0
  %526 = vmatpush1.xpose.msra.mxu0 0.0
  %527 = vmatprep.subr.mxu0 0.0
  %528 = vmatpush1.xpose.msra.mxu0 0.0
  %529 = vmatprep.subr.mxu0 0.0
  %530 = vmatpush1.xpose.msra.mxu0 0.0
  %531 = vmatprep.subr.mxu0 0.0
  %532 = vmatpush1.xpose.msra.mxu0 0.0
  %533 = vmatprep.subr.mxu0 0.0
  %534 = vmatpush1.xpose.msra.mxu0 0.0
  %535 = vmatprep.subr.mxu0 0.0
  %536 = vmatpush1.xpose.msra.mxu0 0.0
  %537 = vmatprep.subr.mxu0 0.0
  %538 = vmatpush1.xpose.msra.mxu0 0.0
  %539 = vmatprep.subr.mxu0 0.0
  %540 = vmatpush1.xpose.msra.mxu0 0.0
  %541 = vmatprep.subr.mxu0 0.0
  %542 = vmatpush1.xpose.msra.mxu0 0.0
  %543 = vmatprep.subr.mxu0 0.0
  %544 = vmatpush1.xpose.msra.mxu0 %v59
  %545 = vmatprep.subr.mxu0 0.0
  %546 = vmatpush1.xpose.msra.mxu0 %v56
  %547 = vmatprep.subr.mxu0 0.0
  %548 = vmatpush1.xpose.msra.mxu0 %v53
  %549 = vmatprep.subr.mxu0 0.0
  %550 = vmatpush2.xpose.msra.mxu0 0.0
  %551 = vmatprep.subr.mxu0 0.0
  %552 = vmatpush2.xpose.msra.mxu0 0.0
  %553 = vmatprep.subr.mxu0 0.0
  %554 = vmatpush2.xpose.msra.mxu0 0.0
  %555 = vmatprep.subr.mxu0 0.0
  %556 = vmatpush2.xpose.msra.mxu0 0.0
  %557 = vmatprep.subr.mxu0 0.0
  %558 = vmatpush2.xpose.msra.mxu0 0.0
  %559 = vmatprep.subr.mxu0 0.0
  %560 = vmatpush2.xpose.msra.mxu0 0.0
  %561 = vmatprep.subr.mxu0 0.0
  %562 = vmatpush2.xpose.msra.mxu0 0.0
  %563 = vmatprep.subr.mxu0 0.0
  %564 = vmatpush2.xpose.msra.mxu0 0.0
  %565 = vmatprep.subr.mxu0 0.0
  %566 = vmatpush2.xpose.msra.mxu0 0.0
  %567 = vmatprep.subr.mxu0 0.0
  %568 = vmatpush2.xpose.msra.mxu0 0.0
  %569 = vmatprep.subr.mxu0 0.0
  %570 = vmatpush2.xpose.msra.mxu0 0.0
  %571 = vmatprep.subr.mxu0 0.0
  %572 = vmatpush2.xpose.msra.mxu0 0.0
  %573 = vmatprep.subr.mxu0 0.0
  %574 = vmatpush2.xpose.msra.mxu0 0.0
  %575 = vmatprep.subr.mxu0 0.0
  %576 = vmatpush2.xpose.msra.mxu0 0.0
  %577 = vmatprep.subr.mxu0 0.0
  %578 = vmatpush2.xpose.msra.mxu0 0.0
  %579 = vmatprep.subr.mxu0 0.0
  %580 = vmatpush2.xpose.msra.mxu0 0.0
  %581 = vmatprep.mubr.f32.mxu0 0.0
  %582 = vmatmul.mubr.f32.gmra.mxu0 %v62
  %v583 = vpop.f32.mrf.mxu0
  %v584 = vadd.f32 0.0, %v583
  %v585 = vpop.f32.mrf.mxu0
  %586 = vmatprep.mubr.f32.mxu0 0.0
  %587 = vmatmul.mubr.f32.gmra.mxu0 %v65
  %v588 = vpop.f32.mrf.mxu0
  %v589 = vadd.f32 0.0, %v588
  %v590 = vpop.f32.mrf.mxu0
  %591 = vdwg.mxu0
  %592 = vmatprep.subr.mxu0 0.0
  %593 = vmatpush1.xpose.msra.mxu0 0.0
  %594 = vmatprep.subr.mxu0 0.0
  %595 = vmatpush1.xpose.msra.mxu0 0.0
  %596 = vmatprep.subr.mxu0 0.0
  %597 = vmatpush1.xpose.msra.mxu0 0.0
  %598 = vmatprep.subr.mxu0 0.0
  %599 = vmatpush1.xpose.msra.mxu0 0.0
  %600 = vmatprep.subr.mxu0 0.0
  %601 = vmatpush1.xpose.msra.mxu0 0.0
  %602 = vmatprep.subr.mxu0 0.0
  %603 = vmatpush1.xpose.msra.mxu0 0.0
  %604 = vmatprep.subr.mxu0 0.0
  %605 = vmatpush1.xpose.msra.mxu0 0.0
  %606 = vmatprep.subr.mxu0 0.0
  %607 = vmatpush1.xpose.msra.mxu0 0.0
  %608 = vmatprep.subr.mxu0 0.0
  %609 = vmatpush1.xpose.msra.mxu0 0.0
  %610 = vmatprep.subr.mxu0 0.0
  %611 = vmatpush1.xpose.msra.mxu0 0.0
  %612 = vmatprep.subr.mxu0 0.0
  %613 = vmatpush1.xpose.msra.mxu0 0.0
  %614 = vmatprep.subr.mxu0 0.0
  %615 = vmatpush1.xpose.msra.mxu0 0.0
  %616 = vmatprep.subr.mxu0 0.0
  %617 = vmatpush1.xpose.msra.mxu0 0.0
  %618 = vmatprep.subr.mxu0 0.0
  %619 = vmatpush1.xpose.msra.mxu0 %v154
  %620 = vmatprep.subr.mxu0 0.0
  %621 = vmatpush1.xpose.msra.mxu0 %v151
  %622 = vmatprep.subr.mxu0 0.0
  %623 = vmatpush1.xpose.msra.mxu0 %v148
  %624 = vmatprep.subr.mxu0 0.0
  %625 = vmatpush2.xpose.msra.mxu0 0.0
  %626 = vmatprep.subr.mxu0 0.0
  %627 = vmatpush2.xpose.msra.mxu0 0.0
  %628 = vmatprep.subr.mxu0 0.0
  %629 = vmatpush2.xpose.msra.mxu0 0.0
  %630 = vmatprep.subr.mxu0 0.0
  %631 = vmatpush2.xpose.msra.mxu0 0.0
  %632 = vmatprep.subr.mxu0 0.0
  %633 = vmatpush2.xpose.msra.mxu0 0.0
  %634 = vmatprep.subr.mxu0 0.0
  %635 = vmatpush2.xpose.msra.mxu0 0.0
  %636 = vmatprep.subr.mxu0 0.0
  %637 = vmatpush2.xpose.msra.mxu0 0.0
  %638 = vmatprep.subr.mxu0 0.0
  %639 = vmatpush2.xpose.msra.mxu0 0.0
  %640 = vmatprep.subr.mxu0 0.0
  %641 = vmatpush2.xpose.msra.mxu0 0.0
  %642 = vmatprep.subr.mxu0 0.0
  %643 = vmatpush2.xpose.msra.mxu0 0.0
  %644 = vmatprep.subr.mxu0 0.0
  %645 = vmatpush2.xpose.msra.mxu0 0.0
  %646 = vmatprep.subr.mxu0 0.0
  %647 = vmatpush2.xpose.msra.mxu0 0.0
  %648 = vmatprep.subr.mxu0 0.0
  %649 = vmatpush2.xpose.msra.mxu0 0.0
  %650 = vmatprep.subr.mxu0 0.0
  %651 = vmatpush2.xpose.msra.mxu0 0.0
  %652 = vmatprep.subr.mxu0 0.0
  %653 = vmatpush2.xpose.msra.mxu0 0.0
  %654 = vmatprep.subr.mxu0 0.0
  %655 = vmatpush2.xpose.msra.mxu0 0.0
  %656 = vmatprep.mubr.f32.mxu0 0.0
  %657 = vmatmul.mubr.f32.gmra.mxu0 %v157
  %v658 = vpop.f32.mrf.mxu0
  %v659 = vadd.f32 0.0, %v658
  %v660 = vpop.f32.mrf.mxu0
  %661 = vmatprep.mubr.f32.mxu0 0.0
  %662 = vmatmul.mubr.f32.gmra.mxu0 %v160
  %v663 = vpop.f32.mrf.mxu0
  %v664 = vadd.f32 0.0, %v663
  %v665 = vpop.f32.mrf.mxu0
  %666 = vdwg.mxu0
  %v667 = vmul.f32 %v584, 0.17677669
  %v668 = vmul.f32 %v589, 0.17677669
  %v669 = vmul.f32 %v659, 0.17677669
  %v670 = vmul.f32 %v664, 0.17677669
  %vm671 = vcmp.gt.f32.partialorder %v47, 0.0
  %vm672 = vcmp.gt.f32.partialorder %v48, 0.0
  %v673 = vsel %vm671, 1, 0
  %v674 = vsel %vm672, 1, 0
  %v675 = vlaneseq
  %v676 = vshrl.u32 %v675, 7
  %v677 = vsub.s32 0, %v676
  %v678 = vrot.slane %v673, %v677
  %v679 = vlaneseq
  %v680 = vshrl.u32 %v679, 7
  %v681 = vsub.s32 0, %v680
  %v682 = vrot.slane %v674, %v681
  %vm683 = vcmp.eq.s32.totalorder %v678, 1
  %vm684 = vcmp.eq.s32.totalorder %v682, 1
  %v685 = vsel %vm683, %v667, -1e+09
  %v686 = vsel %vm683, %v668, -1e+09
  %v687 = vsel %vm684, %v669, -1e+09
  %v688 = vsel %vm684, %v670, -1e+09
  %vm689 = vcmask 146432
  %v690 = vsel %vm689, %v685, -inf
  %691 = vmax.xlane.f32.xlu0 %v690
  %v692 = vpop.xlane.xlu0 %691
  %vm693 = vcmask 140288
  %v694 = vsel %vm693, %v686, -inf
  %695 = vmax.xlane.f32.xlu0 %v694
  %v696 = vpop.xlane.xlu0 %695
  %v697 = vsel %vm689, %v687, -inf
  %698 = vmax.xlane.f32.xlu0 %v697
  %v699 = vpop.xlane.xlu0 %698
  %v700 = vsel %vm693, %v688, -inf
  %701 = vmax.xlane.f32.xlu0 %v700
  %v702 = vpop.xlane.xlu0 %701
  %v703 = vsub.f32 %v685, %v692
  %v704 = vsub.f32 %v686, %v696
  %v705 = vsub.f32 %v687, %v699
  %v706 = vsub.f32 %v688, %v702
  %v707 = vmul.f32 %v703, 1.442695
  %v708 = vpow.pop %v707
  %v709 = vmul.f32 %v704, 1.442695
  %v710 = vpow.pop %v709
  %v711 = vmul.f32 %v705, 1.442695
  %v712 = vpow.pop %v711
  %v713 = vmul.f32 %v706, 1.442695
  %v714 = vpow.pop %v713
  %v715 = vsel %vm689, %v708, 0.0
  %716 = vadd.xlane.f32.xlu0 %v715
  %v717 = vpop.xlane.xlu0 %716
  %v718 = vsel %vm693, %v710, 0.0
  %719 = vadd.xlane.f32.xlu0 %v718
  %v720 = vpop.xlane.xlu0 %719
  %v721 = vsel %vm689, %v712, 0.0
  %722 = vadd.xlane.f32.xlu0 %v721
  %v723 = vpop.xlane.xlu0 %722
  %v724 = vsel %vm693, %v714, 0.0
  %725 = vadd.xlane.f32.xlu0 %v724
  %v726 = vpop.xlane.xlu0 %725
  %v727 = vrcp.pop %v717
  %v728 = vrcp.pop %v720
  %v729 = vrcp.pop %v723
  %v730 = vrcp.pop %v726
  %v731 = vmul.f32 %v708, %v727
  %v732 = vmul.f32 %v710, %v728
  %v733 = vmul.f32 %v712, %v729
  %v734 = vmul.f32 %v714, %v730
  %v736 = vsel %vm689, %v731, 0
  %v739 = vsel %vm689, %v732, 0
  %v741 = vsel %vm345, %v39, 0
  %743 = vmatprep.subr.mxu0 0.0
  %744 = vmatpush1.msra.mxu0 0.0
  %745 = vmatprep.subr.mxu0 0.0
  %746 = vmatpush1.msra.mxu0 0.0
  %747 = vmatprep.subr.mxu0 0.0
  %748 = vmatpush1.msra.mxu0 0.0
  %749 = vmatprep.subr.mxu0 0.0
  %750 = vmatpush1.msra.mxu0 0.0
  %751 = vmatprep.subr.mxu0 0.0
  %752 = vmatpush1.msra.mxu0 0.0
  %753 = vmatprep.subr.mxu0 0.0
  %754 = vmatpush1.msra.mxu0 0.0
  %755 = vmatprep.subr.mxu0 0.0
  %756 = vmatpush1.msra.mxu0 0.0
  %757 = vmatprep.subr.mxu0 0.0
  %758 = vmatpush1.msra.mxu0 0.0
  %759 = vmatprep.subr.mxu0 0.0
  %760 = vmatpush1.msra.mxu0 0.0
  %761 = vmatprep.subr.mxu0 0.0
  %762 = vmatpush1.msra.mxu0 0.0
  %763 = vmatprep.subr.mxu0 0.0
  %764 = vmatpush1.msra.mxu0 0.0
  %765 = vmatprep.subr.mxu0 0.0
  %766 = vmatpush1.msra.mxu0 0.0
  %767 = vmatprep.subr.mxu0 0.0
  %768 = vmatpush1.msra.mxu0 0.0
  %769 = vmatprep.subr.mxu0 0.0
  %770 = vmatpush1.msra.mxu0 %v741
  %771 = vmatprep.subr.mxu0 0.0
  %772 = vmatpush1.msra.mxu0 %v38
  %773 = vmatprep.subr.mxu0 0.0
  %774 = vmatpush1.msra.mxu0 %v37
  %775 = vmatprep.subr.mxu0 0.0
  %776 = vmatpush2.msra.mxu0 0.0
  %777 = vmatprep.subr.mxu0 0.0
  %778 = vmatpush2.msra.mxu0 0.0
  %779 = vmatprep.subr.mxu0 0.0
  %780 = vmatpush2.msra.mxu0 0.0
  %781 = vmatprep.subr.mxu0 0.0
  %782 = vmatpush2.msra.mxu0 0.0
  %783 = vmatprep.subr.mxu0 0.0
  %784 = vmatpush2.msra.mxu0 0.0
  %785 = vmatprep.subr.mxu0 0.0
  %786 = vmatpush2.msra.mxu0 0.0
  %787 = vmatprep.subr.mxu0 0.0
  %788 = vmatpush2.msra.mxu0 0.0
  %789 = vmatprep.subr.mxu0 0.0
  %790 = vmatpush2.msra.mxu0 0.0
  %791 = vmatprep.subr.mxu0 0.0
  %792 = vmatpush2.msra.mxu0 0.0
  %793 = vmatprep.subr.mxu0 0.0
  %794 = vmatpush2.msra.mxu0 0.0
  %795 = vmatprep.subr.mxu0 0.0
  %796 = vmatpush2.msra.mxu0 0.0
  %797 = vmatprep.subr.mxu0 0.0
  %798 = vmatpush2.msra.mxu0 0.0
  %799 = vmatprep.subr.mxu0 0.0
  %800 = vmatpush2.msra.mxu0 0.0
  %801 = vmatprep.subr.mxu0 0.0
  %802 = vmatpush2.msra.mxu0 0.0
  %803 = vmatprep.subr.mxu0 0.0
  %804 = vmatpush2.msra.mxu0 0.0
  %805 = vmatprep.subr.mxu0 0.0
  %806 = vmatpush2.msra.mxu0 0.0
  %807 = vmatprep.mubr.f32.mxu0 0.0
  %808 = vmatmul.mubr.f32.gmra.mxu0 %v736
  %v809 = vpop.f32.mrf.mxu0
  %v810 = vadd.f32 0.0, %v809
  %v811 = vpop.f32.mrf.mxu0
  %812 = vmatprep.mubr.f32.mxu0 0.0
  %813 = vmatmul.mubr.f32.gmra.mxu0 %v739
  %v814 = vpop.f32.mrf.mxu0
  %v815 = vpop.f32.mrf.mxu0
  %816 = vdwg.mxu0
  %v818 = vsel %vm689, %v733, 0
  %v821 = vsel %vm689, %v734, 0
  %v823 = vsel %vm345, %v42, 0
  %825 = vmatprep.subr.mxu0 0.0
  %826 = vmatpush1.msra.mxu0 0.0
  %827 = vmatprep.subr.mxu0 0.0
  %828 = vmatpush1.msra.mxu0 0.0
  %829 = vmatprep.subr.mxu0 0.0
  %830 = vmatpush1.msra.mxu0 0.0
  %831 = vmatprep.subr.mxu0 0.0
  %832 = vmatpush1.msra.mxu0 0.0
  %833 = vmatprep.subr.mxu0 0.0
  %834 = vmatpush1.msra.mxu0 0.0
  %835 = vmatprep.subr.mxu0 0.0
  %836 = vmatpush1.msra.mxu0 0.0
  %837 = vmatprep.subr.mxu0 0.0
  %838 = vmatpush1.msra.mxu0 0.0
  %839 = vmatprep.subr.mxu0 0.0
  %840 = vmatpush1.msra.mxu0 0.0
  %841 = vmatprep.subr.mxu0 0.0
  %842 = vmatpush1.msra.mxu0 0.0
  %843 = vmatprep.subr.mxu0 0.0
  %844 = vmatpush1.msra.mxu0 0.0
  %845 = vmatprep.subr.mxu0 0.0
  %846 = vmatpush1.msra.mxu0 0.0
  %847 = vmatprep.subr.mxu0 0.0
  %848 = vmatpush1.msra.mxu0 0.0
  %849 = vmatprep.subr.mxu0 0.0
  %850 = vmatpush1.msra.mxu0 0.0
  %851 = vmatprep.subr.mxu0 0.0
  %852 = vmatpush1.msra.mxu0 %v823
  %853 = vmatprep.subr.mxu0 0.0
  %854 = vmatpush1.msra.mxu0 %v41
  %855 = vmatprep.subr.mxu0 0.0
  %856 = vmatpush1.msra.mxu0 %v40
  %857 = vmatprep.subr.mxu0 0.0
  %858 = vmatpush2.msra.mxu0 0.0
  %859 = vmatprep.subr.mxu0 0.0
  %860 = vmatpush2.msra.mxu0 0.0
  %861 = vmatprep.subr.mxu0 0.0
  %862 = vmatpush2.msra.mxu0 0.0
  %863 = vmatprep.subr.mxu0 0.0
  %864 = vmatpush2.msra.mxu0 0.0
  %865 = vmatprep.subr.mxu0 0.0
  %866 = vmatpush2.msra.mxu0 0.0
  %867 = vmatprep.subr.mxu0 0.0
  %868 = vmatpush2.msra.mxu0 0.0
  %869 = vmatprep.subr.mxu0 0.0
  %870 = vmatpush2.msra.mxu0 0.0
  %871 = vmatprep.subr.mxu0 0.0
  %872 = vmatpush2.msra.mxu0 0.0
  %873 = vmatprep.subr.mxu0 0.0
  %874 = vmatpush2.msra.mxu0 0.0
  %875 = vmatprep.subr.mxu0 0.0
  %876 = vmatpush2.msra.mxu0 0.0
  %877 = vmatprep.subr.mxu0 0.0
  %878 = vmatpush2.msra.mxu0 0.0
  %879 = vmatprep.subr.mxu0 0.0
  %880 = vmatpush2.msra.mxu0 0.0
  %881 = vmatprep.subr.mxu0 0.0
  %882 = vmatpush2.msra.mxu0 0.0
  %883 = vmatprep.subr.mxu0 0.0
  %884 = vmatpush2.msra.mxu0 0.0
  %885 = vmatprep.subr.mxu0 0.0
  %886 = vmatpush2.msra.mxu0 0.0
  %887 = vmatprep.subr.mxu0 0.0
  %888 = vmatpush2.msra.mxu0 0.0
  %889 = vmatprep.mubr.f32.mxu0 0.0
  %890 = vmatmul.mubr.f32.gmra.mxu0 %v818
  %v891 = vpop.f32.mrf.mxu0
  %v892 = vadd.f32 0.0, %v891
  %v893 = vpop.f32.mrf.mxu0
  %894 = vmatprep.mubr.f32.mxu0 0.0
  %895 = vmatmul.mubr.f32.gmra.mxu0 %v821
  %v896 = vpop.f32.mrf.mxu0
  %v897 = vpop.f32.mrf.mxu0
  %898 = vdwg.mxu0
  %v899 = vld [vmem:[%s4] sm:$0xff]
  %v900 = vld [vmem:[%s4 + $0x8] sm:$0xff]
  %v901 = vld [vmem:[%s4 + $0x10] sm:$0xff]
  %v902 = vld [vmem:[%s4 + $0x18] sm:$0xff]
  %v903 = vld [vmem:[%s4 + $0x20] sm:$0xff]
  %v904 = vld [vmem:[%s4 + $0x28] sm:$0xff]
  %v905 = vld [vmem:[%s4 + $0x30] sm:$0xff]
  %v906 = vld [vmem:[%s4 + $0x38] sm:$0xff]
  %v907 = vld [vmem:[%s5] sm:$0xff]
  %v908 = vld [vmem:[%s5 + $0x8] sm:$0xff]
  %v909 = vld [vmem:[%s5 + $0x10] sm:$0xff]
  %v910 = vld [vmem:[%s5 + $0x18] sm:$0xff]
  %v911 = vld [vmem:[%s5 + $0x20] sm:$0xff]
  %v912 = vld [vmem:[%s5 + $0x28] sm:$0xff]
  %v913 = vld [vmem:[%s5 + $0x30] sm:$0xff]
  %v914 = vld [vmem:[%s5 + $0x38] sm:$0xff]
  %v916 = vsel %vm51, %v415, 0
  %v919 = vsel %vm51, %v420, 0
  %921 = vmatprep.subr.mxu0 0.0
  %922 = vmatpush1.msra.mxu0 0.0
  %923 = vmatprep.subr.mxu0 0.0
  %924 = vmatpush1.msra.mxu0 0.0
  %925 = vmatprep.subr.mxu0 0.0
  %926 = vmatpush1.msra.mxu0 0.0
  %927 = vmatprep.subr.mxu0 0.0
  %928 = vmatpush1.msra.mxu0 0.0
  %929 = vmatprep.subr.mxu0 0.0
  %930 = vmatpush1.msra.mxu0 0.0
  %931 = vmatprep.subr.mxu0 0.0
  %932 = vmatpush1.msra.mxu0 0.0
  %933 = vmatprep.subr.mxu0 0.0
  %934 = vmatpush1.msra.mxu0 0.0
  %935 = vmatprep.subr.mxu0 0.0
  %936 = vmatpush1.msra.mxu0 0.0
  %937 = vmatprep.subr.mxu0 0.0
  %938 = vmatpush1.msra.mxu0 0.0
  %939 = vmatprep.subr.mxu0 0.0
  %940 = vmatpush1.msra.mxu0 0.0
  %941 = vmatprep.subr.mxu0 0.0
  %942 = vmatpush1.msra.mxu0 0.0
  %943 = vmatprep.subr.mxu0 0.0
  %944 = vmatpush1.msra.mxu0 0.0
  %945 = vmatprep.subr.mxu0 0.0
  %946 = vmatpush1.msra.mxu0 %v910
  %947 = vmatprep.subr.mxu0 0.0
  %948 = vmatpush1.msra.mxu0 %v909
  %949 = vmatprep.subr.mxu0 0.0
  %950 = vmatpush1.msra.mxu0 %v908
  %951 = vmatprep.subr.mxu0 0.0
  %952 = vmatpush1.msra.mxu0 %v907
  %953 = vmatprep.subr.mxu0 0.0
  %954 = vmatpush2.msra.mxu0 0.0
  %955 = vmatprep.subr.mxu0 0.0
  %956 = vmatpush2.msra.mxu0 0.0
  %957 = vmatprep.subr.mxu0 0.0
  %958 = vmatpush2.msra.mxu0 0.0
  %959 = vmatprep.subr.mxu0 0.0
  %960 = vmatpush2.msra.mxu0 0.0
  %961 = vmatprep.subr.mxu0 0.0
  %962 = vmatpush2.msra.mxu0 0.0
  %963 = vmatprep.subr.mxu0 0.0
  %964 = vmatpush2.msra.mxu0 0.0
  %965 = vmatprep.subr.mxu0 0.0
  %966 = vmatpush2.msra.mxu0 0.0
  %967 = vmatprep.subr.mxu0 0.0
  %968 = vmatpush2.msra.mxu0 0.0
  %969 = vmatprep.subr.mxu0 0.0
  %970 = vmatpush2.msra.mxu0 0.0
  %971 = vmatprep.subr.mxu0 0.0
  %972 = vmatpush2.msra.mxu0 0.0
  %973 = vmatprep.subr.mxu0 0.0
  %974 = vmatpush2.msra.mxu0 0.0
  %975 = vmatprep.subr.mxu0 0.0
  %976 = vmatpush2.msra.mxu0 0.0
  %977 = vmatprep.subr.mxu0 0.0
  %978 = vmatpush2.msra.mxu0 0.0
  %979 = vmatprep.subr.mxu0 0.0
  %980 = vmatpush2.msra.mxu0 0.0
  %981 = vmatprep.subr.mxu0 0.0
  %982 = vmatpush2.msra.mxu0 0.0
  %983 = vmatprep.subr.mxu0 0.0
  %984 = vmatpush2.msra.mxu0 0.0
  %985 = vmatprep.mubr.f32.mxu0 0.0
  %986 = vmatmul.mubr.f32.gmra.mxu0 %v916
  %v987 = vpop.f32.mrf.mxu0
  %v988 = vadd.f32 0.0, %v987
  %v989 = vpop.f32.mrf.mxu0
  %990 = vmatprep.mubr.f32.mxu0 0.0
  %991 = vmatmul.mubr.f32.gmra.mxu0 %v919
  %v992 = vpop.f32.mrf.mxu0
  %v993 = vadd.f32 0.0, %v992
  %v994 = vpop.f32.mrf.mxu0
  %995 = vdwg.mxu0
  %v997 = vsel %vm51, %v505, 0
  %v1000 = vsel %vm51, %v510, 0
  %1002 = vmatprep.subr.mxu0 0.0
  %1003 = vmatpush1.msra.mxu0 0.0
  %1004 = vmatprep.subr.mxu0 0.0
  %1005 = vmatpush1.msra.mxu0 0.0
  %1006 = vmatprep.subr.mxu0 0.0
  %1007 = vmatpush1.msra.mxu0 0.0
  %1008 = vmatprep.subr.mxu0 0.0
  %1009 = vmatpush1.msra.mxu0 0.0
  %1010 = vmatprep.subr.mxu0 0.0
  %1011 = vmatpush1.msra.mxu0 0.0
  %1012 = vmatprep.subr.mxu0 0.0
  %1013 = vmatpush1.msra.mxu0 0.0
  %1014 = vmatprep.subr.mxu0 0.0
  %1015 = vmatpush1.msra.mxu0 0.0
  %1016 = vmatprep.subr.mxu0 0.0
  %1017 = vmatpush1.msra.mxu0 0.0
  %1018 = vmatprep.subr.mxu0 0.0
  %1019 = vmatpush1.msra.mxu0 0.0
  %1020 = vmatprep.subr.mxu0 0.0
  %1021 = vmatpush1.msra.mxu0 0.0
  %1022 = vmatprep.subr.mxu0 0.0
  %1023 = vmatpush1.msra.mxu0 0.0
  %1024 = vmatprep.subr.mxu0 0.0
  %1025 = vmatpush1.msra.mxu0 0.0
  %1026 = vmatprep.subr.mxu0 0.0
  %1027 = vmatpush1.msra.mxu0 %v914
  %1028 = vmatprep.subr.mxu0 0.0
  %1029 = vmatpush1.msra.mxu0 %v913
  %1030 = vmatprep.subr.mxu0 0.0
  %1031 = vmatpush1.msra.mxu0 %v912
  %1032 = vmatprep.subr.mxu0 0.0
  %1033 = vmatpush1.msra.mxu0 %v911
  %1034 = vmatprep.subr.mxu0 0.0
  %1035 = vmatpush2.msra.mxu0 0.0
  %1036 = vmatprep.subr.mxu0 0.0
  %1037 = vmatpush2.msra.mxu0 0.0
  %1038 = vmatprep.subr.mxu0 0.0
  %1039 = vmatpush2.msra.mxu0 0.0
  %1040 = vmatprep.subr.mxu0 0.0
  %1041 = vmatpush2.msra.mxu0 0.0
  %1042 = vmatprep.subr.mxu0 0.0
  %1043 = vmatpush2.msra.mxu0 0.0
  %1044 = vmatprep.subr.mxu0 0.0
  %1045 = vmatpush2.msra.mxu0 0.0
  %1046 = vmatprep.subr.mxu0 0.0
  %1047 = vmatpush2.msra.mxu0 0.0
  %1048 = vmatprep.subr.mxu0 0.0
  %1049 = vmatpush2.msra.mxu0 0.0
  %1050 = vmatprep.subr.mxu0 0.0
  %1051 = vmatpush2.msra.mxu0 0.0
  %1052 = vmatprep.subr.mxu0 0.0
  %1053 = vmatpush2.msra.mxu0 0.0
  %1054 = vmatprep.subr.mxu0 0.0
  %1055 = vmatpush2.msra.mxu0 0.0
  %1056 = vmatprep.subr.mxu0 0.0
  %1057 = vmatpush2.msra.mxu0 0.0
  %1058 = vmatprep.subr.mxu0 0.0
  %1059 = vmatpush2.msra.mxu0 0.0
  %1060 = vmatprep.subr.mxu0 0.0
  %1061 = vmatpush2.msra.mxu0 0.0
  %1062 = vmatprep.subr.mxu0 0.0
  %1063 = vmatpush2.msra.mxu0 0.0
  %1064 = vmatprep.subr.mxu0 0.0
  %1065 = vmatpush2.msra.mxu0 0.0
  %1066 = vmatprep.mubr.f32.mxu0 0.0
  %1067 = vmatmul.mubr.f32.gmra.mxu0 %v997
  %v1068 = vpop.f32.mrf.mxu0
  %v1069 = vadd.f32 0.0, %v1068
  %v1070 = vpop.f32.mrf.mxu0
  %1071 = vmatprep.mubr.f32.mxu0 0.0
  %1072 = vmatmul.mubr.f32.gmra.mxu0 %v1000
  %v1073 = vpop.f32.mrf.mxu0
  %v1074 = vadd.f32 0.0, %v1073
  %v1075 = vpop.f32.mrf.mxu0
  %1076 = vdwg.mxu0
  %1077 = vmatprep.subr.mxu0 0.0
  %1078 = vmatpush1.msra.mxu0 0.0
  %1079 = vmatprep.subr.mxu0 0.0
  %1080 = vmatpush1.msra.mxu0 0.0
  %1081 = vmatprep.subr.mxu0 0.0
  %1082 = vmatpush1.msra.mxu0 0.0
  %1083 = vmatprep.subr.mxu0 0.0
  %1084 = vmatpush1.msra.mxu0 0.0
  %1085 = vmatprep.subr.mxu0 0.0
  %1086 = vmatpush1.msra.mxu0 0.0
  %1087 = vmatprep.subr.mxu0 0.0
  %1088 = vmatpush1.msra.mxu0 0.0
  %1089 = vmatprep.subr.mxu0 0.0
  %1090 = vmatpush1.msra.mxu0 0.0
  %1091 = vmatprep.subr.mxu0 0.0
  %1092 = vmatpush1.msra.mxu0 0.0
  %1093 = vmatprep.subr.mxu0 0.0
  %1094 = vmatpush1.msra.mxu0 0.0
  %1095 = vmatprep.subr.mxu0 0.0
  %1096 = vmatpush1.msra.mxu0 0.0
  %1097 = vmatprep.subr.mxu0 0.0
  %1098 = vmatpush1.msra.mxu0 0.0
  %1099 = vmatprep.subr.mxu0 0.0
  %1100 = vmatpush1.msra.mxu0 0.0
  %1101 = vmatprep.subr.mxu0 0.0
  %1102 = vmatpush1.msra.mxu0 %v902
  %1103 = vmatprep.subr.mxu0 0.0
  %1104 = vmatpush1.msra.mxu0 %v901
  %1105 = vmatprep.subr.mxu0 0.0
  %1106 = vmatpush1.msra.mxu0 %v900
  %1107 = vmatprep.subr.mxu0 0.0
  %1108 = vmatpush1.msra.mxu0 %v899
  %1109 = vmatprep.subr.mxu0 0.0
  %1110 = vmatpush2.msra.mxu0 0.0
  %1111 = vmatprep.subr.mxu0 0.0
  %1112 = vmatpush2.msra.mxu0 0.0
  %1113 = vmatprep.subr.mxu0 0.0
  %1114 = vmatpush2.msra.mxu0 0.0
  %1115 = vmatprep.subr.mxu0 0.0
  %1116 = vmatpush2.msra.mxu0 0.0
  %1117 = vmatprep.subr.mxu0 0.0
  %1118 = vmatpush2.msra.mxu0 0.0
  %1119 = vmatprep.subr.mxu0 0.0
  %1120 = vmatpush2.msra.mxu0 0.0
  %1121 = vmatprep.subr.mxu0 0.0
  %1122 = vmatpush2.msra.mxu0 0.0
  %1123 = vmatprep.subr.mxu0 0.0
  %1124 = vmatpush2.msra.mxu0 0.0
  %1125 = vmatprep.subr.mxu0 0.0
  %1126 = vmatpush2.msra.mxu0 0.0
  %1127 = vmatprep.subr.mxu0 0.0
  %1128 = vmatpush2.msra.mxu0 0.0
  %1129 = vmatprep.subr.mxu0 0.0
  %1130 = vmatpush2.msra.mxu0 0.0
  %1131 = vmatprep.subr.mxu0 0.0
  %1132 = vmatpush2.msra.mxu0 0.0
  %1133 = vmatprep.subr.mxu0 0.0
  %1134 = vmatpush2.msra.mxu0 0.0
  %1135 = vmatprep.subr.mxu0 0.0
  %1136 = vmatpush2.msra.mxu0 0.0
  %1137 = vmatprep.subr.mxu0 0.0
  %1138 = vmatpush2.msra.mxu0 0.0
  %1139 = vmatprep.subr.mxu0 0.0
  %1140 = vmatpush2.msra.mxu0 0.0
  %1141 = vmatprep.mubr.f32.mxu0 0.0
  %1142 = vmatmul.mubr.f32.gmra.mxu0 %v53
  %v1143 = vpop.f32.mrf.mxu0
  %v1144 = vadd.f32 %v988, %v1143
  %v1145 = vpop.f32.mrf.mxu0
  %1146 = vmatprep.mubr.f32.mxu0 0.0
  %1147 = vmatmul.mubr.f32.gmra.mxu0 %v56
  %v1148 = vpop.f32.mrf.mxu0
  %v1149 = vadd.f32 %v993, %v1148
  %v1150 = vpop.f32.mrf.mxu0
  %1151 = vdwg.mxu0
  %1152 = vmatprep.subr.mxu0 0.0
  %1153 = vmatpush1.msra.mxu0 0.0
  %1154 = vmatprep.subr.mxu0 0.0
  %1155 = vmatpush1.msra.mxu0 0.0
  %1156 = vmatprep.subr.mxu0 0.0
  %1157 = vmatpush1.msra.mxu0 0.0
  %1158 = vmatprep.subr.mxu0 0.0
  %1159 = vmatpush1.msra.mxu0 0.0
  %1160 = vmatprep.subr.mxu0 0.0
  %1161 = vmatpush1.msra.mxu0 0.0
  %1162 = vmatprep.subr.mxu0 0.0
  %1163 = vmatpush1.msra.mxu0 0.0
  %1164 = vmatprep.subr.mxu0 0.0
  %1165 = vmatpush1.msra.mxu0 0.0
  %1166 = vmatprep.subr.mxu0 0.0
  %1167 = vmatpush1.msra.mxu0 0.0
  %1168 = vmatprep.subr.mxu0 0.0
  %1169 = vmatpush1.msra.mxu0 0.0
  %1170 = vmatprep.subr.mxu0 0.0
  %1171 = vmatpush1.msra.mxu0 0.0
  %1172 = vmatprep.subr.mxu0 0.0
  %1173 = vmatpush1.msra.mxu0 0.0
  %1174 = vmatprep.subr.mxu0 0.0
  %1175 = vmatpush1.msra.mxu0 0.0
  %1176 = vmatprep.subr.mxu0 0.0
  %1177 = vmatpush1.msra.mxu0 %v906
  %1178 = vmatprep.subr.mxu0 0.0
  %1179 = vmatpush1.msra.mxu0 %v905
  %1180 = vmatprep.subr.mxu0 0.0
  %1181 = vmatpush1.msra.mxu0 %v904
  %1182 = vmatprep.subr.mxu0 0.0
  %1183 = vmatpush1.msra.mxu0 %v903
  %1184 = vmatprep.subr.mxu0 0.0
  %1185 = vmatpush2.msra.mxu0 0.0
  %1186 = vmatprep.subr.mxu0 0.0
  %1187 = vmatpush2.msra.mxu0 0.0
  %1188 = vmatprep.subr.mxu0 0.0
  %1189 = vmatpush2.msra.mxu0 0.0
  %1190 = vmatprep.subr.mxu0 0.0
  %1191 = vmatpush2.msra.mxu0 0.0
  %1192 = vmatprep.subr.mxu0 0.0
  %1193 = vmatpush2.msra.mxu0 0.0
  %1194 = vmatprep.subr.mxu0 0.0
  %1195 = vmatpush2.msra.mxu0 0.0
  %1196 = vmatprep.subr.mxu0 0.0
  %1197 = vmatpush2.msra.mxu0 0.0
  %1198 = vmatprep.subr.mxu0 0.0
  %1199 = vmatpush2.msra.mxu0 0.0
  %1200 = vmatprep.subr.mxu0 0.0
  %1201 = vmatpush2.msra.mxu0 0.0
  %1202 = vmatprep.subr.mxu0 0.0
  %1203 = vmatpush2.msra.mxu0 0.0
  %1204 = vmatprep.subr.mxu0 0.0
  %1205 = vmatpush2.msra.mxu0 0.0
  %1206 = vmatprep.subr.mxu0 0.0
  %1207 = vmatpush2.msra.mxu0 0.0
  %1208 = vmatprep.subr.mxu0 0.0
  %1209 = vmatpush2.msra.mxu0 0.0
  %1210 = vmatprep.subr.mxu0 0.0
  %1211 = vmatpush2.msra.mxu0 0.0
  %1212 = vmatprep.subr.mxu0 0.0
  %1213 = vmatpush2.msra.mxu0 0.0
  %1214 = vmatprep.subr.mxu0 0.0
  %1215 = vmatpush2.msra.mxu0 0.0
  %1216 = vmatprep.mubr.f32.mxu0 0.0
  %1217 = vmatmul.mubr.f32.gmra.mxu0 %v148
  %v1218 = vpop.f32.mrf.mxu0
  %v1219 = vadd.f32 %v1069, %v1218
  %v1220 = vpop.f32.mrf.mxu0
  %1221 = vmatprep.mubr.f32.mxu0 0.0
  %1222 = vmatmul.mubr.f32.gmra.mxu0 %v151
  %v1223 = vpop.f32.mrf.mxu0
  %v1224 = vadd.f32 %v1074, %v1223
  %v1225 = vpop.f32.mrf.mxu0
  %1226 = vdwg.mxu0
  %v1227 = vld [vmem:[%s6] sm:$0x1]
  %v1229 = vlaneseq
  %v1230 = vshrl.u32 %v1229, 7
  %v1231 = vsub.s32 0, %v1230
  %v1232 = vrot.slane %v1227, %v1231
  %v1234 = vadd.f32 %v1144, %v1232
  %v1235 = vadd.f32 %v1149, %v1232
  %v1236 = vadd.f32 %v1219, %v1232
  %v1237 = vadd.f32 %v1224, %v1232
  %v1238 = vmax.f32 %v1234, 0.0
  %v1239 = vmax.f32 %v1235, 0.0
  %v1240 = vmax.f32 %v1236, 0.0
  %v1241 = vmax.f32 %v1237, 0.0
  %v1242 = vadd.f32 %v37, %v1238
  %v1243 = vadd.f32 %v38, %v1239
  %v1244 = vadd.f32 %v40, %v1240
  %v1245 = vadd.f32 %v41, %v1241
  %1246 = vst.msk [vmem:[%s10] sm:$0xff] %vm51, %v1242
  %1247 = vst.msk [vmem:[%s10 + $0x8] sm:$0xff] %vm51, %v1243
  %1248 = vst.msk [vmem:[%s10 + $0x10] sm:$0xff] %vm51, %v1244
  %1249 = vst.msk [vmem:[%s10 + $0x18] sm:$0xff] %vm51, %v1245
  %v1250 = vld [vmem:[%s7] sm:$0xff]
  %v1251 = vld [vmem:[%s7 + $0x8] sm:$0xff]
  %v1252 = vld [vmem:[%s7 + $0x10] sm:$0xff]
  %v1253 = vld [vmem:[%s7 + $0x18] sm:$0xff]
  %v1254 = vld [vmem:[%s7 + $0x20] sm:$0xff]
  %v1255 = vld [vmem:[%s7 + $0x28] sm:$0xff]
  %v1256 = vld [vmem:[%s7 + $0x30] sm:$0xff]
  %v1257 = vld [vmem:[%s7 + $0x38] sm:$0xff]
  %v1258 = vld [vmem:[%s8] sm:$0xff]
  %v1259 = vld [vmem:[%s8 + $0x8] sm:$0xff]
  %v1260 = vld [vmem:[%s8 + $0x10] sm:$0xff]
  %v1261 = vld [vmem:[%s8 + $0x18] sm:$0xff]
  %v1262 = vld [vmem:[%s8 + $0x20] sm:$0xff]
  %v1263 = vld [vmem:[%s8 + $0x28] sm:$0xff]
  %v1264 = vld [vmem:[%s8 + $0x30] sm:$0xff]
  %v1265 = vld [vmem:[%s8 + $0x38] sm:$0xff]
  %v1267 = vsel %vm51, %v810, 0
  %1269 = vmatprep.subr.mxu0 0.0
  %1270 = vmatpush1.msra.mxu0 0.0
  %1271 = vmatprep.subr.mxu0 0.0
  %1272 = vmatpush1.msra.mxu0 0.0
  %1273 = vmatprep.subr.mxu0 0.0
  %1274 = vmatpush1.msra.mxu0 0.0
  %1275 = vmatprep.subr.mxu0 0.0
  %1276 = vmatpush1.msra.mxu0 0.0
  %1277 = vmatprep.subr.mxu0 0.0
  %1278 = vmatpush1.msra.mxu0 0.0
  %1279 = vmatprep.subr.mxu0 0.0
  %1280 = vmatpush1.msra.mxu0 0.0
  %1281 = vmatprep.subr.mxu0 0.0
  %1282 = vmatpush1.msra.mxu0 0.0
  %1283 = vmatprep.subr.mxu0 0.0
  %1284 = vmatpush1.msra.mxu0 0.0
  %1285 = vmatprep.subr.mxu0 0.0
  %1286 = vmatpush1.msra.mxu0 0.0
  %1287 = vmatprep.subr.mxu0 0.0
  %1288 = vmatpush1.msra.mxu0 0.0
  %1289 = vmatprep.subr.mxu0 0.0
  %1290 = vmatpush1.msra.mxu0 0.0
  %1291 = vmatprep.subr.mxu0 0.0
  %1292 = vmatpush1.msra.mxu0 0.0
  %1293 = vmatprep.subr.mxu0 0.0
  %1294 = vmatpush1.msra.mxu0 %v1261
  %1295 = vmatprep.subr.mxu0 0.0
  %1296 = vmatpush1.msra.mxu0 %v1260
  %1297 = vmatprep.subr.mxu0 0.0
  %1298 = vmatpush1.msra.mxu0 %v1259
  %1299 = vmatprep.subr.mxu0 0.0
  %1300 = vmatpush1.msra.mxu0 %v1258
  %1301 = vmatprep.subr.mxu0 0.0
  %1302 = vmatpush2.msra.mxu0 0.0
  %1303 = vmatprep.subr.mxu0 0.0
  %1304 = vmatpush2.msra.mxu0 0.0
  %1305 = vmatprep.subr.mxu0 0.0
  %1306 = vmatpush2.msra.mxu0 0.0
  %1307 = vmatprep.subr.mxu0 0.0
  %1308 = vmatpush2.msra.mxu0 0.0
  %1309 = vmatprep.subr.mxu0 0.0
  %1310 = vmatpush2.msra.mxu0 0.0
  %1311 = vmatprep.subr.mxu0 0.0
  %1312 = vmatpush2.msra.mxu0 0.0
  %1313 = vmatprep.subr.mxu0 0.0
  %1314 = vmatpush2.msra.mxu0 0.0
  %1315 = vmatprep.subr.mxu0 0.0
  %1316 = vmatpush2.msra.mxu0 0.0
  %1317 = vmatprep.subr.mxu0 0.0
  %1318 = vmatpush2.msra.mxu0 0.0
  %1319 = vmatprep.subr.mxu0 0.0
  %1320 = vmatpush2.msra.mxu0 0.0
  %1321 = vmatprep.subr.mxu0 0.0
  %1322 = vmatpush2.msra.mxu0 0.0
  %1323 = vmatprep.subr.mxu0 0.0
  %1324 = vmatpush2.msra.mxu0 0.0
  %1325 = vmatprep.subr.mxu0 0.0
  %1326 = vmatpush2.msra.mxu0 0.0
  %1327 = vmatprep.subr.mxu0 0.0
  %1328 = vmatpush2.msra.mxu0 0.0
  %1329 = vmatprep.subr.mxu0 0.0
  %1330 = vmatpush2.msra.mxu0 0.0
  %1331 = vmatprep.subr.mxu0 0.0
  %1332 = vmatpush2.msra.mxu0 0.0
  %1333 = vmatprep.mubr.f32.mxu0 0.0
  %1334 = vmatmul.mubr.f32.gmra.mxu0 %v1267
  %v1335 = vpop.f32.mrf.mxu0
  %v1336 = vadd.f32 0.0, %v1335
  %v1337 = vpop.f32.mrf.mxu0
  %1338 = vdwg.mxu0
  %v1340 = vsel %vm51, %v892, 0
  %1342 = vmatprep.subr.mxu0 0.0
  %1343 = vmatpush1.msra.mxu0 0.0
  %1344 = vmatprep.subr.mxu0 0.0
  %1345 = vmatpush1.msra.mxu0 0.0
  %1346 = vmatprep.subr.mxu0 0.0
  %1347 = vmatpush1.msra.mxu0 0.0
  %1348 = vmatprep.subr.mxu0 0.0
  %1349 = vmatpush1.msra.mxu0 0.0
  %1350 = vmatprep.subr.mxu0 0.0
  %1351 = vmatpush1.msra.mxu0 0.0
  %1352 = vmatprep.subr.mxu0 0.0
  %1353 = vmatpush1.msra.mxu0 0.0
  %1354 = vmatprep.subr.mxu0 0.0
  %1355 = vmatpush1.msra.mxu0 0.0
  %1356 = vmatprep.subr.mxu0 0.0
  %1357 = vmatpush1.msra.mxu0 0.0
  %1358 = vmatprep.subr.mxu0 0.0
  %1359 = vmatpush1.msra.mxu0 0.0
  %1360 = vmatprep.subr.mxu0 0.0
  %1361 = vmatpush1.msra.mxu0 0.0
  %1362 = vmatprep.subr.mxu0 0.0
  %1363 = vmatpush1.msra.mxu0 0.0
  %1364 = vmatprep.subr.mxu0 0.0
  %1365 = vmatpush1.msra.mxu0 0.0
  %1366 = vmatprep.subr.mxu0 0.0
  %1367 = vmatpush1.msra.mxu0 %v1265
  %1368 = vmatprep.subr.mxu0 0.0
  %1369 = vmatpush1.msra.mxu0 %v1264
  %1370 = vmatprep.subr.mxu0 0.0
  %1371 = vmatpush1.msra.mxu0 %v1263
  %1372 = vmatprep.subr.mxu0 0.0
  %1373 = vmatpush1.msra.mxu0 %v1262
  %1374 = vmatprep.subr.mxu0 0.0
  %1375 = vmatpush2.msra.mxu0 0.0
  %1376 = vmatprep.subr.mxu0 0.0
  %1377 = vmatpush2.msra.mxu0 0.0
  %1378 = vmatprep.subr.mxu0 0.0
  %1379 = vmatpush2.msra.mxu0 0.0
  %1380 = vmatprep.subr.mxu0 0.0
  %1381 = vmatpush2.msra.mxu0 0.0
  %1382 = vmatprep.subr.mxu0 0.0
  %1383 = vmatpush2.msra.mxu0 0.0
  %1384 = vmatprep.subr.mxu0 0.0
  %1385 = vmatpush2.msra.mxu0 0.0
  %1386 = vmatprep.subr.mxu0 0.0
  %1387 = vmatpush2.msra.mxu0 0.0
  %1388 = vmatprep.subr.mxu0 0.0
  %1389 = vmatpush2.msra.mxu0 0.0
  %1390 = vmatprep.subr.mxu0 0.0
  %1391 = vmatpush2.msra.mxu0 0.0
  %1392 = vmatprep.subr.mxu0 0.0
  %1393 = vmatpush2.msra.mxu0 0.0
  %1394 = vmatprep.subr.mxu0 0.0
  %1395 = vmatpush2.msra.mxu0 0.0
  %1396 = vmatprep.subr.mxu0 0.0
  %1397 = vmatpush2.msra.mxu0 0.0
  %1398 = vmatprep.subr.mxu0 0.0
  %1399 = vmatpush2.msra.mxu0 0.0
  %1400 = vmatprep.subr.mxu0 0.0
  %1401 = vmatpush2.msra.mxu0 0.0
  %1402 = vmatprep.subr.mxu0 0.0
  %1403 = vmatpush2.msra.mxu0 0.0
  %1404 = vmatprep.subr.mxu0 0.0
  %1405 = vmatpush2.msra.mxu0 0.0
  %1406 = vmatprep.mubr.f32.mxu0 0.0
  %1407 = vmatmul.mubr.f32.gmra.mxu0 %v1340
  %v1408 = vpop.f32.mrf.mxu0
  %v1409 = vadd.f32 0.0, %v1408
  %v1410 = vpop.f32.mrf.mxu0
  %1411 = vdwg.mxu0
  %1412 = vmatprep.subr.mxu0 0.0
  %1413 = vmatpush1.msra.mxu0 0.0
  %1414 = vmatprep.subr.mxu0 0.0
  %1415 = vmatpush1.msra.mxu0 0.0
  %1416 = vmatprep.subr.mxu0 0.0
  %1417 = vmatpush1.msra.mxu0 0.0
  %1418 = vmatprep.subr.mxu0 0.0
  %1419 = vmatpush1.msra.mxu0 0.0
  %1420 = vmatprep.subr.mxu0 0.0
  %1421 = vmatpush1.msra.mxu0 0.0
  %1422 = vmatprep.subr.mxu0 0.0
  %1423 = vmatpush1.msra.mxu0 0.0
  %1424 = vmatprep.subr.mxu0 0.0
  %1425 = vmatpush1.msra.mxu0 0.0
  %1426 = vmatprep.subr.mxu0 0.0
  %1427 = vmatpush1.msra.mxu0 0.0
  %1428 = vmatprep.subr.mxu0 0.0
  %1429 = vmatpush1.msra.mxu0 0.0
  %1430 = vmatprep.subr.mxu0 0.0
  %1431 = vmatpush1.msra.mxu0 0.0
  %1432 = vmatprep.subr.mxu0 0.0
  %1433 = vmatpush1.msra.mxu0 0.0
  %1434 = vmatprep.subr.mxu0 0.0
  %1435 = vmatpush1.msra.mxu0 0.0
  %1436 = vmatprep.subr.mxu0 0.0
  %1437 = vmatpush1.msra.mxu0 %v1253
  %1438 = vmatprep.subr.mxu0 0.0
  %1439 = vmatpush1.msra.mxu0 %v1252
  %1440 = vmatprep.subr.mxu0 0.0
  %1441 = vmatpush1.msra.mxu0 %v1251
  %1442 = vmatprep.subr.mxu0 0.0
  %1443 = vmatpush1.msra.mxu0 %v1250
  %1444 = vmatprep.subr.mxu0 0.0
  %1445 = vmatpush2.msra.mxu0 0.0
  %1446 = vmatprep.subr.mxu0 0.0
  %1447 = vmatpush2.msra.mxu0 0.0
  %1448 = vmatprep.subr.mxu0 0.0
  %1449 = vmatpush2.msra.mxu0 0.0
  %1450 = vmatprep.subr.mxu0 0.0
  %1451 = vmatpush2.msra.mxu0 0.0
  %1452 = vmatprep.subr.mxu0 0.0
  %1453 = vmatpush2.msra.mxu0 0.0
  %1454 = vmatprep.subr.mxu0 0.0
  %1455 = vmatpush2.msra.mxu0 0.0
  %1456 = vmatprep.subr.mxu0 0.0
  %1457 = vmatpush2.msra.mxu0 0.0
  %1458 = vmatprep.subr.mxu0 0.0
  %1459 = vmatpush2.msra.mxu0 0.0
  %1460 = vmatprep.subr.mxu0 0.0
  %1461 = vmatpush2.msra.mxu0 0.0
  %1462 = vmatprep.subr.mxu0 0.0
  %1463 = vmatpush2.msra.mxu0 0.0
  %1464 = vmatprep.subr.mxu0 0.0
  %1465 = vmatpush2.msra.mxu0 0.0
  %1466 = vmatprep.subr.mxu0 0.0
  %1467 = vmatpush2.msra.mxu0 0.0
  %1468 = vmatprep.subr.mxu0 0.0
  %1469 = vmatpush2.msra.mxu0 0.0
  %1470 = vmatprep.subr.mxu0 0.0
  %1471 = vmatpush2.msra.mxu0 0.0
  %1472 = vmatprep.subr.mxu0 0.0
  %1473 = vmatpush2.msra.mxu0 0.0
  %1474 = vmatprep.subr.mxu0 0.0
  %1475 = vmatpush2.msra.mxu0 0.0
  %1476 = vmatprep.mubr.f32.mxu0 0.0
  %1477 = vmatmul.mubr.f32.gmra.mxu0 %v62
  %v1478 = vpop.f32.mrf.mxu0
  %v1479 = vadd.f32 %v1336, %v1478
  %v1480 = vpop.f32.mrf.mxu0
  %1481 = vdwg.mxu0
  %1482 = vmatprep.subr.mxu0 0.0
  %1483 = vmatpush1.msra.mxu0 0.0
  %1484 = vmatprep.subr.mxu0 0.0
  %1485 = vmatpush1.msra.mxu0 0.0
  %1486 = vmatprep.subr.mxu0 0.0
  %1487 = vmatpush1.msra.mxu0 0.0
  %1488 = vmatprep.subr.mxu0 0.0
  %1489 = vmatpush1.msra.mxu0 0.0
  %1490 = vmatprep.subr.mxu0 0.0
  %1491 = vmatpush1.msra.mxu0 0.0
  %1492 = vmatprep.subr.mxu0 0.0
  %1493 = vmatpush1.msra.mxu0 0.0
  %1494 = vmatprep.subr.mxu0 0.0
  %1495 = vmatpush1.msra.mxu0 0.0
  %1496 = vmatprep.subr.mxu0 0.0
  %1497 = vmatpush1.msra.mxu0 0.0
  %1498 = vmatprep.subr.mxu0 0.0
  %1499 = vmatpush1.msra.mxu0 0.0
  %1500 = vmatprep.subr.mxu0 0.0
  %1501 = vmatpush1.msra.mxu0 0.0
  %1502 = vmatprep.subr.mxu0 0.0
  %1503 = vmatpush1.msra.mxu0 0.0
  %1504 = vmatprep.subr.mxu0 0.0
  %1505 = vmatpush1.msra.mxu0 0.0
  %1506 = vmatprep.subr.mxu0 0.0
  %1507 = vmatpush1.msra.mxu0 %v1257
  %1508 = vmatprep.subr.mxu0 0.0
  %1509 = vmatpush1.msra.mxu0 %v1256
  %1510 = vmatprep.subr.mxu0 0.0
  %1511 = vmatpush1.msra.mxu0 %v1255
  %1512 = vmatprep.subr.mxu0 0.0
  %1513 = vmatpush1.msra.mxu0 %v1254
  %1514 = vmatprep.subr.mxu0 0.0
  %1515 = vmatpush2.msra.mxu0 0.0
  %1516 = vmatprep.subr.mxu0 0.0
  %1517 = vmatpush2.msra.mxu0 0.0
  %1518 = vmatprep.subr.mxu0 0.0
  %1519 = vmatpush2.msra.mxu0 0.0
  %1520 = vmatprep.subr.mxu0 0.0
  %1521 = vmatpush2.msra.mxu0 0.0
  %1522 = vmatprep.subr.mxu0 0.0
  %1523 = vmatpush2.msra.mxu0 0.0
  %1524 = vmatprep.subr.mxu0 0.0
  %1525 = vmatpush2.msra.mxu0 0.0
  %1526 = vmatprep.subr.mxu0 0.0
  %1527 = vmatpush2.msra.mxu0 0.0
  %1528 = vmatprep.subr.mxu0 0.0
  %1529 = vmatpush2.msra.mxu0 0.0
  %1530 = vmatprep.subr.mxu0 0.0
  %1531 = vmatpush2.msra.mxu0 0.0
  %1532 = vmatprep.subr.mxu0 0.0
  %1533 = vmatpush2.msra.mxu0 0.0
  %1534 = vmatprep.subr.mxu0 0.0
  %1535 = vmatpush2.msra.mxu0 0.0
  %1536 = vmatprep.subr.mxu0 0.0
  %1537 = vmatpush2.msra.mxu0 0.0
  %1538 = vmatprep.subr.mxu0 0.0
  %1539 = vmatpush2.msra.mxu0 0.0
  %1540 = vmatprep.subr.mxu0 0.0
  %1541 = vmatpush2.msra.mxu0 0.0
  %1542 = vmatprep.subr.mxu0 0.0
  %1543 = vmatpush2.msra.mxu0 0.0
  %1544 = vmatprep.subr.mxu0 0.0
  %1545 = vmatpush2.msra.mxu0 0.0
  %1546 = vmatprep.mubr.f32.mxu0 0.0
  %1547 = vmatmul.mubr.f32.gmra.mxu0 %v157
  %v1548 = vpop.f32.mrf.mxu0
  %v1549 = vadd.f32 %v1409, %v1548
  %v1550 = vpop.f32.mrf.mxu0
  %1551 = vdwg.mxu0
  %v1552 = vld [vmem:[%s9] sm:$0x1]
  %v1554 = vlaneseq
  %v1555 = vshrl.u32 %v1554, 7
  %v1556 = vsub.s32 0, %v1555
  %v1557 = vrot.slane %v1552, %v1556
  %v1559 = vadd.f32 %v1479, %v1557
  %v1560 = vadd.f32 %v1549, %v1557
  %v1561 = vmax.f32 %v1559, 0.0
  %v1562 = vmax.f32 %v1560, 0.0
  %v1563 = vadd.f32 %v43, %v1561
  %v1564 = vadd.f32 %v45, %v1562
  %1565 = vst.msk [vmem:[%s11] sm:$0xff] %vm51, %v1563
  %1566 = vst.msk [vmem:[%s11 + $0x8] sm:$0xff] %vm51, %v1564
  // Predicated region
  $region42: #{dcn_forward.6} parent=0 // pred_check
    _
  $region43: #{dcn_forward.6} parent=0 // pred_check_branch
    %1568 = sbr.rel (0) target = $region45
  $region44: #{dcn_forward.6} parent=0 // pred_region
    _
  $region45: #{dcn_forward.6} parent=0 // pred_fallthru
    _
  // Predicated region
  $region46: #{dcn_forward.6} parent=0 // pred_check
    _
  $region47: #{dcn_forward.6} parent=0 // pred_check_branch
    %1570 = sbr.rel (0) target = $region49
  $region48: #{dcn_forward.6} parent=0 // pred_region
    _
  $region49: #{dcn_forward.6} parent=0 // pred_fallthru
    _
  // Predicated region
  $region50: #{dcn_forward.6} parent=0 // pred_check
    _
  $region51: #{dcn_forward.6} parent=0 // pred_check_branch
    %1572 = sbr.rel (0) target = $region53
  $region52: #{dcn_forward.6} parent=0 // pred_region
    _
  $region53: #{dcn_forward.6} parent=0 // pred_fallthru
    _
  // Predicated region
  $region54: #{dcn_forward.6} parent=0 // pred_check
    _
  $region55: #{dcn_forward.6} parent=0 // pred_check_branch
    %1574 = sbr.rel (0) target = $region57
  $region56: #{dcn_forward.6} parent=0 // pred_region
    _
  $region57: #{dcn_forward.6} parent=0 // pred_fallthru
    _

</llo_original>
